<compile_context>
chip_gen: v6e
topology: v6e:2x2x1
jax: 0.10.0
libtpu: 0.0.40
codegen_flags: <defaults>
</compile_context>

<pallas_src>
import functools

import jax
import jax.numpy as jnp
from jax import lax
from jax.experimental import pallas as pl
from jax.experimental.pallas import tpu as pltpu

LN_EPS = 1e-5        # torch.nn.LayerNorm default
NEG_INF = -1e30      # finite "-inf": keeps fully-masked rows NaN/inf free


def _block_kernel(vl_ref,                     # scalar-prefetch: (B,) int32 in SMEM
                  x_ref,                      # (Bb, T, D)
                  wqkv_ref,                   # (D, 3*H*hs)  [Q|K|V], Q pre-scaled
                  wp_ref, bp_ref,             # (H*hs, D), (1, D)
                  g1_ref, b1_ref,             # (1, D) LayerNorm1 gamma/beta
                  g2_ref, b2_ref,             # (1, D) LayerNorm2 gamma/beta
                  o_ref,                      # (Bb, T, D)
                  *, num_heads, head_size, causal, mxu_dtype):
    Bb, T, D = x_ref.shape
    hs = head_size
    HD = num_heads * head_size
    b0 = pl.program_id(0) * Bb

    x = x_ref[...].astype(jnp.float32)                        # (Bb, T, D)

    # ---------------- LayerNorm 1 (f32 VPU math) ----------------
    mu = jnp.mean(x, axis=-1, keepdims=True)
    var = jnp.mean((x - mu) ** 2, axis=-1, keepdims=True)
    xn = (x - mu) * lax.rsqrt(var + LN_EPS)
    xn = xn * g1_ref[...] + b1_ref[...]

    # ---------- fused lane-dense QKV projection: one (Bb*T,D)@(D,3HD) ----------
    qkv = jnp.einsum("btd,de->bte", xn.astype(mxu_dtype), wqkv_ref[...],
                     preferred_element_type=jnp.float32)       # (Bb, T, 3*HD)
    qkv = qkv.astype(mxu_dtype)

    # -------- mask: (T,1)/(1,T) iotas vs. (Bb,1,1) valid-length vector --------
    row_i = lax.broadcasted_iota(jnp.int32, (T, 1), 0)
    col_i = lax.broadcasted_iota(jnp.int32, (1, T), 1)
    lens = jnp.stack([vl_ref[b0 + i] for i in range(Bb)]).reshape(Bb, 1, 1)
    row_valid = row_i < lens                                   # (Bb,T,1): row has >=1 key
    mask = jnp.logical_and(row_valid, col_i < lens)            # (Bb,T,T) square mask
    if causal:                                                 # forward_mask: tril
        mask = jnp.logical_and(mask, (col_i <= row_i)[None])

    # ---------------- multi-head self-attention ----------------
    # attention scale (hs**-0.5) is pre-folded into the Q weights host-side.
    head_outs = []
    for h in range(num_heads):                                 # H is small & static
        q = qkv[:, :, h * hs:(h + 1) * hs]                     # (Bb, T, hs)
        k = qkv[:, :, HD + h * hs:HD + (h + 1) * hs]
        v = qkv[:, :, 2 * HD + h * hs:2 * HD + (h + 1) * hs]
        wei = jnp.einsum("bqc,bkc->bqk", q, k,
                         preferred_element_type=jnp.float32)   # (Bb, T, T)
        wei = jnp.where(mask, wei, NEG_INF)                    # masked max: precision-safe
        m_row = jnp.max(wei, axis=-1, keepdims=True)
        e = jnp.exp(wei - m_row)                               # masked entries -> exactly 0
        s = jnp.sum(e, axis=-1, keepdims=True)                 # >= 1 by construction
        p = e * pl.reciprocal(s, approx=True)                  # EUP slot, frees VALU
        # NOTE: dropout on p is identity in eval mode.
        head_outs.append(jnp.einsum("bqk,bkc->bqc", p.astype(mxu_dtype), v,
                                    preferred_element_type=jnp.float32))
    head_cat = jnp.concatenate(head_outs, axis=-1)             # (Bb, T, HD)
    # ONE lane-dense output projection (K = HD) instead of H K=hs matmuls.
    attn = jnp.einsum("bte,ed->btd", head_cat.astype(mxu_dtype), wp_ref[...],
                      preferred_element_type=jnp.float32)      # (Bb, T, D)
    # fully-masked rows -> 0 head output (projection bias still applies, as in torch)
    attn = jnp.where(row_valid, attn, 0.0)

    x1 = x + attn + bp_ref[...]                                # residual 1 (+ proj bias)

    # ---------- LayerNorm 2 + FeedForward(ReLU) + residual ----------
    mu2 = jnp.mean(x1, axis=-1, keepdims=True)
    var2 = jnp.mean((x1 - mu2) ** 2, axis=-1, keepdims=True)
    xn2 = (x1 - mu2) * lax.rsqrt(var2 + LN_EPS)
    xn2 = xn2 * g2_ref[...] + b2_ref[...]
    o_ref[...] = (x1 + jnp.maximum(xn2, 0.0)).astype(o_ref.dtype)


def _vmem_bytes(block_b, T, D, HD, mxu_bytes, io_bytes):
    """Rough live-VMEM footprint of one grid step (single-buffered weights)."""
    io = 2 * 2 * block_b * T * D * io_bytes                    # x/out, double-buffered
    weights = (3 * D * HD + HD * D + 5 * D) * mxu_bytes
    acts = block_b * T * (4 * D * 4                            # x, xn, attn, x1 (f32)
                          + 3 * HD * (4 + mxu_bytes)           # qkv (f32 + mxu copy)
                          + HD * (4 + mxu_bytes))              # head_cat (f32 + mxu copy)
    scores = block_b * T * T * (3 * 4 + 1)                     # wei/e/p f32 + bool mask
    return io + weights + acts + scores


def _choose_block_b(B, T, D, HD, mxu_bytes, io_bytes, vmem_budget):
    # Keep >= 2 grid steps when B >= 2 (lets v7x's two TensorCores split the
    # "parallel" batch axis and gives the BlockSpec pipeline DMA to overlap),
    # then take the largest divisor of B whose footprint fits the budget.
    cap = max(1, B // 2)
    best = 1                       # prime B / huge T fall back to one row per step
    for bb in range(1, cap + 1):
        if B % bb == 0 and _vmem_bytes(bb, T, D, HD, mxu_bytes, io_bytes) <= vmem_budget:
            best = bb
    return best


def transformer_block(x, valid_lens, params, *, num_heads, causal=True,
                      block_b=None, mxu_dtype=jnp.bfloat16,
                      vmem_budget_bytes=40 * 1024 * 1024):
    B, T, D = x.shape
    hs = D // num_heads
    HD = num_heads * hs
    out_dtype = x.dtype                 # lane-dense writeback in the activation dtype
    mxu_bytes = jnp.dtype(mxu_dtype).itemsize
    io_bytes = jnp.dtype(out_dtype).itemsize

    if block_b is None:
        block_b = _choose_block_b(B, T, D, HD, mxu_bytes, io_bytes, vmem_budget_bytes)
    assert B % block_b == 0, "block_b must divide B"

    # Host-side weight prep (free, outside the kernel): (H,D,hs) -> lane-dense
    # (D, H*hs); attention scale folded into Q; MXU operands cast to mxu_dtype
    # (bf16 default = native MXU dtype on v5e/v6e/v7x, f32 accumulation kept).
    scale = float(hs) ** -0.5
    wq = params["wq"].transpose(1, 0, 2).reshape(D, HD) * scale
    wk = params["wk"].transpose(1, 0, 2).reshape(D, HD)
    wv = params["wv"].transpose(1, 0, 2).reshape(D, HD)
    wqkv = jnp.concatenate([wq, wk, wv], axis=-1).astype(mxu_dtype)   # (D, 3*HD)
    wp = params["wp"].astype(mxu_dtype)                               # (HD, D)

    est = _vmem_bytes(block_b, T, D, HD, mxu_bytes, io_bytes)
    # ~25% headroom over the estimate; floor at the v6e default, cap below v7x physical.
    vmem_limit = int(min(max(32 << 20, est * 5 // 4), 56 << 20))

    kern = functools.partial(_block_kernel, num_heads=num_heads, head_size=hs,
                             causal=causal, mxu_dtype=mxu_dtype)

    def build(single_buffer_weights):
        # Grid-invariant weights gain nothing from double buffering; Buffered(1)
        # halves their VMEM residency (matters most on v7x's 64 MiB).
        wkw = dict(pipeline_mode=pl.Buffered(1)) if single_buffer_weights else {}

        def wspec(shape):
            return pl.BlockSpec(shape, lambda b, vl: (0,) * len(shape), **wkw)

        grid_spec = pltpu.PrefetchScalarGridSpec(
            num_scalar_prefetch=1,              # valid_lens -> SMEM
            grid=(B // block_b,),
            in_specs=[
                pl.BlockSpec((block_b, T, D), lambda b, vl: (b, 0, 0)),   # x
                wspec((D, 3 * HD)),                                       # wqkv (fused)
                wspec((HD, D)),                                           # wp
                wspec((1, D)),                                            # bp
                wspec((1, D)), wspec((1, D)),                             # ln1 gamma/beta
                wspec((1, D)), wspec((1, D)),                             # ln2 gamma/beta
            ],
            out_specs=pl.BlockSpec((block_b, T, D), lambda b, vl: (b, 0, 0)),
        )
        return pl.pallas_call(
            kern,
            out_shape=jax.ShapeDtypeStruct((B, T, D), out_dtype),
            grid_spec=grid_spec,
            compiler_params=pltpu.CompilerParams(
                dimension_semantics=("parallel",),     # batch axis -> both v7x TCs
                vmem_limit_bytes=vmem_limit),
        )

    args = (valid_lens, x, wqkv, wp, params["bp"], params["g1"], params["b1"],
            params["g2"], params["b2"])
    try:
        return build(True)(*args)
    except Exception:
        # pipeline_mode=pl.Buffered(1) support varies across jax releases; the
        # default double-buffered weights are still correct, just less VMEM-lean.
        return build(False)(*args)


def reference_block(x, valid_lens, params, *, num_heads, causal=True):
    """Pure-JAX mirror of the PyTorch forward (eval mode), for correctness checks."""
    B, T, D = x.shape
    hs = D // num_heads

    def ln(z, g, b):
        mu = jnp.mean(z, -1, keepdims=True)
        var = jnp.mean((z - mu) ** 2, -1, keepdims=True)
        return (z - mu) / jnp.sqrt(var + LN_EPS) * g + b

    xn = ln(x, params["g1"][0], params["b1"][0])
    row = jnp.arange(T)[:, None]
    col = jnp.arange(T)[None, :]
    mask = (row < valid_lens[:, None, None]) & (col < valid_lens[:, None, None])
    if causal:
        mask = mask & (col <= row)
    outs = []
    for h in range(num_heads):
        q = xn @ params["wq"][h]
        k = xn @ params["wk"][h]
        v = xn @ params["wv"][h]
        wei = jnp.einsum("btk,bsk->bts", q, k) * hs ** -0.5
        wei = jnp.where(mask, wei, -jnp.inf)
        row_valid = jnp.any(mask, -1, keepdims=True)
        p = jnp.where(row_valid, jax.nn.softmax(wei, axis=-1), 0.0)
        outs.append(p @ v)
    cat = jnp.concatenate(outs, -1)
    x1 = x + cat @ params["wp"] + params["bp"][0]
    return x1 + jax.nn.relu(ln(x1, params["g2"][0], params["b2"][0]))


if __name__ == "__main__":
    key = jax.random.PRNGKey(0)
    B, T, D, H = 2, 8, 32, 4
    hs = D // H
    ks = jax.random.split(key, 6)
    x = jax.random.normal(ks[0], (B, T, D), jnp.float32)
    valid_lens = jnp.array([5, 8], dtype=jnp.int32)

    w_scale = 1.0 / jnp.sqrt(jnp.float32(D))
    params = dict(
        wq=jax.random.normal(ks[1], (H, D, hs), jnp.float32) * w_scale,
        wk=jax.random.normal(ks[2], (H, D, hs), jnp.float32) * w_scale,
        wv=jax.random.normal(ks[3], (H, D, hs), jnp.float32) * w_scale,
        wp=jax.random.normal(ks[4], (H * hs, D), jnp.float32) * w_scale,
        bp=jax.random.normal(ks[5], (1, D), jnp.float32) * 0.1,
        g1=jnp.ones((1, D), jnp.float32),
        b1=jnp.zeros((1, D), jnp.float32),
        g2=jnp.ones((1, D), jnp.float32),
        b2=jnp.zeros((1, D), jnp.float32),
    )

    ref = reference_block(x, valid_lens, params, num_heads=H, causal=True)

    # f32-MXU path: tight check (tolerance only loosened for the EUP approx reciprocal).
    out_f32 = transformer_block(x, valid_lens, params, num_heads=H, causal=True,
                                mxu_dtype=jnp.float32)
    out_f32 = jax.block_until_ready(out_f32)
    assert jnp.allclose(out_f32, ref, atol=1e-2, rtol=1e-2), float(
        jnp.max(jnp.abs(out_f32 - ref)))

    # default path: bf16 MXU inputs, f32 accumulation (fast path on all gens).
    out_bf = transformer_block(x, valid_lens, params, num_heads=H, causal=True)
    out_bf = jax.block_until_ready(out_bf)
    assert jnp.allclose(out_bf, ref, atol=2e-1, rtol=2e-1), float(
        jnp.max(jnp.abs(out_bf - ref)))

    print("KERNEL_OK")
</pallas_src>

<mosaic_0001>
module attributes {stable_mosaic.version = 11 : i64} {
  func.func @_block_kernel(%arg0: i32, %arg1: memref<2xi32, #tpu.memory_space<smem>>, %arg2: memref<1x8x32xf32, #tpu.memory_space<vmem>>, %arg3: memref<32x96xf32, #tpu.memory_space<vmem>>, %arg4: memref<32x32xf32, #tpu.memory_space<vmem>>, %arg5: memref<1x32xf32, #tpu.memory_space<vmem>>, %arg6: memref<1x32xf32, #tpu.memory_space<vmem>>, %arg7: memref<1x32xf32, #tpu.memory_space<vmem>>, %arg8: memref<1x32xf32, #tpu.memory_space<vmem>>, %arg9: memref<1x32xf32, #tpu.memory_space<vmem>>, %arg10: memref<1x8x32xf32, #tpu.memory_space<vmem>>) attributes {dimension_semantics = [#tpu.dimension_semantics<parallel>], iteration_bounds = array<i64: 2>, scalar_prefetch = 1 : i64, scratch_operands = 0 : i64, tpu.core_type = #tpu.core_type<tc>, window_params = [{transform_indices = @transform_0, window_bounds = array<i64: 1, 8, 32>}, {pipeline_mode = #tpu.pipeline_mode<synchronous>, transform_indices = @transform_1, window_bounds = array<i64: 32, 96>}, {pipeline_mode = #tpu.pipeline_mode<synchronous>, transform_indices = @transform_2, window_bounds = array<i64: 32, 32>}, {pipeline_mode = #tpu.pipeline_mode<synchronous>, transform_indices = @transform_3, window_bounds = array<i64: 1, 32>}, {pipeline_mode = #tpu.pipeline_mode<synchronous>, transform_indices = @transform_4, window_bounds = array<i64: 1, 32>}, {pipeline_mode = #tpu.pipeline_mode<synchronous>, transform_indices = @transform_5, window_bounds = array<i64: 1, 32>}, {pipeline_mode = #tpu.pipeline_mode<synchronous>, transform_indices = @transform_6, window_bounds = array<i64: 1, 32>}, {pipeline_mode = #tpu.pipeline_mode<synchronous>, transform_indices = @transform_7, window_bounds = array<i64: 1, 32>}, {transform_indices = @transform_8, window_bounds = array<i64: 1, 8, 32>}]} {
    %c1_i32 = arith.constant 1 : i32
    %0 = arith.muli %arg0, %c1_i32 : i32
    %c0 = arith.constant 0 : index
    %c0_0 = arith.constant 0 : index
    %c0_1 = arith.constant 0 : index
    %1 = vector.load %arg2[%c0, %c0_0, %c0_1] : memref<1x8x32xf32, #tpu.memory_space<vmem>>, vector<1x8x32xf32>
    %cst = arith.constant dense<0.000000e+00> : vector<1x8xf32>
    %2 = vector.multi_reduction <add>, %1, %cst [2] : vector<1x8x32xf32> to vector<1x8xf32>
    %3 = vector.shape_cast %2 : vector<1x8xf32> to vector<1x8x1xf32>
    %cst_2 = arith.constant 3.200000e+01 : f32
    %4 = vector.broadcast %cst_2 : f32 to vector<1x8x1xf32>
    %5 = arith.divf %3, %4 : vector<1x8x1xf32>
    %6 = vector.broadcast %5 : vector<1x8x1xf32> to vector<1x8x32xf32>
    %7 = arith.subf %1, %6 : vector<1x8x32xf32>
    %8 = arith.mulf %7, %7 : vector<1x8x32xf32>
    %cst_3 = arith.constant dense<0.000000e+00> : vector<1x8xf32>
    %9 = vector.multi_reduction <add>, %8, %cst_3 [2] : vector<1x8x32xf32> to vector<1x8xf32>
    %10 = vector.shape_cast %9 : vector<1x8xf32> to vector<1x8x1xf32>
    %cst_4 = arith.constant 3.200000e+01 : f32
    %11 = vector.broadcast %cst_4 : f32 to vector<1x8x1xf32>
    %12 = arith.divf %10, %11 : vector<1x8x1xf32>
    %13 = vector.broadcast %5 : vector<1x8x1xf32> to vector<1x8x32xf32>
    %14 = arith.subf %1, %13 : vector<1x8x32xf32>
    %cst_5 = arith.constant 9.99999974E-6 : f32
    %15 = vector.broadcast %cst_5 : f32 to vector<1x8x1xf32>
    %16 = arith.addf %12, %15 : vector<1x8x1xf32>
    %17 = math.rsqrt %16 : vector<1x8x1xf32>
    %18 = vector.broadcast %17 : vector<1x8x1xf32> to vector<1x8x32xf32>
    %19 = arith.mulf %14, %18 : vector<1x8x32xf32>
    %c0_6 = arith.constant 0 : index
    %c0_7 = arith.constant 0 : index
    %20 = vector.load %arg6[%c0_6, %c0_7] : memref<1x32xf32, #tpu.memory_space<vmem>>, vector<1x32xf32>
    %21 = vector.shape_cast %20 : vector<1x32xf32> to vector<1x1x32xf32>
    %22 = vector.broadcast %21 : vector<1x1x32xf32> to vector<1x8x32xf32>
    %23 = arith.mulf %19, %22 : vector<1x8x32xf32>
    %c0_8 = arith.constant 0 : index
    %c0_9 = arith.constant 0 : index
    %24 = vector.load %arg7[%c0_8, %c0_9] : memref<1x32xf32, #tpu.memory_space<vmem>>, vector<1x32xf32>
    %25 = vector.shape_cast %24 : vector<1x32xf32> to vector<1x1x32xf32>
    %26 = vector.broadcast %25 : vector<1x1x32xf32> to vector<1x8x32xf32>
    %27 = arith.addf %23, %26 : vector<1x8x32xf32>
    %c0_10 = arith.constant 0 : index
    %c0_11 = arith.constant 0 : index
    %28 = vector.load %arg3[%c0_10, %c0_11] : memref<32x96xf32, #tpu.memory_space<vmem>>, vector<32x96xf32>
    "tpu.trace_start"() <{level = 10 : i32, message = "btd,de->bte"}> : () -> ()
    %cst_12 = arith.constant dense<0.000000e+00> : vector<1x8x96xf32>
    %29 = tpu.matmul %27, %28, %cst_12 {dimension_numbers = #tpu.dot_dimension_numbers<[2], [0], [0, 1], [1], [0, 0, 0, 1, 1, 1], [], []>} : vector<1x8x32xf32>, vector<32x96xf32>, vector<1x8x96xf32> -> vector<1x8x96xf32>
    "tpu.trace_stop"() : () -> ()
    %30 = tpu.iota {dimensions = array<i32: 0>} : vector<8x1xi32>
    %31 = tpu.iota {dimensions = array<i32: 1>} : vector<1x8xi32>
    %c0_i32 = arith.constant 0 : i32
    %32 = arith.addi %0, %c0_i32 : i32
    %33 = arith.index_cast %32 : i32 to index
    %34 = memref.load %arg1[%33] : memref<2xi32, #tpu.memory_space<smem>>
    %35 = vector.broadcast %34 : i32 to vector<1xi32>
    %36 = vector.shape_cast %35 : vector<1xi32> to vector<1x1x1xi32>
    %37 = vector.shape_cast %30 : vector<8x1xi32> to vector<1x8x1xi32>
    %38 = vector.broadcast %36 : vector<1x1x1xi32> to vector<1x8x1xi32>
    %39 = arith.cmpi slt, %37, %38 : vector<1x8x1xi32>
    %40 = vector.shape_cast %31 : vector<1x8xi32> to vector<1x1x8xi32>
    %41 = vector.broadcast %36 : vector<1x1x1xi32> to vector<1x1x8xi32>
    %42 = arith.cmpi slt, %40, %41 : vector<1x1x8xi32>
    %43 = vector.broadcast %39 : vector<1x8x1xi1> to vector<1x8x8xi1>
    %44 = vector.broadcast %42 : vector<1x1x8xi1> to vector<1x8x8xi1>
    %45 = arith.andi %43, %44 : vector<1x8x8xi1>
    %46 = vector.broadcast %31 : vector<1x8xi32> to vector<8x8xi32>
    %47 = vector.broadcast %30 : vector<8x1xi32> to vector<8x8xi32>
    %48 = arith.cmpi sle, %46, %47 : vector<8x8xi32>
    %49 = vector.shape_cast %48 : vector<8x8xi1> to vector<1x8x8xi1>
    %50 = arith.andi %45, %49 : vector<1x8x8xi1>
    %51 = vector.extract_strided_slice %29 {offsets = [0, 0, 0], sizes = [1, 8, 8], strides = [1, 1, 1]} : vector<1x8x96xf32> to vector<1x8x8xf32>
    %52 = vector.extract_strided_slice %29 {offsets = [0, 0, 32], sizes = [1, 8, 8], strides = [1, 1, 1]} : vector<1x8x96xf32> to vector<1x8x8xf32>
    %53 = vector.extract_strided_slice %29 {offsets = [0, 0, 64], sizes = [1, 8, 8], strides = [1, 1, 1]} : vector<1x8x96xf32> to vector<1x8x8xf32>
    "tpu.trace_start"() <{level = 10 : i32, message = "bqc,bkc->bqk"}> : () -> ()
    %cst_13 = arith.constant dense<0.000000e+00> : vector<1x8x8xf32>
    %54 = tpu.matmul %51, %52, %cst_13 {dimension_numbers = #tpu.dot_dimension_numbers<[2], [2], [1], [1], [0, 0, 0, 1, 1, 1], [0], [0]>} : vector<1x8x8xf32>, vector<1x8x8xf32>, vector<1x8x8xf32> -> vector<1x8x8xf32>
    %cst_14 = arith.constant -1.000000e+30 : f32
    "tpu.trace_stop"() : () -> ()
    %55 = vector.broadcast %cst_14 : f32 to vector<1x8x8xf32>
    %56 = arith.select %50, %54, %55 : vector<1x8x8xi1>, vector<1x8x8xf32>
    %cst_15 = arith.constant dense<0xFF800000> : vector<1x8xf32>
    %57 = vector.multi_reduction <maximumf>, %56, %cst_15 [2] : vector<1x8x8xf32> to vector<1x8xf32>
    %58 = vector.shape_cast %57 : vector<1x8xf32> to vector<1x8x1xf32>
    %59 = vector.broadcast %58 : vector<1x8x1xf32> to vector<1x8x8xf32>
    %60 = arith.subf %56, %59 : vector<1x8x8xf32>
    %61 = math.exp %60 : vector<1x8x8xf32>
    %cst_16 = arith.constant dense<0.000000e+00> : vector<1x8xf32>
    %62 = vector.multi_reduction <add>, %61, %cst_16 [2] : vector<1x8x8xf32> to vector<1x8xf32>
    %63 = vector.shape_cast %62 : vector<1x8xf32> to vector<1x8x1xf32>
    %64 = tpu.reciprocal %63 {approx = true} : vector<1x8x1xf32> -> vector<1x8x1xf32>
    %65 = vector.broadcast %64 : vector<1x8x1xf32> to vector<1x8x8xf32>
    %66 = arith.mulf %61, %65 : vector<1x8x8xf32>
    "tpu.trace_start"() <{level = 10 : i32, message = "bqk,bkc->bqc"}> : () -> ()
    %cst_17 = arith.constant dense<0.000000e+00> : vector<1x8x8xf32>
    %67 = tpu.matmul %66, %53, %cst_17 {dimension_numbers = #tpu.dot_dimension_numbers<[2], [1], [1], [2], [0, 0, 0, 1, 1, 2], [0], [0]>} : vector<1x8x8xf32>, vector<1x8x8xf32>, vector<1x8x8xf32> -> vector<1x8x8xf32>
    "tpu.trace_stop"() : () -> ()
    %68 = vector.extract_strided_slice %29 {offsets = [0, 0, 8], sizes = [1, 8, 8], strides = [1, 1, 1]} : vector<1x8x96xf32> to vector<1x8x8xf32>
    %69 = vector.extract_strided_slice %29 {offsets = [0, 0, 40], sizes = [1, 8, 8], strides = [1, 1, 1]} : vector<1x8x96xf32> to vector<1x8x8xf32>
    %70 = vector.extract_strided_slice %29 {offsets = [0, 0, 72], sizes = [1, 8, 8], strides = [1, 1, 1]} : vector<1x8x96xf32> to vector<1x8x8xf32>
    "tpu.trace_start"() <{level = 10 : i32, message = "bqc,bkc->bqk"}> : () -> ()
    %cst_18 = arith.constant dense<0.000000e+00> : vector<1x8x8xf32>
    %71 = tpu.matmul %68, %69, %cst_18 {dimension_numbers = #tpu.dot_dimension_numbers<[2], [2], [1], [1], [0, 0, 0, 1, 1, 1], [0], [0]>} : vector<1x8x8xf32>, vector<1x8x8xf32>, vector<1x8x8xf32> -> vector<1x8x8xf32>
    %cst_19 = arith.constant -1.000000e+30 : f32
    "tpu.trace_stop"() : () -> ()
    %72 = vector.broadcast %cst_19 : f32 to vector<1x8x8xf32>
    %73 = arith.select %50, %71, %72 : vector<1x8x8xi1>, vector<1x8x8xf32>
    %cst_20 = arith.constant dense<0xFF800000> : vector<1x8xf32>
    %74 = vector.multi_reduction <maximumf>, %73, %cst_20 [2] : vector<1x8x8xf32> to vector<1x8xf32>
    %75 = vector.shape_cast %74 : vector<1x8xf32> to vector<1x8x1xf32>
    %76 = vector.broadcast %75 : vector<1x8x1xf32> to vector<1x8x8xf32>
    %77 = arith.subf %73, %76 : vector<1x8x8xf32>
    %78 = math.exp %77 : vector<1x8x8xf32>
    %cst_21 = arith.constant dense<0.000000e+00> : vector<1x8xf32>
    %79 = vector.multi_reduction <add>, %78, %cst_21 [2] : vector<1x8x8xf32> to vector<1x8xf32>
    %80 = vector.shape_cast %79 : vector<1x8xf32> to vector<1x8x1xf32>
    %81 = tpu.reciprocal %80 {approx = true} : vector<1x8x1xf32> -> vector<1x8x1xf32>
    %82 = vector.broadcast %81 : vector<1x8x1xf32> to vector<1x8x8xf32>
    %83 = arith.mulf %78, %82 : vector<1x8x8xf32>
    "tpu.trace_start"() <{level = 10 : i32, message = "bqk,bkc->bqc"}> : () -> ()
    %cst_22 = arith.constant dense<0.000000e+00> : vector<1x8x8xf32>
    %84 = tpu.matmul %83, %70, %cst_22 {dimension_numbers = #tpu.dot_dimension_numbers<[2], [1], [1], [2], [0, 0, 0, 1, 1, 2], [0], [0]>} : vector<1x8x8xf32>, vector<1x8x8xf32>, vector<1x8x8xf32> -> vector<1x8x8xf32>
    "tpu.trace_stop"() : () -> ()
    %85 = vector.extract_strided_slice %29 {offsets = [0, 0, 16], sizes = [1, 8, 8], strides = [1, 1, 1]} : vector<1x8x96xf32> to vector<1x8x8xf32>
    %86 = vector.extract_strided_slice %29 {offsets = [0, 0, 48], sizes = [1, 8, 8], strides = [1, 1, 1]} : vector<1x8x96xf32> to vector<1x8x8xf32>
    %87 = vector.extract_strided_slice %29 {offsets = [0, 0, 80], sizes = [1, 8, 8], strides = [1, 1, 1]} : vector<1x8x96xf32> to vector<1x8x8xf32>
    "tpu.trace_start"() <{level = 10 : i32, message = "bqc,bkc->bqk"}> : () -> ()
    %cst_23 = arith.constant dense<0.000000e+00> : vector<1x8x8xf32>
    %88 = tpu.matmul %85, %86, %cst_23 {dimension_numbers = #tpu.dot_dimension_numbers<[2], [2], [1], [1], [0, 0, 0, 1, 1, 1], [0], [0]>} : vector<1x8x8xf32>, vector<1x8x8xf32>, vector<1x8x8xf32> -> vector<1x8x8xf32>
    %cst_24 = arith.constant -1.000000e+30 : f32
    "tpu.trace_stop"() : () -> ()
    %89 = vector.broadcast %cst_24 : f32 to vector<1x8x8xf32>
    %90 = arith.select %50, %88, %89 : vector<1x8x8xi1>, vector<1x8x8xf32>
    %cst_25 = arith.constant dense<0xFF800000> : vector<1x8xf32>
    %91 = vector.multi_reduction <maximumf>, %90, %cst_25 [2] : vector<1x8x8xf32> to vector<1x8xf32>
    %92 = vector.shape_cast %91 : vector<1x8xf32> to vector<1x8x1xf32>
    %93 = vector.broadcast %92 : vector<1x8x1xf32> to vector<1x8x8xf32>
    %94 = arith.subf %90, %93 : vector<1x8x8xf32>
    %95 = math.exp %94 : vector<1x8x8xf32>
    %cst_26 = arith.constant dense<0.000000e+00> : vector<1x8xf32>
    %96 = vector.multi_reduction <add>, %95, %cst_26 [2] : vector<1x8x8xf32> to vector<1x8xf32>
    %97 = vector.shape_cast %96 : vector<1x8xf32> to vector<1x8x1xf32>
    %98 = tpu.reciprocal %97 {approx = true} : vector<1x8x1xf32> -> vector<1x8x1xf32>
    %99 = vector.broadcast %98 : vector<1x8x1xf32> to vector<1x8x8xf32>
    %100 = arith.mulf %95, %99 : vector<1x8x8xf32>
    "tpu.trace_start"() <{level = 10 : i32, message = "bqk,bkc->bqc"}> : () -> ()
    %cst_27 = arith.constant dense<0.000000e+00> : vector<1x8x8xf32>
    %101 = tpu.matmul %100, %87, %cst_27 {dimension_numbers = #tpu.dot_dimension_numbers<[2], [1], [1], [2], [0, 0, 0, 1, 1, 2], [0], [0]>} : vector<1x8x8xf32>, vector<1x8x8xf32>, vector<1x8x8xf32> -> vector<1x8x8xf32>
    "tpu.trace_stop"() : () -> ()
    %102 = vector.extract_strided_slice %29 {offsets = [0, 0, 24], sizes = [1, 8, 8], strides = [1, 1, 1]} : vector<1x8x96xf32> to vector<1x8x8xf32>
    %103 = vector.extract_strided_slice %29 {offsets = [0, 0, 56], sizes = [1, 8, 8], strides = [1, 1, 1]} : vector<1x8x96xf32> to vector<1x8x8xf32>
    %104 = vector.extract_strided_slice %29 {offsets = [0, 0, 88], sizes = [1, 8, 8], strides = [1, 1, 1]} : vector<1x8x96xf32> to vector<1x8x8xf32>
    "tpu.trace_start"() <{level = 10 : i32, message = "bqc,bkc->bqk"}> : () -> ()
    %cst_28 = arith.constant dense<0.000000e+00> : vector<1x8x8xf32>
    %105 = tpu.matmul %102, %103, %cst_28 {dimension_numbers = #tpu.dot_dimension_numbers<[2], [2], [1], [1], [0, 0, 0, 1, 1, 1], [0], [0]>} : vector<1x8x8xf32>, vector<1x8x8xf32>, vector<1x8x8xf32> -> vector<1x8x8xf32>
    %cst_29 = arith.constant -1.000000e+30 : f32
    "tpu.trace_stop"() : () -> ()
    %106 = vector.broadcast %cst_29 : f32 to vector<1x8x8xf32>
    %107 = arith.select %50, %105, %106 : vector<1x8x8xi1>, vector<1x8x8xf32>
    %cst_30 = arith.constant dense<0xFF800000> : vector<1x8xf32>
    %108 = vector.multi_reduction <maximumf>, %107, %cst_30 [2] : vector<1x8x8xf32> to vector<1x8xf32>
    %109 = vector.shape_cast %108 : vector<1x8xf32> to vector<1x8x1xf32>
    %110 = vector.broadcast %109 : vector<1x8x1xf32> to vector<1x8x8xf32>
    %111 = arith.subf %107, %110 : vector<1x8x8xf32>
    %112 = math.exp %111 : vector<1x8x8xf32>
    %cst_31 = arith.constant dense<0.000000e+00> : vector<1x8xf32>
    %113 = vector.multi_reduction <add>, %112, %cst_31 [2] : vector<1x8x8xf32> to vector<1x8xf32>
    %114 = vector.shape_cast %113 : vector<1x8xf32> to vector<1x8x1xf32>
    %115 = tpu.reciprocal %114 {approx = true} : vector<1x8x1xf32> -> vector<1x8x1xf32>
    %116 = vector.broadcast %115 : vector<1x8x1xf32> to vector<1x8x8xf32>
    %117 = arith.mulf %112, %116 : vector<1x8x8xf32>
    "tpu.trace_start"() <{level = 10 : i32, message = "bqk,bkc->bqc"}> : () -> ()
    %cst_32 = arith.constant dense<0.000000e+00> : vector<1x8x8xf32>
    %118 = tpu.matmul %117, %104, %cst_32 {dimension_numbers = #tpu.dot_dimension_numbers<[2], [1], [1], [2], [0, 0, 0, 1, 1, 2], [0], [0]>} : vector<1x8x8xf32>, vector<1x8x8xf32>, vector<1x8x8xf32> -> vector<1x8x8xf32>
    "tpu.trace_stop"() : () -> ()
    %119 = tpu.concatenate %67, %84, %101, %118 in 2 : vector<1x8x8xf32>, vector<1x8x8xf32>, vector<1x8x8xf32>, vector<1x8x8xf32> -> vector<1x8x32xf32>
    %c0_33 = arith.constant 0 : index
    %c0_34 = arith.constant 0 : index
    %120 = vector.load %arg4[%c0_33, %c0_34] : memref<32x32xf32, #tpu.memory_space<vmem>>, vector<32x32xf32>
    "tpu.trace_start"() <{level = 10 : i32, message = "bte,ed->btd"}> : () -> ()
    %cst_35 = arith.constant dense<0.000000e+00> : vector<1x8x32xf32>
    %121 = tpu.matmul %119, %120, %cst_35 {dimension_numbers = #tpu.dot_dimension_numbers<[2], [0], [0, 1], [1], [0, 0, 0, 1, 1, 1], [], []>} : vector<1x8x32xf32>, vector<32x32xf32>, vector<1x8x32xf32> -> vector<1x8x32xf32>
    %cst_36 = arith.constant 0.000000e+00 : f32
    "tpu.trace_stop"() : () -> ()
    %122 = vector.shape_cast %39 : vector<1x8x1xi1> to vector<1x8x1xi1>
    %123 = vector.broadcast %122 : vector<1x8x1xi1> to vector<1x8x32xi1>
    %124 = vector.broadcast %cst_36 : f32 to vector<1x8x32xf32>
    %125 = arith.select %123, %121, %124 : vector<1x8x32xi1>, vector<1x8x32xf32>
    %126 = arith.addf %1, %125 : vector<1x8x32xf32>
    %c0_37 = arith.constant 0 : index
    %c0_38 = arith.constant 0 : index
    %127 = vector.load %arg5[%c0_37, %c0_38] : memref<1x32xf32, #tpu.memory_space<vmem>>, vector<1x32xf32>
    %128 = vector.shape_cast %127 : vector<1x32xf32> to vector<1x1x32xf32>
    %129 = vector.broadcast %128 : vector<1x1x32xf32> to vector<1x8x32xf32>
    %130 = arith.addf %126, %129 : vector<1x8x32xf32>
    %cst_39 = arith.constant dense<0.000000e+00> : vector<1x8xf32>
    %131 = vector.multi_reduction <add>, %130, %cst_39 [2] : vector<1x8x32xf32> to vector<1x8xf32>
    %132 = vector.shape_cast %131 : vector<1x8xf32> to vector<1x8x1xf32>
    %cst_40 = arith.constant 3.200000e+01 : f32
    %133 = vector.broadcast %cst_40 : f32 to vector<1x8x1xf32>
    %134 = arith.divf %132, %133 : vector<1x8x1xf32>
    %135 = vector.broadcast %134 : vector<1x8x1xf32> to vector<1x8x32xf32>
    %136 = arith.subf %130, %135 : vector<1x8x32xf32>
    %137 = arith.mulf %136, %136 : vector<1x8x32xf32>
    %cst_41 = arith.constant dense<0.000000e+00> : vector<1x8xf32>
    %138 = vector.multi_reduction <add>, %137, %cst_41 [2] : vector<1x8x32xf32> to vector<1x8xf32>
    %139 = vector.shape_cast %138 : vector<1x8xf32> to vector<1x8x1xf32>
    %cst_42 = arith.constant 3.200000e+01 : f32
    %140 = vector.broadcast %cst_42 : f32 to vector<1x8x1xf32>
    %141 = arith.divf %139, %140 : vector<1x8x1xf32>
    %142 = vector.broadcast %134 : vector<1x8x1xf32> to vector<1x8x32xf32>
    %143 = arith.subf %130, %142 : vector<1x8x32xf32>
    %cst_43 = arith.constant 9.99999974E-6 : f32
    %144 = vector.broadcast %cst_43 : f32 to vector<1x8x1xf32>
    %145 = arith.addf %141, %144 : vector<1x8x1xf32>
    %146 = math.rsqrt %145 : vector<1x8x1xf32>
    %147 = vector.broadcast %146 : vector<1x8x1xf32> to vector<1x8x32xf32>
    %148 = arith.mulf %143, %147 : vector<1x8x32xf32>
    %c0_44 = arith.constant 0 : index
    %c0_45 = arith.constant 0 : index
    %149 = vector.load %arg8[%c0_44, %c0_45] : memref<1x32xf32, #tpu.memory_space<vmem>>, vector<1x32xf32>
    %150 = vector.shape_cast %149 : vector<1x32xf32> to vector<1x1x32xf32>
    %151 = vector.broadcast %150 : vector<1x1x32xf32> to vector<1x8x32xf32>
    %152 = arith.mulf %148, %151 : vector<1x8x32xf32>
    %c0_46 = arith.constant 0 : index
    %c0_47 = arith.constant 0 : index
    %153 = vector.load %arg9[%c0_46, %c0_47] : memref<1x32xf32, #tpu.memory_space<vmem>>, vector<1x32xf32>
    %154 = vector.shape_cast %153 : vector<1x32xf32> to vector<1x1x32xf32>
    %155 = vector.broadcast %154 : vector<1x1x32xf32> to vector<1x8x32xf32>
    %156 = arith.addf %152, %155 : vector<1x8x32xf32>
    %cst_48 = arith.constant 0.000000e+00 : f32
    %157 = vector.broadcast %cst_48 : f32 to vector<1x8x32xf32>
    %158 = arith.maximumf %156, %157 : vector<1x8x32xf32>
    %159 = arith.addf %130, %158 : vector<1x8x32xf32>
    %c0_49 = arith.constant 0 : index
    %c0_50 = arith.constant 0 : index
    %c0_51 = arith.constant 0 : index
    %160 = vector.load %arg10[%c0_49, %c0_50, %c0_51] : memref<1x8x32xf32, #tpu.memory_space<vmem>>, vector<1x8x32xf32>
    tpu.vector_store %arg10[%c0_49, %c0_50, %c0_51], %159 {strides = array<i32>} : memref<1x8x32xf32, #tpu.memory_space<vmem>>, vector<1x8x32xf32>,
    return
  }
  func.func @transform_0(%arg0: i32, %arg1: memref<2xi32, #tpu.memory_space<smem>>) -> (i32, i32, i32) {
    %c0_i32 = arith.constant 0 : i32
    %c0_i32_0 = arith.constant 0 : i32
    %c0_i32_1 = arith.constant 0 : i32
    return %arg0, %c0_i32, %c0_i32_0 : i32, i32, i32
  }
  func.func @transform_1(%arg0: i32, %arg1: memref<2xi32, #tpu.memory_space<smem>>) -> (i32, i32) {
    %c0_i32 = arith.constant 0 : i32
    %c0_i32_0 = arith.constant 0 : i32
    %c0_i32_1 = arith.constant 0 : i32
    return %c0_i32, %c0_i32_0 : i32, i32
  }
  func.func @transform_2(%arg0: i32, %arg1: memref<2xi32, #tpu.memory_space<smem>>) -> (i32, i32) {
    %c0_i32 = arith.constant 0 : i32
    %c0_i32_0 = arith.constant 0 : i32
    %c0_i32_1 = arith.constant 0 : i32
    return %c0_i32, %c0_i32_0 : i32, i32
  }
  func.func @transform_3(%arg0: i32, %arg1: memref<2xi32, #tpu.memory_space<smem>>) -> (i32, i32) {
    %c0_i32 = arith.constant 0 : i32
    %c0_i32_0 = arith.constant 0 : i32
    %c0_i32_1 = arith.constant 0 : i32
    return %c0_i32, %c0_i32_0 : i32, i32
  }
  func.func @transform_4(%arg0: i32, %arg1: memref<2xi32, #tpu.memory_space<smem>>) -> (i32, i32) {
    %c0_i32 = arith.constant 0 : i32
    %c0_i32_0 = arith.constant 0 : i32
    %c0_i32_1 = arith.constant 0 : i32
    return %c0_i32, %c0_i32_0 : i32, i32
  }
  func.func @transform_5(%arg0: i32, %arg1: memref<2xi32, #tpu.memory_space<smem>>) -> (i32, i32) {
    %c0_i32 = arith.constant 0 : i32
    %c0_i32_0 = arith.constant 0 : i32
    %c0_i32_1 = arith.constant 0 : i32
    return %c0_i32, %c0_i32_0 : i32, i32
  }
  func.func @transform_6(%arg0: i32, %arg1: memref<2xi32, #tpu.memory_space<smem>>) -> (i32, i32) {
    %c0_i32 = arith.constant 0 : i32
    %c0_i32_0 = arith.constant 0 : i32
    %c0_i32_1 = arith.constant 0 : i32
    return %c0_i32, %c0_i32_0 : i32, i32
  }
  func.func @transform_7(%arg0: i32, %arg1: memref<2xi32, #tpu.memory_space<smem>>) -> (i32, i32) {
    %c0_i32 = arith.constant 0 : i32
    %c0_i32_0 = arith.constant 0 : i32
    %c0_i32_1 = arith.constant 0 : i32
    return %c0_i32, %c0_i32_0 : i32, i32
  }
  func.func @transform_8(%arg0: i32, %arg1: memref<2xi32, #tpu.memory_space<smem>>) -> (i32, i32, i32) {
    %c0_i32 = arith.constant 0 : i32
    %c0_i32_0 = arith.constant 0 : i32
    %c0_i32_1 = arith.constant 0 : i32
    return %arg0, %c0_i32, %c0_i32_0 : i32, i32, i32
  }
}

module attributes {stable_mosaic.version = 11 : i64} {
  func.func @_block_kernel(%arg0: i32, %arg1: memref<2xi32, #tpu.memory_space<smem>>, %arg2: memref<1x8x32xf32, #tpu.memory_space<vmem>>, %arg3: memref<32x96xf32, #tpu.memory_space<vmem>>, %arg4: memref<32x32xf32, #tpu.memory_space<vmem>>, %arg5: memref<1x32xf32, #tpu.memory_space<vmem>>, %arg6: memref<1x32xf32, #tpu.memory_space<vmem>>, %arg7: memref<1x32xf32, #tpu.memory_space<vmem>>, %arg8: memref<1x32xf32, #tpu.memory_space<vmem>>, %arg9: memref<1x32xf32, #tpu.memory_space<vmem>>, %arg10: memref<1x8x32xf32, #tpu.memory_space<vmem>>) attributes {dimension_semantics = [#tpu.dimension_semantics<parallel>], iteration_bounds = array<i64: 2>, scalar_prefetch = 1 : i64, scratch_operands = 0 : i64, tpu.core_type = #tpu.core_type<tc>, window_params = [{transform_indices = @transform_0, window_bounds = array<i64: 1, 8, 32>}, {pipeline_mode = #tpu.pipeline_mode<synchronous>, transform_indices = @transform_1, window_bounds = array<i64: 32, 96>}, {pipeline_mode = #tpu.pipeline_mode<synchronous>, transform_indices = @transform_2, window_bounds = array<i64: 32, 32>}, {pipeline_mode = #tpu.pipeline_mode<synchronous>, transform_indices = @transform_3, window_bounds = array<i64: 1, 32>}, {pipeline_mode = #tpu.pipeline_mode<synchronous>, transform_indices = @transform_4, window_bounds = array<i64: 1, 32>}, {pipeline_mode = #tpu.pipeline_mode<synchronous>, transform_indices = @transform_5, window_bounds = array<i64: 1, 32>}, {pipeline_mode = #tpu.pipeline_mode<synchronous>, transform_indices = @transform_6, window_bounds = array<i64: 1, 32>}, {pipeline_mode = #tpu.pipeline_mode<synchronous>, transform_indices = @transform_7, window_bounds = array<i64: 1, 32>}, {transform_indices = @transform_8, window_bounds = array<i64: 1, 8, 32>}]} {
    %c1_i32 = arith.constant 1 : i32
    %0 = arith.muli %arg0, %c1_i32 : i32
    %c0 = arith.constant 0 : index
    %c0_0 = arith.constant 0 : index
    %c0_1 = arith.constant 0 : index
    %1 = vector.load %arg2[%c0, %c0_0, %c0_1] : memref<1x8x32xf32, #tpu.memory_space<vmem>>, vector<1x8x32xf32>
    %cst = arith.constant dense<0.000000e+00> : vector<1x8xf32>
    %2 = vector.multi_reduction <add>, %1, %cst [2] : vector<1x8x32xf32> to vector<1x8xf32>
    %3 = vector.shape_cast %2 : vector<1x8xf32> to vector<1x8x1xf32>
    %cst_2 = arith.constant 3.200000e+01 : f32
    %4 = vector.broadcast %cst_2 : f32 to vector<1x8x1xf32>
    %5 = arith.divf %3, %4 : vector<1x8x1xf32>
    %6 = vector.broadcast %5 : vector<1x8x1xf32> to vector<1x8x32xf32>
    %7 = arith.subf %1, %6 : vector<1x8x32xf32>
    %8 = arith.mulf %7, %7 : vector<1x8x32xf32>
    %cst_3 = arith.constant dense<0.000000e+00> : vector<1x8xf32>
    %9 = vector.multi_reduction <add>, %8, %cst_3 [2] : vector<1x8x32xf32> to vector<1x8xf32>
    %10 = vector.shape_cast %9 : vector<1x8xf32> to vector<1x8x1xf32>
    %cst_4 = arith.constant 3.200000e+01 : f32
    %11 = vector.broadcast %cst_4 : f32 to vector<1x8x1xf32>
    %12 = arith.divf %10, %11 : vector<1x8x1xf32>
    %13 = vector.broadcast %5 : vector<1x8x1xf32> to vector<1x8x32xf32>
    %14 = arith.subf %1, %13 : vector<1x8x32xf32>
    %cst_5 = arith.constant 9.99999974E-6 : f32
    %15 = vector.broadcast %cst_5 : f32 to vector<1x8x1xf32>
    %16 = arith.addf %12, %15 : vector<1x8x1xf32>
    %17 = math.rsqrt %16 : vector<1x8x1xf32>
    %18 = vector.broadcast %17 : vector<1x8x1xf32> to vector<1x8x32xf32>
    %19 = arith.mulf %14, %18 : vector<1x8x32xf32>
    %c0_6 = arith.constant 0 : index
    %c0_7 = arith.constant 0 : index
    %20 = vector.load %arg6[%c0_6, %c0_7] : memref<1x32xf32, #tpu.memory_space<vmem>>, vector<1x32xf32>
    %21 = vector.shape_cast %20 : vector<1x32xf32> to vector<1x1x32xf32>
    %22 = vector.broadcast %21 : vector<1x1x32xf32> to vector<1x8x32xf32>
    %23 = arith.mulf %19, %22 : vector<1x8x32xf32>
    %c0_8 = arith.constant 0 : index
    %c0_9 = arith.constant 0 : index
    %24 = vector.load %arg7[%c0_8, %c0_9] : memref<1x32xf32, #tpu.memory_space<vmem>>, vector<1x32xf32>
    %25 = vector.shape_cast %24 : vector<1x32xf32> to vector<1x1x32xf32>
    %26 = vector.broadcast %25 : vector<1x1x32xf32> to vector<1x8x32xf32>
    %27 = arith.addf %23, %26 : vector<1x8x32xf32>
    %c0_10 = arith.constant 0 : index
    %c0_11 = arith.constant 0 : index
    %28 = vector.load %arg3[%c0_10, %c0_11] : memref<32x96xf32, #tpu.memory_space<vmem>>, vector<32x96xf32>
    "tpu.trace_start"() <{level = 10 : i32, message = "btd,de->bte"}> : () -> ()
    %cst_12 = arith.constant dense<0.000000e+00> : vector<1x8x96xf32>
    %29 = tpu.matmul %27, %28, %cst_12 {dimension_numbers = #tpu.dot_dimension_numbers<[2], [0], [0, 1], [1], [0, 0, 0, 1, 1, 1], [], []>} : vector<1x8x32xf32>, vector<32x96xf32>, vector<1x8x96xf32> -> vector<1x8x96xf32>
    "tpu.trace_stop"() : () -> ()
    %30 = tpu.iota {dimensions = array<i32: 0>} : vector<8x1xi32>
    %31 = tpu.iota {dimensions = array<i32: 1>} : vector<1x8xi32>
    %c0_i32 = arith.constant 0 : i32
    %32 = arith.addi %0, %c0_i32 : i32
    %33 = arith.index_cast %32 : i32 to index
    %34 = memref.load %arg1[%33] : memref<2xi32, #tpu.memory_space<smem>>
    %35 = vector.broadcast %34 : i32 to vector<1xi32>
    %36 = vector.shape_cast %35 : vector<1xi32> to vector<1x1x1xi32>
    %37 = vector.shape_cast %30 : vector<8x1xi32> to vector<1x8x1xi32>
    %38 = vector.broadcast %36 : vector<1x1x1xi32> to vector<1x8x1xi32>
    %39 = arith.cmpi slt, %37, %38 : vector<1x8x1xi32>
    %40 = vector.shape_cast %31 : vector<1x8xi32> to vector<1x1x8xi32>
    %41 = vector.broadcast %36 : vector<1x1x1xi32> to vector<1x1x8xi32>
    %42 = arith.cmpi slt, %40, %41 : vector<1x1x8xi32>
    %43 = vector.broadcast %39 : vector<1x8x1xi1> to vector<1x8x8xi1>
    %44 = vector.broadcast %42 : vector<1x1x8xi1> to vector<1x8x8xi1>
    %45 = arith.andi %43, %44 : vector<1x8x8xi1>
    %46 = vector.broadcast %31 : vector<1x8xi32> to vector<8x8xi32>
    %47 = vector.broadcast %30 : vector<8x1xi32> to vector<8x8xi32>
    %48 = arith.cmpi sle, %46, %47 : vector<8x8xi32>
    %49 = vector.shape_cast %48 : vector<8x8xi1> to vector<1x8x8xi1>
    %50 = arith.andi %45, %49 : vector<1x8x8xi1>
    %51 = vector.extract_strided_slice %29 {offsets = [0, 0, 0], sizes = [1, 8, 8], strides = [1, 1, 1]} : vector<1x8x96xf32> to vector<1x8x8xf32>
    %52 = vector.extract_strided_slice %29 {offsets = [0, 0, 32], sizes = [1, 8, 8], strides = [1, 1, 1]} : vector<1x8x96xf32> to vector<1x8x8xf32>
    %53 = vector.extract_strided_slice %29 {offsets = [0, 0, 64], sizes = [1, 8, 8], strides = [1, 1, 1]} : vector<1x8x96xf32> to vector<1x8x8xf32>
    "tpu.trace_start"() <{level = 10 : i32, message = "bqc,bkc->bqk"}> : () -> ()
    %cst_13 = arith.constant dense<0.000000e+00> : vector<1x8x8xf32>
    %54 = tpu.matmul %51, %52, %cst_13 {dimension_numbers = #tpu.dot_dimension_numbers<[2], [2], [1], [1], [0, 0, 0, 1, 1, 1], [0], [0]>} : vector<1x8x8xf32>, vector<1x8x8xf32>, vector<1x8x8xf32> -> vector<1x8x8xf32>
    %cst_14 = arith.constant -1.000000e+30 : f32
    "tpu.trace_stop"() : () -> ()
    %55 = vector.broadcast %cst_14 : f32 to vector<1x8x8xf32>
    %56 = arith.select %50, %54, %55 : vector<1x8x8xi1>, vector<1x8x8xf32>
    %cst_15 = arith.constant dense<0xFF800000> : vector<1x8xf32>
    %57 = vector.multi_reduction <maximumf>, %56, %cst_15 [2] : vector<1x8x8xf32> to vector<1x8xf32>
    %58 = vector.shape_cast %57 : vector<1x8xf32> to vector<1x8x1xf32>
    %59 = vector.broadcast %58 : vector<1x8x1xf32> to vector<1x8x8xf32>
    %60 = arith.subf %56, %59 : vector<1x8x8xf32>
    %61 = math.exp %60 : vector<1x8x8xf32>
    %cst_16 = arith.constant dense<0.000000e+00> : vector<1x8xf32>
    %62 = vector.multi_reduction <add>, %61, %cst_16 [2] : vector<1x8x8xf32> to vector<1x8xf32>
    %63 = vector.shape_cast %62 : vector<1x8xf32> to vector<1x8x1xf32>
    %64 = tpu.reciprocal %63 {approx = true} : vector<1x8x1xf32> -> vector<1x8x1xf32>
    %65 = vector.broadcast %64 : vector<1x8x1xf32> to vector<1x8x8xf32>
    %66 = arith.mulf %61, %65 : vector<1x8x8xf32>
    "tpu.trace_start"() <{level = 10 : i32, message = "bqk,bkc->bqc"}> : () -> ()
    %cst_17 = arith.constant dense<0.000000e+00> : vector<1x8x8xf32>
    %67 = tpu.matmul %66, %53, %cst_17 {dimension_numbers = #tpu.dot_dimension_numbers<[2], [1], [1], [2], [0, 0, 0, 1, 1, 2], [0], [0]>} : vector<1x8x8xf32>, vector<1x8x8xf32>, vector<1x8x8xf32> -> vector<1x8x8xf32>
    "tpu.trace_stop"() : () -> ()
    %68 = vector.extract_strided_slice %29 {offsets = [0, 0, 8], sizes = [1, 8, 8], strides = [1, 1, 1]} : vector<1x8x96xf32> to vector<1x8x8xf32>
    %69 = vector.extract_strided_slice %29 {offsets = [0, 0, 40], sizes = [1, 8, 8], strides = [1, 1, 1]} : vector<1x8x96xf32> to vector<1x8x8xf32>
    %70 = vector.extract_strided_slice %29 {offsets = [0, 0, 72], sizes = [1, 8, 8], strides = [1, 1, 1]} : vector<1x8x96xf32> to vector<1x8x8xf32>
    "tpu.trace_start"() <{level = 10 : i32, message = "bqc,bkc->bqk"}> : () -> ()
    %cst_18 = arith.constant dense<0.000000e+00> : vector<1x8x8xf32>
    %71 = tpu.matmul %68, %69, %cst_18 {dimension_numbers = #tpu.dot_dimension_numbers<[2], [2], [1], [1], [0, 0, 0, 1, 1, 1], [0], [0]>} : vector<1x8x8xf32>, vector<1x8x8xf32>, vector<1x8x8xf32> -> vector<1x8x8xf32>
    %cst_19 = arith.constant -1.000000e+30 : f32
    "tpu.trace_stop"() : () -> ()
    %72 = vector.broadcast %cst_19 : f32 to vector<1x8x8xf32>
    %73 = arith.select %50, %71, %72 : vector<1x8x8xi1>, vector<1x8x8xf32>
    %cst_20 = arith.constant dense<0xFF800000> : vector<1x8xf32>
    %74 = vector.multi_reduction <maximumf>, %73, %cst_20 [2] : vector<1x8x8xf32> to vector<1x8xf32>
    %75 = vector.shape_cast %74 : vector<1x8xf32> to vector<1x8x1xf32>
    %76 = vector.broadcast %75 : vector<1x8x1xf32> to vector<1x8x8xf32>
    %77 = arith.subf %73, %76 : vector<1x8x8xf32>
    %78 = math.exp %77 : vector<1x8x8xf32>
    %cst_21 = arith.constant dense<0.000000e+00> : vector<1x8xf32>
    %79 = vector.multi_reduction <add>, %78, %cst_21 [2] : vector<1x8x8xf32> to vector<1x8xf32>
    %80 = vector.shape_cast %79 : vector<1x8xf32> to vector<1x8x1xf32>
    %81 = tpu.reciprocal %80 {approx = true} : vector<1x8x1xf32> -> vector<1x8x1xf32>
    %82 = vector.broadcast %81 : vector<1x8x1xf32> to vector<1x8x8xf32>
    %83 = arith.mulf %78, %82 : vector<1x8x8xf32>
    "tpu.trace_start"() <{level = 10 : i32, message = "bqk,bkc->bqc"}> : () -> ()
    %cst_22 = arith.constant dense<0.000000e+00> : vector<1x8x8xf32>
    %84 = tpu.matmul %83, %70, %cst_22 {dimension_numbers = #tpu.dot_dimension_numbers<[2], [1], [1], [2], [0, 0, 0, 1, 1, 2], [0], [0]>} : vector<1x8x8xf32>, vector<1x8x8xf32>, vector<1x8x8xf32> -> vector<1x8x8xf32>
    "tpu.trace_stop"() : () -> ()
    %85 = vector.extract_strided_slice %29 {offsets = [0, 0, 16], sizes = [1, 8, 8], strides = [1, 1, 1]} : vector<1x8x96xf32> to vector<1x8x8xf32>
    %86 = vector.extract_strided_slice %29 {offsets = [0, 0, 48], sizes = [1, 8, 8], strides = [1, 1, 1]} : vector<1x8x96xf32> to vector<1x8x8xf32>
    %87 = vector.extract_strided_slice %29 {offsets = [0, 0, 80], sizes = [1, 8, 8], strides = [1, 1, 1]} : vector<1x8x96xf32> to vector<1x8x8xf32>
    "tpu.trace_start"() <{level = 10 : i32, message = "bqc,bkc->bqk"}> : () -> ()
    %cst_23 = arith.constant dense<0.000000e+00> : vector<1x8x8xf32>
    %88 = tpu.matmul %85, %86, %cst_23 {dimension_numbers = #tpu.dot_dimension_numbers<[2], [2], [1], [1], [0, 0, 0, 1, 1, 1], [0], [0]>} : vector<1x8x8xf32>, vector<1x8x8xf32>, vector<1x8x8xf32> -> vector<1x8x8xf32>
    %cst_24 = arith.constant -1.000000e+30 : f32
    "tpu.trace_stop"() : () -> ()
    %89 = vector.broadcast %cst_24 : f32 to vector<1x8x8xf32>
    %90 = arith.select %50, %88, %89 : vector<1x8x8xi1>, vector<1x8x8xf32>
    %cst_25 = arith.constant dense<0xFF800000> : vector<1x8xf32>
    %91 = vector.multi_reduction <maximumf>, %90, %cst_25 [2] : vector<1x8x8xf32> to vector<1x8xf32>
    %92 = vector.shape_cast %91 : vector<1x8xf32> to vector<1x8x1xf32>
    %93 = vector.broadcast %92 : vector<1x8x1xf32> to vector<1x8x8xf32>
    %94 = arith.subf %90, %93 : vector<1x8x8xf32>
    %95 = math.exp %94 : vector<1x8x8xf32>
    %cst_26 = arith.constant dense<0.000000e+00> : vector<1x8xf32>
    %96 = vector.multi_reduction <add>, %95, %cst_26 [2] : vector<1x8x8xf32> to vector<1x8xf32>
    %97 = vector.shape_cast %96 : vector<1x8xf32> to vector<1x8x1xf32>
    %98 = tpu.reciprocal %97 {approx = true} : vector<1x8x1xf32> -> vector<1x8x1xf32>
    %99 = vector.broadcast %98 : vector<1x8x1xf32> to vector<1x8x8xf32>
    %100 = arith.mulf %95, %99 : vector<1x8x8xf32>
    "tpu.trace_start"() <{level = 10 : i32, message = "bqk,bkc->bqc"}> : () -> ()
    %cst_27 = arith.constant dense<0.000000e+00> : vector<1x8x8xf32>
    %101 = tpu.matmul %100, %87, %cst_27 {dimension_numbers = #tpu.dot_dimension_numbers<[2], [1], [1], [2], [0, 0, 0, 1, 1, 2], [0], [0]>} : vector<1x8x8xf32>, vector<1x8x8xf32>, vector<1x8x8xf32> -> vector<1x8x8xf32>
    "tpu.trace_stop"() : () -> ()
    %102 = vector.extract_strided_slice %29 {offsets = [0, 0, 24], sizes = [1, 8, 8], strides = [1, 1, 1]} : vector<1x8x96xf32> to vector<1x8x8xf32>
    %103 = vector.extract_strided_slice %29 {offsets = [0, 0, 56], sizes = [1, 8, 8], strides = [1, 1, 1]} : vector<1x8x96xf32> to vector<1x8x8xf32>
    %104 = vector.extract_strided_slice %29 {offsets = [0, 0, 88], sizes = [1, 8, 8], strides = [1, 1, 1]} : vector<1x8x96xf32> to vector<1x8x8xf32>
    "tpu.trace_start"() <{level = 10 : i32, message = "bqc,bkc->bqk"}> : () -> ()
    %cst_28 = arith.constant dense<0.000000e+00> : vector<1x8x8xf32>
    %105 = tpu.matmul %102, %103, %cst_28 {dimension_numbers = #tpu.dot_dimension_numbers<[2], [2], [1], [1], [0, 0, 0, 1, 1, 1], [0], [0]>} : vector<1x8x8xf32>, vector<1x8x8xf32>, vector<1x8x8xf32> -> vector<1x8x8xf32>
    %cst_29 = arith.constant -1.000000e+30 : f32
    "tpu.trace_stop"() : () -> ()
    %106 = vector.broadcast %cst_29 : f32 to vector<1x8x8xf32>
    %107 = arith.select %50, %105, %106 : vector<1x8x8xi1>, vector<1x8x8xf32>
    %cst_30 = arith.constant dense<0xFF800000> : vector<1x8xf32>
    %108 = vector.multi_reduction <maximumf>, %107, %cst_30 [2] : vector<1x8x8xf32> to vector<1x8xf32>
    %109 = vector.shape_cast %108 : vector<1x8xf32> to vector<1x8x1xf32>
    %110 = vector.broadcast %109 : vector<1x8x1xf32> to vector<1x8x8xf32>
    %111 = arith.subf %107, %110 : vector<1x8x8xf32>
    %112 = math.exp %111 : vector<1x8x8xf32>
    %cst_31 = arith.constant dense<0.000000e+00> : vector<1x8xf32>
    %113 = vector.multi_reduction <add>, %112, %cst_31 [2] : vector<1x8x8xf32> to vector<1x8xf32>
    %114 = vector.shape_cast %113 : vector<1x8xf32> to vector<1x8x1xf32>
    %115 = tpu.reciprocal %114 {approx = true} : vector<1x8x1xf32> -> vector<1x8x1xf32>
    %116 = vector.broadcast %115 : vector<1x8x1xf32> to vector<1x8x8xf32>
    %117 = arith.mulf %112, %116 : vector<1x8x8xf32>
    "tpu.trace_start"() <{level = 10 : i32, message = "bqk,bkc->bqc"}> : () -> ()
    %cst_32 = arith.constant dense<0.000000e+00> : vector<1x8x8xf32>
    %118 = tpu.matmul %117, %104, %cst_32 {dimension_numbers = #tpu.dot_dimension_numbers<[2], [1], [1], [2], [0, 0, 0, 1, 1, 2], [0], [0]>} : vector<1x8x8xf32>, vector<1x8x8xf32>, vector<1x8x8xf32> -> vector<1x8x8xf32>
    "tpu.trace_stop"() : () -> ()
    %119 = tpu.concatenate %67, %84, %101, %118 in 2 : vector<1x8x8xf32>, vector<1x8x8xf32>, vector<1x8x8xf32>, vector<1x8x8xf32> -> vector<1x8x32xf32>
    %c0_33 = arith.constant 0 : index
    %c0_34 = arith.constant 0 : index
    %120 = vector.load %arg4[%c0_33, %c0_34] : memref<32x32xf32, #tpu.memory_space<vmem>>, vector<32x32xf32>
    "tpu.trace_start"() <{level = 10 : i32, message = "bte,ed->btd"}> : () -> ()
    %cst_35 = arith.constant dense<0.000000e+00> : vector<1x8x32xf32>
    %121 = tpu.matmul %119, %120, %cst_35 {dimension_numbers = #tpu.dot_dimension_numbers<[2], [0], [0, 1], [1], [0, 0, 0, 1, 1, 1], [], []>} : vector<1x8x32xf32>, vector<32x32xf32>, vector<1x8x32xf32> -> vector<1x8x32xf32>
    %cst_36 = arith.constant 0.000000e+00 : f32
    "tpu.trace_stop"() : () -> ()
    %122 = vector.shape_cast %39 : vector<1x8x1xi1> to vector<1x8x1xi1>
    %123 = vector.broadcast %122 : vector<1x8x1xi1> to vector<1x8x32xi1>
    %124 = vector.broadcast %cst_36 : f32 to vector<1x8x32xf32>
    %125 = arith.select %123, %121, %124 : vector<1x8x32xi1>, vector<1x8x32xf32>
    %126 = arith.addf %1, %125 : vector<1x8x32xf32>
    %c0_37 = arith.constant 0 : index
    %c0_38 = arith.constant 0 : index
    %127 = vector.load %arg5[%c0_37, %c0_38] : memref<1x32xf32, #tpu.memory_space<vmem>>, vector<1x32xf32>
    %128 = vector.shape_cast %127 : vector<1x32xf32> to vector<1x1x32xf32>
    %129 = vector.broadcast %128 : vector<1x1x32xf32> to vector<1x8x32xf32>
    %130 = arith.addf %126, %129 : vector<1x8x32xf32>
    %cst_39 = arith.constant dense<0.000000e+00> : vector<1x8xf32>
    %131 = vector.multi_reduction <add>, %130, %cst_39 [2] : vector<1x8x32xf32> to vector<1x8xf32>
    %132 = vector.shape_cast %131 : vector<1x8xf32> to vector<1x8x1xf32>
    %cst_40 = arith.constant 3.200000e+01 : f32
    %133 = vector.broadcast %cst_40 : f32 to vector<1x8x1xf32>
    %134 = arith.divf %132, %133 : vector<1x8x1xf32>
    %135 = vector.broadcast %134 : vector<1x8x1xf32> to vector<1x8x32xf32>
    %136 = arith.subf %130, %135 : vector<1x8x32xf32>
    %137 = arith.mulf %136, %136 : vector<1x8x32xf32>
    %cst_41 = arith.constant dense<0.000000e+00> : vector<1x8xf32>
    %138 = vector.multi_reduction <add>, %137, %cst_41 [2] : vector<1x8x32xf32> to vector<1x8xf32>
    %139 = vector.shape_cast %138 : vector<1x8xf32> to vector<1x8x1xf32>
    %cst_42 = arith.constant 3.200000e+01 : f32
    %140 = vector.broadcast %cst_42 : f32 to vector<1x8x1xf32>
    %141 = arith.divf %139, %140 : vector<1x8x1xf32>
    %142 = vector.broadcast %134 : vector<1x8x1xf32> to vector<1x8x32xf32>
    %143 = arith.subf %130, %142 : vector<1x8x32xf32>
    %cst_43 = arith.constant 9.99999974E-6 : f32
    %144 = vector.broadcast %cst_43 : f32 to vector<1x8x1xf32>
    %145 = arith.addf %141, %144 : vector<1x8x1xf32>
    %146 = math.rsqrt %145 : vector<1x8x1xf32>
    %147 = vector.broadcast %146 : vector<1x8x1xf32> to vector<1x8x32xf32>
    %148 = arith.mulf %143, %147 : vector<1x8x32xf32>
    %c0_44 = arith.constant 0 : index
    %c0_45 = arith.constant 0 : index
    %149 = vector.load %arg8[%c0_44, %c0_45] : memref<1x32xf32, #tpu.memory_space<vmem>>, vector<1x32xf32>
    %150 = vector.shape_cast %149 : vector<1x32xf32> to vector<1x1x32xf32>
    %151 = vector.broadcast %150 : vector<1x1x32xf32> to vector<1x8x32xf32>
    %152 = arith.mulf %148, %151 : vector<1x8x32xf32>
    %c0_46 = arith.constant 0 : index
    %c0_47 = arith.constant 0 : index
    %153 = vector.load %arg9[%c0_46, %c0_47] : memref<1x32xf32, #tpu.memory_space<vmem>>, vector<1x32xf32>
    %154 = vector.shape_cast %153 : vector<1x32xf32> to vector<1x1x32xf32>
    %155 = vector.broadcast %154 : vector<1x1x32xf32> to vector<1x8x32xf32>
    %156 = arith.addf %152, %155 : vector<1x8x32xf32>
    %cst_48 = arith.constant 0.000000e+00 : f32
    %157 = vector.broadcast %cst_48 : f32 to vector<1x8x32xf32>
    %158 = arith.maximumf %156, %157 : vector<1x8x32xf32>
    %159 = arith.addf %130, %158 : vector<1x8x32xf32>
    %c0_49 = arith.constant 0 : index
    %c0_50 = arith.constant 0 : index
    %c0_51 = arith.constant 0 : index
    %160 = vector.load %arg10[%c0_49, %c0_50, %c0_51] : memref<1x8x32xf32, #tpu.memory_space<vmem>>, vector<1x8x32xf32>
    tpu.vector_store %arg10[%c0_49, %c0_50, %c0_51], %159 {strides = array<i32>} : memref<1x8x32xf32, #tpu.memory_space<vmem>>, vector<1x8x32xf32>,
    return
  }
  func.func @transform_0(%arg0: i32, %arg1: memref<2xi32, #tpu.memory_space<smem>>) -> (i32, i32, i32) {
    %c0_i32 = arith.constant 0 : i32
    %c0_i32_0 = arith.constant 0 : i32
    %c0_i32_1 = arith.constant 0 : i32
    return %arg0, %c0_i32, %c0_i32_0 : i32, i32, i32
  }
  func.func @transform_1(%arg0: i32, %arg1: memref<2xi32, #tpu.memory_space<smem>>) -> (i32, i32) {
    %c0_i32 = arith.constant 0 : i32
    %c0_i32_0 = arith.constant 0 : i32
    %c0_i32_1 = arith.constant 0 : i32
    return %c0_i32, %c0_i32_0 : i32, i32
  }
  func.func @transform_2(%arg0: i32, %arg1: memref<2xi32, #tpu.memory_space<smem>>) -> (i32, i32) {
    %c0_i32 = arith.constant 0 : i32
    %c0_i32_0 = arith.constant 0 : i32
    %c0_i32_1 = arith.constant 0 : i32
    return %c0_i32, %c0_i32_0 : i32, i32
  }
  func.func @transform_3(%arg0: i32, %arg1: memref<2xi32, #tpu.memory_space<smem>>) -> (i32, i32) {
    %c0_i32 = arith.constant 0 : i32
    %c0_i32_0 = arith.constant 0 : i32
    %c0_i32_1 = arith.constant 0 : i32
    return %c0_i32, %c0_i32_0 : i32, i32
  }
  func.func @transform_4(%arg0: i32, %arg1: memref<2xi32, #tpu.memory_space<smem>>) -> (i32, i32) {
    %c0_i32 = arith.constant 0 : i32
    %c0_i32_0 = arith.constant 0 : i32
    %c0_i32_1 = arith.constant 0 : i32
    return %c0_i32, %c0_i32_0 : i32, i32
  }
  func.func @transform_5(%arg0: i32, %arg1: memref<2xi32, #tpu.memory_space<smem>>) -> (i32, i32) {
    %c0_i32 = arith.constant 0 : i32
    %c0_i32_0 = arith.constant 0 : i32
    %c0_i32_1 = arith.constant 0 : i32
    return %c0_i32, %c0_i32_0 : i32, i32
  }
  func.func @transform_6(%arg0: i32, %arg1: memref<2xi32, #tpu.memory_space<smem>>) -> (i32, i32) {
    %c0_i32 = arith.constant 0 : i32
    %c0_i32_0 = arith.constant 0 : i32
    %c0_i32_1 = arith.constant 0 : i32
    return %c0_i32, %c0_i32_0 : i32, i32
  }
  func.func @transform_7(%arg0: i32, %arg1: memref<2xi32, #tpu.memory_space<smem>>) -> (i32, i32) {
    %c0_i32 = arith.constant 0 : i32
    %c0_i32_0 = arith.constant 0 : i32
    %c0_i32_1 = arith.constant 0 : i32
    return %c0_i32, %c0_i32_0 : i32, i32
  }
  func.func @transform_8(%arg0: i32, %arg1: memref<2xi32, #tpu.memory_space<smem>>) -> (i32, i32, i32) {
    %c0_i32 = arith.constant 0 : i32
    %c0_i32_0 = arith.constant 0 : i32
    %c0_i32_1 = arith.constant 0 : i32
    return %arg0, %c0_i32, %c0_i32_0 : i32, i32, i32
  }
}

</mosaic_0001>

<llo_original>
// kernel: tpu_custom_call.1
$region0: #{tpu_custom_call.1}
  #allocation0 [shape = 'u32[]', space=smem, size = 0x4, offset = 0x4, fixed_abs, tag = 'smem constant byte address 0x4 - core index']
  #allocation1 [shape = 'u32[144,128]{1,0:T(1,128)}', space=vmem, size = 0x12000, scoped, tag = 'internal scratch']
  #allocation2 [shape = 's32[1]{0}', space=sflag, size = 0x4, scoped, tag = 'scoped memory for tpu_custom_call.1']
  #allocation3 [shape = 'u8[512]{0}', space=smem, size = 0x200, scoped, tag = 'prefetched SMEM operand 0']
  %s0 = inlined_call_operand.hbm [shape: s32[2], index: 0, kind: input, shape index: {}]
  %s1 = inlined_call_operand.hbm [shape: f32[2,8,32], index: 1, kind: input, shape index: {}]
  %s2 = inlined_call_operand.hbm [shape: f32[32,96], index: 2, kind: input, shape index: {}]
  %s3 = inlined_call_operand.hbm [shape: f32[32,32], index: 3, kind: input, shape index: {}]
  %s4 = inlined_call_operand.vmem [shape: f32[1,32], index: 4, kind: input, shape index: {}]
  %s5 = inlined_call_operand.vmem [shape: f32[1,32], index: 5, kind: input, shape index: {}]
  %s6 = inlined_call_operand.vmem [shape: f32[1,32], index: 6, kind: input, shape index: {}]
  %s7 = inlined_call_operand.vmem [shape: f32[1,32], index: 7, kind: input, shape index: {}]
  %s8 = inlined_call_operand.vmem [shape: f32[1,32], index: 8, kind: input, shape index: {}]
  %s9 = inlined_call_operand.hbm [shape: f32[2,8,32], index: 9, kind: output, shape index: {}]
  %s10 = sld [smem:[#allocation0]]
  $region77: #{tpu_custom_call.1} parent=0
    _
  %s12 = ssub.s32 1, %s10
  %s13 = scalar_select 0, %s12, %s10
  %15 = dma.hbm_to_smem %s0, 16, [#allocation3], [#allocation2]
  %16 = dma.done [#allocation2], 16
  %17 = sfence
  $region1: #{tpu_custom_call.1} parent=0
    #allocation4 [shape = 'u8[8192]{0}', space=vmem, size = 0x2000, scoped, tag = 'input window, operand 1']
    #allocation5 [shape = 's32[2]{0}', space=sflag, size = 0x8, scoped, tag = 'scoped memory for tpu_custom_call.1']
    #allocation6 [shape = 's32[2]{0}', space=sflag, size = 0x8, scoped, tag = 'scoped memory for tpu_custom_call.1']
    #allocation7 [shape = 'u8[16384]{0}', space=vmem, size = 0x4000, scoped, tag = 'input window, operand 2, single buffered']
    #allocation8 [shape = 's32[1]{0}', space=sflag, size = 0x4, scoped, tag = 'scoped memory for tpu_custom_call.1']
    #allocation9 [shape = 'u8[16384]{0}', space=vmem, size = 0x4000, scoped, tag = 'input window, operand 3, single buffered']
    #allocation10 [shape = 'u8[8192]{0}', space=vmem, size = 0x2000, scoped, tag = 'output window, operand 0']
    %18 = vsyncpa [#allocation5], 0
    %s19 = scalar_lea.sflag [#allocation5], 1
    %20 = vsyncpa %s19, 0
    %21 = vsyncpa [#allocation8], 0
    %22 = vsyncpa [#allocation6], 0
    %s23 = scalar_lea.sflag [#allocation6], 1
    %24 = vsyncpa %s23, 0
    loop: start=0, step=1, limit=4
    $region2: #{tpu_custom_call.1} parent=1 // loop_pre_header
      _
    $region3: #{tpu_custom_call.1} parent=1 // loop_header
      %s26 = sphi 0, %s30
      %p27 = scmp.ge.s32.totalorder %s26, 4
      %s36 = sphi 0, %s38
      %s39 = sphi 0, %s36
      %s40 = sphi 0, %s39
      %s56 = sphi 0, %s40
      %s60 = sphi 0, %s60
      %s62 = sphi 0, %s60
      %s63 = sphi 0, %s62
      %s77 = sphi 0, %s63
      %s81 = sphi 0, %s81
      %s83 = sphi 0, %s81
      %s84 = sphi 0, %s83
      %s98 = sphi 0, %s84
      %s102 = sphi 0, %s102
      %s104 = sphi 0, %s102
      %s105 = sphi 0, %s104
      %s119 = sphi 0, %s105
      %s123 = sphi 0, %s123
      %s125 = sphi 0, %s123
      %s126 = sphi 0, %s125
      %s140 = sphi 0, %s126
      %s144 = sphi 0, %s144
      %s146 = sphi 0, %s144
      %s147 = sphi 0, %s146
      %s161 = sphi 0, %s147
      %s165 = sphi 0, %s165
      %s167 = sphi 0, %s165
      %s168 = sphi 0, %s167
      %s182 = sphi 0, %s168
      %s186 = sphi 0, %s186
      %s188 = sphi 0, %s186
      %s189 = sphi 0, %s188
      %s203 = sphi 0, %s189
      %s209 = sphi 0, %s211
      %s212 = sphi 0, %s209
      %s213 = sphi 0, %s212
      %s229 = sphi 0, %s213
    $region4: #{tpu_custom_call.1} parent=1 // loop_header_branch
      %29 = sbr.rel (%p27) target = $region8
    $region5: #{tpu_custom_call.1} parent=1 // loop_body
      %s31 = ssub.s32 %s26, 1
      %s32 = ssub.s32 %s26, 2
      %s33 = sadd.s32 %s26, 1
      %s34 = ssub.s32 %s26, %s33
      %p35 = scmp.eq.s32.totalorder %s34, 0
      %s37 = sadd.s32 %s36, 1
      %s38 = scalar_select %p35, %s36, %s37
      %p41 = pneg %p35
      %p42 = scmp.eq.s32.totalorder %s26, 1
      %p43 = por %p41, %p42
      %p44 = scmp.ne.s32.totalorder %s36, %s39
      %p45 = scmp.eq.s32.totalorder %s26, 0
      %p46 = por %p44, %p45
      %p47 = scmp.ne.s32.totalorder %s36, %s39
      %p48 = scmp.eq.s32.totalorder %s31, 1
      %p49 = por %p47, %p48
      %p50 = scmp.ne.s32.totalorder %s39, %s40
      %p51 = scmp.eq.s32.totalorder %s31, 0
      %p52 = por %p50, %p51
      %p53 = scmp.ne.s32.totalorder %s39, %s40
      %p54 = scmp.eq.s32.totalorder %s32, 1
      %p55 = por %p53, %p54
      %p57 = scmp.ne.s32.totalorder %s40, %s56
      %p58 = scmp.eq.s32.totalorder %s32, 0
      %p59 = por %p57, %p58
      %s61 = sadd.s32 %s60, 1
      %p64 = scmp.eq.s32.totalorder %s26, 1
      %p65 = scmp.ne.s32.totalorder %s60, %s62
      %p66 = scmp.eq.s32.totalorder %s26, 0
      %p67 = por %p65, %p66
      %p68 = scmp.ne.s32.totalorder %s60, %s62
      %p69 = scmp.eq.s32.totalorder %s31, 1
      %p70 = por %p68, %p69
      %p71 = scmp.ne.s32.totalorder %s62, %s63
      %p72 = scmp.eq.s32.totalorder %s31, 0
      %p73 = por %p71, %p72
      %p74 = scmp.ne.s32.totalorder %s62, %s63
      %p75 = scmp.eq.s32.totalorder %s32, 1
      %p76 = por %p74, %p75
      %p78 = scmp.ne.s32.totalorder %s63, %s77
      %p79 = scmp.eq.s32.totalorder %s32, 0
      %p80 = por %p78, %p79
      %s82 = sadd.s32 %s81, 1
      %p85 = scmp.eq.s32.totalorder %s26, 1
      %p86 = scmp.ne.s32.totalorder %s81, %s83
      %p87 = scmp.eq.s32.totalorder %s26, 0
      %p88 = por %p86, %p87
      %p89 = scmp.ne.s32.totalorder %s81, %s83
      %p90 = scmp.eq.s32.totalorder %s31, 1
      %p91 = por %p89, %p90
      %p92 = scmp.ne.s32.totalorder %s83, %s84
      %p93 = scmp.eq.s32.totalorder %s31, 0
      %p94 = por %p92, %p93
      %p95 = scmp.ne.s32.totalorder %s83, %s84
      %p96 = scmp.eq.s32.totalorder %s32, 1
      %p97 = por %p95, %p96
      %p99 = scmp.ne.s32.totalorder %s84, %s98
      %p100 = scmp.eq.s32.totalorder %s32, 0
      %p101 = por %p99, %p100
      %s103 = sadd.s32 %s102, 1
      %p106 = scmp.eq.s32.totalorder %s26, 1
      %p107 = scmp.ne.s32.totalorder %s102, %s104
      %p108 = scmp.eq.s32.totalorder %s26, 0
      %p109 = por %p107, %p108
      %p110 = scmp.ne.s32.totalorder %s102, %s104
      %p111 = scmp.eq.s32.totalorder %s31, 1
      %p112 = por %p110, %p111
      %p113 = scmp.ne.s32.totalorder %s104, %s105
      %p114 = scmp.eq.s32.totalorder %s31, 0
      %p115 = por %p113, %p114
      %p116 = scmp.ne.s32.totalorder %s104, %s105
      %p117 = scmp.eq.s32.totalorder %s32, 1
      %p118 = por %p116, %p117
      %p120 = scmp.ne.s32.totalorder %s105, %s119
      %p121 = scmp.eq.s32.totalorder %s32, 0
      %p122 = por %p120, %p121
      %s124 = sadd.s32 %s123, 1
      %p127 = scmp.eq.s32.totalorder %s26, 1
      %p128 = scmp.ne.s32.totalorder %s123, %s125
      %p129 = scmp.eq.s32.totalorder %s26, 0
      %p130 = por %p128, %p129
      %p131 = scmp.ne.s32.totalorder %s123, %s125
      %p132 = scmp.eq.s32.totalorder %s31, 1
      %p133 = por %p131, %p132
      %p134 = scmp.ne.s32.totalorder %s125, %s126
      %p135 = scmp.eq.s32.totalorder %s31, 0
      %p136 = por %p134, %p135
      %p137 = scmp.ne.s32.totalorder %s125, %s126
      %p138 = scmp.eq.s32.totalorder %s32, 1
      %p139 = por %p137, %p138
      %p141 = scmp.ne.s32.totalorder %s126, %s140
      %p142 = scmp.eq.s32.totalorder %s32, 0
      %p143 = por %p141, %p142
      %s145 = sadd.s32 %s144, 1
      %p148 = scmp.eq.s32.totalorder %s26, 1
      %p149 = scmp.ne.s32.totalorder %s144, %s146
      %p150 = scmp.eq.s32.totalorder %s26, 0
      %p151 = por %p149, %p150
      %p152 = scmp.ne.s32.totalorder %s144, %s146
      %p153 = scmp.eq.s32.totalorder %s31, 1
      %p154 = por %p152, %p153
      %p155 = scmp.ne.s32.totalorder %s146, %s147
      %p156 = scmp.eq.s32.totalorder %s31, 0
      %p157 = por %p155, %p156
      %p158 = scmp.ne.s32.totalorder %s146, %s147
      %p159 = scmp.eq.s32.totalorder %s32, 1
      %p160 = por %p158, %p159
      %p162 = scmp.ne.s32.totalorder %s147, %s161
      %p163 = scmp.eq.s32.totalorder %s32, 0
      %p164 = por %p162, %p163
      %s166 = sadd.s32 %s165, 1
      %p169 = scmp.eq.s32.totalorder %s26, 1
      %p170 = scmp.ne.s32.totalorder %s165, %s167
      %p171 = scmp.eq.s32.totalorder %s26, 0
      %p172 = por %p170, %p171
      %p173 = scmp.ne.s32.totalorder %s165, %s167
      %p174 = scmp.eq.s32.totalorder %s31, 1
      %p175 = por %p173, %p174
      %p176 = scmp.ne.s32.totalorder %s167, %s168
      %p177 = scmp.eq.s32.totalorder %s31, 0
      %p178 = por %p176, %p177
      %p179 = scmp.ne.s32.totalorder %s167, %s168
      %p180 = scmp.eq.s32.totalorder %s32, 1
      %p181 = por %p179, %p180
      %p183 = scmp.ne.s32.totalorder %s168, %s182
      %p184 = scmp.eq.s32.totalorder %s32, 0
      %p185 = por %p183, %p184
      %s187 = sadd.s32 %s186, 1
      %p190 = scmp.eq.s32.totalorder %s26, 1
      %p191 = scmp.ne.s32.totalorder %s186, %s188
      %p192 = scmp.eq.s32.totalorder %s26, 0
      %p193 = por %p191, %p192
      %p194 = scmp.ne.s32.totalorder %s186, %s188
      %p195 = scmp.eq.s32.totalorder %s31, 1
      %p196 = por %p194, %p195
      %p197 = scmp.ne.s32.totalorder %s188, %s189
      %p198 = scmp.eq.s32.totalorder %s31, 0
      %p199 = por %p197, %p198
      %p200 = scmp.ne.s32.totalorder %s188, %s189
      %p201 = scmp.eq.s32.totalorder %s32, 1
      %p202 = por %p200, %p201
      %p204 = scmp.ne.s32.totalorder %s189, %s203
      %p205 = scmp.eq.s32.totalorder %s32, 0
      %p206 = por %p204, %p205
      %s207 = ssub.s32 %s26, %s33
      %p208 = scmp.eq.s32.totalorder %s207, 0
      %s210 = sadd.s32 %s209, 1
      %s211 = scalar_select %p208, %s209, %s210
      %p214 = pneg %p208
      %p215 = scmp.eq.s32.totalorder %s26, 1
      %p216 = por %p214, %p215
      %p217 = scmp.ne.s32.totalorder %s209, %s212
      %p218 = scmp.eq.s32.totalorder %s26, 0
      %p219 = por %p217, %p218
      %p220 = scmp.ne.s32.totalorder %s209, %s212
      %p221 = scmp.eq.s32.totalorder %s31, 1
      %p222 = por %p220, %p221
      %p223 = scmp.ne.s32.totalorder %s212, %s213
      %p224 = scmp.eq.s32.totalorder %s31, 0
      %p225 = por %p223, %p224
      %p226 = scmp.ne.s32.totalorder %s212, %s213
      %p227 = scmp.eq.s32.totalorder %s32, 1
      %p228 = por %p226, %p227
      %p230 = scmp.ne.s32.totalorder %s213, %s229
      %p231 = scmp.eq.s32.totalorder %s32, 0
      %p232 = por %p230, %p231
      %p233 = scmp.le.s32.totalorder 1, %s26
      %p234 = scmp.lt.s32.totalorder %s26, 3
      %p235 = pnand %p233, %p234
      %p236 = pneg %p235
      // Predicated region
      $region9: #{tpu_custom_call.1} parent=5 // pred_check
        _
      $region10: #{tpu_custom_call.1} parent=5 // pred_check_branch
        %238 = sbr.rel (%p235) target = $region12
      $region11: #{tpu_custom_call.1} parent=5 // pred_region
        %s239 = ssub.s32 %s26, 1
        // Predicated region
        $region13: #{tpu_custom_call.1} parent=11 // pred_check
          %p240 = pneg %p73
        $region14: #{tpu_custom_call.1} parent=11 // pred_check_branch
          %242 = sbr.rel (%p240) target = $region16
        $region15: #{tpu_custom_call.1} parent=11 // pred_region
          %s244 = ssub.s32 512, 512
          %245 = vsyncadd [#allocation8], %s244
          %s246 = sshll.u32 [#allocation7], 4
          %s247 = int_to_ptr.vmem [resolvable:$true] %s246
          %252 = dma.hbm_to_vmem [thread:$0]  %s2, 512, %s247, [#allocation8], 128, 128, 8
        $region16: #{tpu_custom_call.1} parent=11 // pred_fallthru
          _
        // Predicated region
        $region17: #{tpu_custom_call.1} parent=11 // pred_check
          %p253 = pneg %p94
        $region18: #{tpu_custom_call.1} parent=11 // pred_check_branch
          %255 = sbr.rel (%p253) target = $region20
        $region19: #{tpu_custom_call.1} parent=11 // pred_region
          %s257 = ssub.s32 512, 512
          %258 = vsyncadd [#allocation8], %s257
          %s259 = sshll.u32 [#allocation9], 4
          %s260 = int_to_ptr.vmem [resolvable:$true] %s259
          %265 = dma.hbm_to_vmem [thread:$0]  %s3, 512, %s260, [#allocation8], 128, 128, 8
        $region20: #{tpu_custom_call.1} parent=11 // pred_fallthru
          _
        // Predicated region
        $region21: #{tpu_custom_call.1} parent=11 // pred_check
          %p266 = pneg %p115
        $region22: #{tpu_custom_call.1} parent=11 // pred_check_branch
          %268 = sbr.rel (%p266) target = $region24
        $region23: #{tpu_custom_call.1} parent=11 // pred_region
          _
        $region24: #{tpu_custom_call.1} parent=11 // pred_fallthru
          _
        // Predicated region
        $region25: #{tpu_custom_call.1} parent=11 // pred_check
          %p269 = pneg %p136
        $region26: #{tpu_custom_call.1} parent=11 // pred_check_branch
          %271 = sbr.rel (%p269) target = $region28
        $region27: #{tpu_custom_call.1} parent=11 // pred_region
          _
        $region28: #{tpu_custom_call.1} parent=11 // pred_fallthru
          _
        // Predicated region
        $region29: #{tpu_custom_call.1} parent=11 // pred_check
          %p272 = pneg %p157
        $region30: #{tpu_custom_call.1} parent=11 // pred_check_branch
          %274 = sbr.rel (%p272) target = $region32
        $region31: #{tpu_custom_call.1} parent=11 // pred_region
          _
        $region32: #{tpu_custom_call.1} parent=11 // pred_fallthru
          _
        // Predicated region
        $region33: #{tpu_custom_call.1} parent=11 // pred_check
          %p275 = pneg %p178
        $region34: #{tpu_custom_call.1} parent=11 // pred_check_branch
          %277 = sbr.rel (%p275) target = $region36
        $region35: #{tpu_custom_call.1} parent=11 // pred_region
          _
        $region36: #{tpu_custom_call.1} parent=11 // pred_fallthru
          _
        // Predicated region
        $region37: #{tpu_custom_call.1} parent=11 // pred_check
          %p278 = pneg %p199
        $region38: #{tpu_custom_call.1} parent=11 // pred_check_branch
          %280 = sbr.rel (%p278) target = $region40
        $region39: #{tpu_custom_call.1} parent=11 // pred_region
          _
        $region40: #{tpu_custom_call.1} parent=11 // pred_fallthru
          _
      $region12: #{tpu_custom_call.1} parent=5 // pred_fallthru
        _
      %p281 = scmp.lt.s32.totalorder %s26, 2
      // Predicated region
      $region41: #{tpu_custom_call.1} parent=5 // pred_check
        %p282 = pneg %p281
      $region42: #{tpu_custom_call.1} parent=5 // pred_check_branch
        %284 = sbr.rel (%p282) target = $region44
      $region43: #{tpu_custom_call.1} parent=5 // pred_region
        // Predicated region
        $region45: #{tpu_custom_call.1} parent=43 // pred_check
          %p285 = pneg %p46
        $region46: #{tpu_custom_call.1} parent=43 // pred_check_branch
          %287 = sbr.rel (%p285) target = $region48
        $region47: #{tpu_custom_call.1} parent=43 // pred_region
          %s288 = sand.u32 %s36, 1
          %s289 = scalar_lea.sflag [#allocation5], %s288
          %s290 = sand.u32 %s36, 1
          %s291 = smul.addr %s290, 8
          %s292 = scalar_lea.vmem [#allocation4], %s291
          %s294 = ssub.s32 128, 128
          %295 = vsyncadd %s289, %s294
          %s296 = smul.addr %s26, 128
          %s297 = scalar_lea.hbm %s1, %s296
          %s299 = sshll.u32 %s292, 4
          %s300 = int_to_ptr.vmem [resolvable:$true] %s299
          %302 = dma.hbm_to_vmem [thread:$0]  %s297, 128, %s300, %s289
        $region48: #{tpu_custom_call.1} parent=43 // pred_fallthru
          _
      $region44: #{tpu_custom_call.1} parent=5 // pred_fallthru
        _
      %p303 = scmp.le.s32.totalorder 1, %s26
      %p304 = scmp.lt.s32.totalorder %s26, 3
      %p305 = pnand %p303, %p304
      %p306 = pneg %p305
      // Predicated region
      $region49: #{tpu_custom_call.1} parent=5 // pred_check
        _
      $region50: #{tpu_custom_call.1} parent=5 // pred_check_branch
        %308 = sbr.rel (%p305) target = $region52
      $region51: #{tpu_custom_call.1} parent=5 // pred_region
        %s309 = ssub.s32 %s26, 1
        %s310 = sand.u32 %s39, 1
        %s311 = scalar_lea.sflag [#allocation5], %s310
        %s312 = sand.u32 %s39, 1
        %s313 = smul.addr %s312, 8
        %s314 = scalar_lea.vmem [#allocation4], %s313
        // Predicated region
        $region53: #{tpu_custom_call.1} parent=51 // pred_check
          %p315 = pneg %p52
        $region54: #{tpu_custom_call.1} parent=51 // pred_check_branch
          %317 = sbr.rel (%p315) target = $region56
        $region55: #{tpu_custom_call.1} parent=51 // pred_region
          %318 = dma.done %s311, 128
        $region56: #{tpu_custom_call.1} parent=51 // pred_fallthru
          _
        // Predicated region
        $region57: #{tpu_custom_call.1} parent=51 // pred_check
          %p319 = pneg %p73
        $region58: #{tpu_custom_call.1} parent=51 // pred_check_branch
          %321 = sbr.rel (%p319) target = $region60
        $region59: #{tpu_custom_call.1} parent=51 // pred_region
          %322 = dma.done [#allocation8], 512
        $region60: #{tpu_custom_call.1} parent=51 // pred_fallthru
          _
        // Predicated region
        $region61: #{tpu_custom_call.1} parent=51 // pred_check
          %p323 = pneg %p94
        $region62: #{tpu_custom_call.1} parent=51 // pred_check_branch
          %325 = sbr.rel (%p323) target = $region64
        $region63: #{tpu_custom_call.1} parent=51 // pred_region
          %326 = dma.done [#allocation8], 512
        $region64: #{tpu_custom_call.1} parent=51 // pred_fallthru
          _
        %s327 = sand.u32 %s39, 1
        %s328 = scalar_lea.sflag [#allocation5], %s327
        %s329 = sand.u32 %s39, 1
        %s330 = smul.addr %s329, 8
        %s331 = scalar_lea.vmem [#allocation4], %s330
        %p332 = pneg %p52
        %p333 = pneg %p49
        %p334 = pneg %p73
        %p335 = pneg %p70
        %p336 = pneg %p94
        %p337 = pneg %p91
        %p338 = pneg %p115
        %p339 = pneg %p112
        %p340 = pneg %p136
        %p341 = pneg %p133
        %p342 = pneg %p157
        %p343 = pneg %p154
        %p344 = pneg %p178
        %p345 = pneg %p175
        %p346 = pneg %p199
        %p347 = pneg %p196
        %p348 = pneg %p225
        %p349 = pneg %p222
        %s350 = sand.u32 %s212, 1
        %s351 = scalar_lea.sflag [#allocation6], %s350
        %s352 = sand.u32 %s212, 1
        %s353 = smul.addr %s352, 8
        %s354 = scalar_lea.vmem [#allocation10], %s353
        %v355 = vld [vmem:[%s314] sm:$0xff]
        %vm356 = vcmask 261120
        %v357 = vsel %vm356, %v355, 0.0
        %358 = vadd.xlane.f32.xlu0 %v357
        %v359 = vpop.xlane.xlu0 %358
        %v360 = vrcp.pop 32.0
        %v361 = vmul.f32 %v359, %v360
        %v362 = vsub.f32 %v355, %v361
        %v363 = vmul.f32 %v362, %v362
        %v364 = vsel %vm356, %v363, 0.0
        %365 = vadd.xlane.f32.xlu0 %v364
        %v366 = vpop.xlane.xlu0 %365
        %v367 = vmul.f32 %v366, %v360
        %v368 = vadd.f32 %v367, 1e-05
        %v369 = vrsqrt.pop %v368
        %v370 = vmul.f32 %v362, %v369
        %v371 = vld [vmem:[%s5] sm:$0x1]
        %v373 = vlaneseq
        %v374 = vshrl.u32 %v373, 7
        %v375 = vsub.s32 0, %v374
        %v376 = vrot.slane %v371, %v375
        %v378 = vmul.f32 %v370, %v376
        %v379 = vld [vmem:[%s6] sm:$0x1]
        %v381 = vlaneseq
        %v382 = vshrl.u32 %v381, 7
        %v383 = vsub.s32 0, %v382
        %v384 = vrot.slane %v379, %v383
        %v386 = vadd.f32 %v378, %v384
        %v387 = vld [vmem:[#allocation7] sm:$0xff]
        %v388 = vld [vmem:[#allocation7 + $0x8] sm:$0xff]
        %v389 = vld [vmem:[#allocation7 + $0x10] sm:$0xff]
        %v390 = vld [vmem:[#allocation7 + $0x18] sm:$0xff]
        %v392 = vsel %vm356, %v386, 0
        %394 = vmatprep.subr.mxu0 0.0
        %395 = vmatpush1.msra.mxu0 0.0
        %396 = vmatprep.subr.mxu0 0.0
        %397 = vmatpush1.msra.mxu0 0.0
        %398 = vmatprep.subr.mxu0 0.0
        %399 = vmatpush1.msra.mxu0 0.0
        %400 = vmatprep.subr.mxu0 0.0
        %401 = vmatpush1.msra.mxu0 0.0
        %402 = vmatprep.subr.mxu0 0.0
        %403 = vmatpush1.msra.mxu0 0.0
        %404 = vmatprep.subr.mxu0 0.0
        %405 = vmatpush1.msra.mxu0 0.0
        %406 = vmatprep.subr.mxu0 0.0
        %407 = vmatpush1.msra.mxu0 0.0
        %408 = vmatprep.subr.mxu0 0.0
        %409 = vmatpush1.msra.mxu0 0.0
        %410 = vmatprep.subr.mxu0 0.0
        %411 = vmatpush1.msra.mxu0 0.0
        %412 = vmatprep.subr.mxu0 0.0
        %413 = vmatpush1.msra.mxu0 0.0
        %414 = vmatprep.subr.mxu0 0.0
        %415 = vmatpush1.msra.mxu0 0.0
        %416 = vmatprep.subr.mxu0 0.0
        %417 = vmatpush1.msra.mxu0 0.0
        %418 = vmatprep.subr.mxu0 0.0
        %419 = vmatpush1.msra.mxu0 %v390
        %420 = vmatprep.subr.mxu0 0.0
        %421 = vmatpush1.msra.mxu0 %v389
        %422 = vmatprep.subr.mxu0 0.0
        %423 = vmatpush1.msra.mxu0 %v388
        %424 = vmatprep.subr.mxu0 0.0
        %425 = vmatpush1.msra.mxu0 %v387
        %426 = vmatprep.subr.mxu0 0.0
        %427 = vmatpush2.msra.mxu0 0.0
        %428 = vmatprep.subr.mxu0 0.0
        %429 = vmatpush2.msra.mxu0 0.0
        %430 = vmatprep.subr.mxu0 0.0
        %431 = vmatpush2.msra.mxu0 0.0
        %432 = vmatprep.subr.mxu0 0.0
        %433 = vmatpush2.msra.mxu0 0.0
        %434 = vmatprep.subr.mxu0 0.0
        %435 = vmatpush2.msra.mxu0 0.0
        %436 = vmatprep.subr.mxu0 0.0
        %437 = vmatpush2.msra.mxu0 0.0
        %438 = vmatprep.subr.mxu0 0.0
        %439 = vmatpush2.msra.mxu0 0.0
        %440 = vmatprep.subr.mxu0 0.0
        %441 = vmatpush2.msra.mxu0 0.0
        %442 = vmatprep.subr.mxu0 0.0
        %443 = vmatpush2.msra.mxu0 0.0
        %444 = vmatprep.subr.mxu0 0.0
        %445 = vmatpush2.msra.mxu0 0.0
        %446 = vmatprep.subr.mxu0 0.0
        %447 = vmatpush2.msra.mxu0 0.0
        %448 = vmatprep.subr.mxu0 0.0
        %449 = vmatpush2.msra.mxu0 0.0
        %450 = vmatprep.subr.mxu0 0.0
        %451 = vmatpush2.msra.mxu0 0.0
        %452 = vmatprep.subr.mxu0 0.0
        %453 = vmatpush2.msra.mxu0 0.0
        %454 = vmatprep.subr.mxu0 0.0
        %455 = vmatpush2.msra.mxu0 0.0
        %456 = vmatprep.subr.mxu0 0.0
        %457 = vmatpush2.msra.mxu0 0.0
        %458 = vmatprep.mubr.f32.mxu0 0.0
        %459 = vmatmul.mubr.f32.gmra.mxu0 %v392
        %v460 = vpop.f32.mrf.mxu0
        %v461 = vadd.f32 0.0, %v460
        %v462 = vpop.f32.mrf.mxu0
        %463 = vdwg.mxu0
        %v464 = vlaneseq
        %v465 = vshrl.u32 %v464, 7
        %v466 = vlaneseq
        %v467 = vand.u32 %v466, 127
        %s468 = sld [smem:[#allocation3 + %s31]]
        %v469 = vstv %s468
        %vm470 = vcmp.lt.s32.totalorder %v465, %v469
        %vm471 = vcmp.lt.s32.totalorder %v467, %v469
        %v472 = vsel %vm470, 1, 0
        %vm473 = vcmp.eq.s32.totalorder %v472, 1
        %v474 = vsel %vm471, 1, 0
        %vm475 = vcmp.eq.s32.totalorder %v474, 1
        %vm476 = vmand %vm473, %vm475
        %vm477 = vcmp.le.s32.totalorder %v467, %v465
        %vm478 = vmand %vm476, %vm477
        %480 = vrot.lane.b32.xlu0 %v461, 96
        %v481 = vpop.permute.xlu0 %480
        %vm482 = vcmask 64512
        %v483 = vsel %vm482, %v461, 0
        %v485 = vsel %vm482, %v481, 0
        %487 = vmatprep.subr.mxu0 0.0
        %488 = vmatpush1.xpose.msra.mxu0 0.0
        %489 = vmatprep.subr.mxu0 0.0
        %490 = vmatpush1.xpose.msra.mxu0 0.0
        %491 = vmatprep.subr.mxu0 0.0
        %492 = vmatpush1.xpose.msra.mxu0 0.0
        %493 = vmatprep.subr.mxu0 0.0
        %494 = vmatpush1.xpose.msra.mxu0 0.0
        %495 = vmatprep.subr.mxu0 0.0
        %496 = vmatpush1.xpose.msra.mxu0 0.0
        %497 = vmatprep.subr.mxu0 0.0
        %498 = vmatpush1.xpose.msra.mxu0 0.0
        %499 = vmatprep.subr.mxu0 0.0
        %500 = vmatpush1.xpose.msra.mxu0 0.0
        %501 = vmatprep.subr.mxu0 0.0
        %502 = vmatpush1.xpose.msra.mxu0 0.0
        %503 = vmatprep.subr.mxu0 0.0
        %504 = vmatpush1.xpose.msra.mxu0 0.0
        %505 = vmatprep.subr.mxu0 0.0
        %506 = vmatpush1.xpose.msra.mxu0 0.0
        %507 = vmatprep.subr.mxu0 0.0
        %508 = vmatpush1.xpose.msra.mxu0 0.0
        %509 = vmatprep.subr.mxu0 0.0
        %510 = vmatpush1.xpose.msra.mxu0 0.0
        %511 = vmatprep.subr.mxu0 0.0
        %512 = vmatpush1.xpose.msra.mxu0 0.0
        %513 = vmatprep.subr.mxu0 0.0
        %514 = vmatpush1.xpose.msra.mxu0 0.0
        %515 = vmatprep.subr.mxu0 0.0
        %516 = vmatpush1.xpose.msra.mxu0 0.0
        %517 = vmatprep.subr.mxu0 0.0
        %518 = vmatpush1.xpose.msra.mxu0 %v485
        %519 = vmatprep.subr.mxu0 0.0
        %520 = vmatpush2.xpose.msra.mxu0 0.0
        %521 = vmatprep.subr.mxu0 0.0
        %522 = vmatpush2.xpose.msra.mxu0 0.0
        %523 = vmatprep.subr.mxu0 0.0
        %524 = vmatpush2.xpose.msra.mxu0 0.0
        %525 = vmatprep.subr.mxu0 0.0
        %526 = vmatpush2.xpose.msra.mxu0 0.0
        %527 = vmatprep.subr.mxu0 0.0
        %528 = vmatpush2.xpose.msra.mxu0 0.0
        %529 = vmatprep.subr.mxu0 0.0
        %530 = vmatpush2.xpose.msra.mxu0 0.0
        %531 = vmatprep.subr.mxu0 0.0
        %532 = vmatpush2.xpose.msra.mxu0 0.0
        %533 = vmatprep.subr.mxu0 0.0
        %534 = vmatpush2.xpose.msra.mxu0 0.0
        %535 = vmatprep.subr.mxu0 0.0
        %536 = vmatpush2.xpose.msra.mxu0 0.0
        %537 = vmatprep.subr.mxu0 0.0
        %538 = vmatpush2.xpose.msra.mxu0 0.0
        %539 = vmatprep.subr.mxu0 0.0
        %540 = vmatpush2.xpose.msra.mxu0 0.0
        %541 = vmatprep.subr.mxu0 0.0
        %542 = vmatpush2.xpose.msra.mxu0 0.0
        %543 = vmatprep.subr.mxu0 0.0
        %544 = vmatpush2.xpose.msra.mxu0 0.0
        %545 = vmatprep.subr.mxu0 0.0
        %546 = vmatpush2.xpose.msra.mxu0 0.0
        %547 = vmatprep.subr.mxu0 0.0
        %548 = vmatpush2.xpose.msra.mxu0 0.0
        %549 = vmatprep.subr.mxu0 0.0
        %550 = vmatpush2.xpose.msra.mxu0 0.0
        %551 = vmatprep.mubr.f32.mxu0 0.0
        %552 = vmatmul.mubr.f32.gmra.mxu0 %v483
        %v553 = vpop.f32.mrf.mxu0
        %v554 = vadd.f32 0.0, %v553
        %v555 = vpop.f32.mrf.mxu0
        %556 = vdwg.mxu0
        %v557 = vsel %vm478, %v554, -1e+30
        %v558 = vsel %vm482, %v557, -inf
        %559 = vmax.xlane.f32.xlu0 %v558
        %v560 = vpop.xlane.xlu0 %559
        %v561 = vsub.f32 %v557, %v560
        %v562 = vmul.f32 %v561, 1.442695
        %v563 = vpow.pop %v562
        %v564 = vsel %vm482, %v563, 0.0
        %565 = vadd.xlane.f32.xlu0 %v564
        %v566 = vpop.xlane.xlu0 %565
        %v567 = vrcp.pop %v566
        %v568 = vmul.f32 %v563, %v567
        %569 = vrot.lane.b32.xlu0 %v461, 64
        %v570 = vpop.permute.xlu0 %569
        %v573 = vsel %vm482, %v568, 0
        %575 = vmatprep.subr.mxu0 0.0
        %576 = vmatpush1.msra.mxu0 0.0
        %577 = vmatprep.subr.mxu0 0.0
        %578 = vmatpush1.msra.mxu0 0.0
        %579 = vmatprep.subr.mxu0 0.0
        %580 = vmatpush1.msra.mxu0 0.0
        %581 = vmatprep.subr.mxu0 0.0
        %582 = vmatpush1.msra.mxu0 0.0
        %583 = vmatprep.subr.mxu0 0.0
        %584 = vmatpush1.msra.mxu0 0.0
        %585 = vmatprep.subr.mxu0 0.0
        %586 = vmatpush1.msra.mxu0 0.0
        %587 = vmatprep.subr.mxu0 0.0
        %588 = vmatpush1.msra.mxu0 0.0
        %589 = vmatprep.subr.mxu0 0.0
        %590 = vmatpush1.msra.mxu0 0.0
        %591 = vmatprep.subr.mxu0 0.0
        %592 = vmatpush1.msra.mxu0 0.0
        %593 = vmatprep.subr.mxu0 0.0
        %594 = vmatpush1.msra.mxu0 0.0
        %595 = vmatprep.subr.mxu0 0.0
        %596 = vmatpush1.msra.mxu0 0.0
        %597 = vmatprep.subr.mxu0 0.0
        %598 = vmatpush1.msra.mxu0 0.0
        %599 = vmatprep.subr.mxu0 0.0
        %600 = vmatpush1.msra.mxu0 0.0
        %601 = vmatprep.subr.mxu0 0.0
        %602 = vmatpush1.msra.mxu0 0.0
        %603 = vmatprep.subr.mxu0 0.0
        %604 = vmatpush1.msra.mxu0 0.0
        %605 = vmatprep.subr.mxu0 0.0
        %606 = vmatpush1.msra.mxu0 %v570
        %607 = vmatprep.subr.mxu0 0.0
        %608 = vmatpush2.msra.mxu0 0.0
        %609 = vmatprep.subr.mxu0 0.0
        %610 = vmatpush2.msra.mxu0 0.0
        %611 = vmatprep.subr.mxu0 0.0
        %612 = vmatpush2.msra.mxu0 0.0
        %613 = vmatprep.subr.mxu0 0.0
        %614 = vmatpush2.msra.mxu0 0.0
        %615 = vmatprep.subr.mxu0 0.0
        %616 = vmatpush2.msra.mxu0 0.0
        %617 = vmatprep.subr.mxu0 0.0
        %618 = vmatpush2.msra.mxu0 0.0
        %619 = vmatprep.subr.mxu0 0.0
        %620 = vmatpush2.msra.mxu0 0.0
        %621 = vmatprep.subr.mxu0 0.0
        %622 = vmatpush2.msra.mxu0 0.0
        %623 = vmatprep.subr.mxu0 0.0
        %624 = vmatpush2.msra.mxu0 0.0
        %625 = vmatprep.subr.mxu0 0.0
        %626 = vmatpush2.msra.mxu0 0.0
        %627 = vmatprep.subr.mxu0 0.0
        %628 = vmatpush2.msra.mxu0 0.0
        %629 = vmatprep.subr.mxu0 0.0
        %630 = vmatpush2.msra.mxu0 0.0
        %631 = vmatprep.subr.mxu0 0.0
        %632 = vmatpush2.msra.mxu0 0.0
        %633 = vmatprep.subr.mxu0 0.0
        %634 = vmatpush2.msra.mxu0 0.0
        %635 = vmatprep.subr.mxu0 0.0
        %636 = vmatpush2.msra.mxu0 0.0
        %637 = vmatprep.subr.mxu0 0.0
        %638 = vmatpush2.msra.mxu0 0.0
        %639 = vmatprep.mubr.f32.mxu0 0.0
        %640 = vmatmul.mubr.f32.gmra.mxu0 %v573
        %v641 = vpop.f32.mrf.mxu0
        %v642 = vadd.f32 0.0, %v641
        %v643 = vpop.f32.mrf.mxu0
        %644 = vdwg.mxu0
        %645 = vrot.lane.b32.xlu0 %v461, 120
        %v646 = vpop.permute.xlu0 %645
        %647 = vrot.lane.b32.xlu0 %v461, 88
        %v648 = vpop.permute.xlu0 %647
        %v649 = vsel %vm482, %v646, 0
        %v651 = vsel %vm482, %v648, 0
        %653 = vmatprep.subr.mxu0 0.0
        %654 = vmatpush1.xpose.msra.mxu0 0.0
        %655 = vmatprep.subr.mxu0 0.0
        %656 = vmatpush1.xpose.msra.mxu0 0.0
        %657 = vmatprep.subr.mxu0 0.0
        %658 = vmatpush1.xpose.msra.mxu0 0.0
        %659 = vmatprep.subr.mxu0 0.0
        %660 = vmatpush1.xpose.msra.mxu0 0.0
        %661 = vmatprep.subr.mxu0 0.0
        %662 = vmatpush1.xpose.msra.mxu0 0.0
        %663 = vmatprep.subr.mxu0 0.0
        %664 = vmatpush1.xpose.msra.mxu0 0.0
        %665 = vmatprep.subr.mxu0 0.0
        %666 = vmatpush1.xpose.msra.mxu0 0.0
        %667 = vmatprep.subr.mxu0 0.0
        %668 = vmatpush1.xpose.msra.mxu0 0.0
        %669 = vmatprep.subr.mxu0 0.0
        %670 = vmatpush1.xpose.msra.mxu0 0.0
        %671 = vmatprep.subr.mxu0 0.0
        %672 = vmatpush1.xpose.msra.mxu0 0.0
        %673 = vmatprep.subr.mxu0 0.0
        %674 = vmatpush1.xpose.msra.mxu0 0.0
        %675 = vmatprep.subr.mxu0 0.0
        %676 = vmatpush1.xpose.msra.mxu0 0.0
        %677 = vmatprep.subr.mxu0 0.0
        %678 = vmatpush1.xpose.msra.mxu0 0.0
        %679 = vmatprep.subr.mxu0 0.0
        %680 = vmatpush1.xpose.msra.mxu0 0.0
        %681 = vmatprep.subr.mxu0 0.0
        %682 = vmatpush1.xpose.msra.mxu0 0.0
        %683 = vmatprep.subr.mxu0 0.0
        %684 = vmatpush1.xpose.msra.mxu0 %v651
        %685 = vmatprep.subr.mxu0 0.0
        %686 = vmatpush2.xpose.msra.mxu0 0.0
        %687 = vmatprep.subr.mxu0 0.0
        %688 = vmatpush2.xpose.msra.mxu0 0.0
        %689 = vmatprep.subr.mxu0 0.0
        %690 = vmatpush2.xpose.msra.mxu0 0.0
        %691 = vmatprep.subr.mxu0 0.0
        %692 = vmatpush2.xpose.msra.mxu0 0.0
        %693 = vmatprep.subr.mxu0 0.0
        %694 = vmatpush2.xpose.msra.mxu0 0.0
        %695 = vmatprep.subr.mxu0 0.0
        %696 = vmatpush2.xpose.msra.mxu0 0.0
        %697 = vmatprep.subr.mxu0 0.0
        %698 = vmatpush2.xpose.msra.mxu0 0.0
        %699 = vmatprep.subr.mxu0 0.0
        %700 = vmatpush2.xpose.msra.mxu0 0.0
        %701 = vmatprep.subr.mxu0 0.0
        %702 = vmatpush2.xpose.msra.mxu0 0.0
        %703 = vmatprep.subr.mxu0 0.0
        %704 = vmatpush2.xpose.msra.mxu0 0.0
        %705 = vmatprep.subr.mxu0 0.0
        %706 = vmatpush2.xpose.msra.mxu0 0.0
        %707 = vmatprep.subr.mxu0 0.0
        %708 = vmatpush2.xpose.msra.mxu0 0.0
        %709 = vmatprep.subr.mxu0 0.0
        %710 = vmatpush2.xpose.msra.mxu0 0.0
        %711 = vmatprep.subr.mxu0 0.0
        %712 = vmatpush2.xpose.msra.mxu0 0.0
        %713 = vmatprep.subr.mxu0 0.0
        %714 = vmatpush2.xpose.msra.mxu0 0.0
        %715 = vmatprep.subr.mxu0 0.0
        %716 = vmatpush2.xpose.msra.mxu0 0.0
        %717 = vmatprep.mubr.f32.mxu0 0.0
        %718 = vmatmul.mubr.f32.gmra.mxu0 %v649
        %v719 = vpop.f32.mrf.mxu0
        %v720 = vadd.f32 0.0, %v719
        %v721 = vpop.f32.mrf.mxu0
        %722 = vdwg.mxu0
        %v723 = vsel %vm478, %v720, -1e+30
        %v724 = vsel %vm482, %v723, -inf
        %725 = vmax.xlane.f32.xlu0 %v724
        %v726 = vpop.xlane.xlu0 %725
        %v727 = vsub.f32 %v723, %v726
        %v728 = vmul.f32 %v727, 1.442695
        %v729 = vpow.pop %v728
        %v730 = vsel %vm482, %v729, 0.0
        %731 = vadd.xlane.f32.xlu0 %v730
        %v732 = vpop.xlane.xlu0 %731
        %v733 = vrcp.pop %v732
        %v734 = vmul.f32 %v729, %v733
        %735 = vrot.lane.b32.xlu0 %v461, 56
        %v736 = vpop.permute.xlu0 %735
        %v739 = vsel %vm482, %v734, 0
        %741 = vmatprep.subr.mxu0 0.0
        %742 = vmatpush1.msra.mxu0 0.0
        %743 = vmatprep.subr.mxu0 0.0
        %744 = vmatpush1.msra.mxu0 0.0
        %745 = vmatprep.subr.mxu0 0.0
        %746 = vmatpush1.msra.mxu0 0.0
        %747 = vmatprep.subr.mxu0 0.0
        %748 = vmatpush1.msra.mxu0 0.0
        %749 = vmatprep.subr.mxu0 0.0
        %750 = vmatpush1.msra.mxu0 0.0
        %751 = vmatprep.subr.mxu0 0.0
        %752 = vmatpush1.msra.mxu0 0.0
        %753 = vmatprep.subr.mxu0 0.0
        %754 = vmatpush1.msra.mxu0 0.0
        %755 = vmatprep.subr.mxu0 0.0
        %756 = vmatpush1.msra.mxu0 0.0
        %757 = vmatprep.subr.mxu0 0.0
        %758 = vmatpush1.msra.mxu0 0.0
        %759 = vmatprep.subr.mxu0 0.0
        %760 = vmatpush1.msra.mxu0 0.0
        %761 = vmatprep.subr.mxu0 0.0
        %762 = vmatpush1.msra.mxu0 0.0
        %763 = vmatprep.subr.mxu0 0.0
        %764 = vmatpush1.msra.mxu0 0.0
        %765 = vmatprep.subr.mxu0 0.0
        %766 = vmatpush1.msra.mxu0 0.0
        %767 = vmatprep.subr.mxu0 0.0
        %768 = vmatpush1.msra.mxu0 0.0
        %769 = vmatprep.subr.mxu0 0.0
        %770 = vmatpush1.msra.mxu0 0.0
        %771 = vmatprep.subr.mxu0 0.0
        %772 = vmatpush1.msra.mxu0 %v736
        %773 = vmatprep.subr.mxu0 0.0
        %774 = vmatpush2.msra.mxu0 0.0
        %775 = vmatprep.subr.mxu0 0.0
        %776 = vmatpush2.msra.mxu0 0.0
        %777 = vmatprep.subr.mxu0 0.0
        %778 = vmatpush2.msra.mxu0 0.0
        %779 = vmatprep.subr.mxu0 0.0
        %780 = vmatpush2.msra.mxu0 0.0
        %781 = vmatprep.subr.mxu0 0.0
        %782 = vmatpush2.msra.mxu0 0.0
        %783 = vmatprep.subr.mxu0 0.0
        %784 = vmatpush2.msra.mxu0 0.0
        %785 = vmatprep.subr.mxu0 0.0
        %786 = vmatpush2.msra.mxu0 0.0
        %787 = vmatprep.subr.mxu0 0.0
        %788 = vmatpush2.msra.mxu0 0.0
        %789 = vmatprep.subr.mxu0 0.0
        %790 = vmatpush2.msra.mxu0 0.0
        %791 = vmatprep.subr.mxu0 0.0
        %792 = vmatpush2.msra.mxu0 0.0
        %793 = vmatprep.subr.mxu0 0.0
        %794 = vmatpush2.msra.mxu0 0.0
        %795 = vmatprep.subr.mxu0 0.0
        %796 = vmatpush2.msra.mxu0 0.0
        %797 = vmatprep.subr.mxu0 0.0
        %798 = vmatpush2.msra.mxu0 0.0
        %799 = vmatprep.subr.mxu0 0.0
        %800 = vmatpush2.msra.mxu0 0.0
        %801 = vmatprep.subr.mxu0 0.0
        %802 = vmatpush2.msra.mxu0 0.0
        %803 = vmatprep.subr.mxu0 0.0
        %804 = vmatpush2.msra.mxu0 0.0
        %805 = vmatprep.mubr.f32.mxu0 0.0
        %806 = vmatmul.mubr.f32.gmra.mxu0 %v739
        %v807 = vpop.f32.mrf.mxu0
        %v808 = vadd.f32 0.0, %v807
        %v809 = vpop.f32.mrf.mxu0
        %810 = vdwg.mxu0
        %811 = vrot.lane.b32.xlu0 %v461, 112
        %v812 = vpop.permute.xlu0 %811
        %813 = vrot.lane.b32.xlu0 %v461, 80
        %v814 = vpop.permute.xlu0 %813
        %v815 = vsel %vm482, %v812, 0
        %v817 = vsel %vm482, %v814, 0
        %819 = vmatprep.subr.mxu0 0.0
        %820 = vmatpush1.xpose.msra.mxu0 0.0
        %821 = vmatprep.subr.mxu0 0.0
        %822 = vmatpush1.xpose.msra.mxu0 0.0
        %823 = vmatprep.subr.mxu0 0.0
        %824 = vmatpush1.xpose.msra.mxu0 0.0
        %825 = vmatprep.subr.mxu0 0.0
        %826 = vmatpush1.xpose.msra.mxu0 0.0
        %827 = vmatprep.subr.mxu0 0.0
        %828 = vmatpush1.xpose.msra.mxu0 0.0
        %829 = vmatprep.subr.mxu0 0.0
        %830 = vmatpush1.xpose.msra.mxu0 0.0
        %831 = vmatprep.subr.mxu0 0.0
        %832 = vmatpush1.xpose.msra.mxu0 0.0
        %833 = vmatprep.subr.mxu0 0.0
        %834 = vmatpush1.xpose.msra.mxu0 0.0
        %835 = vmatprep.subr.mxu0 0.0
        %836 = vmatpush1.xpose.msra.mxu0 0.0
        %837 = vmatprep.subr.mxu0 0.0
        %838 = vmatpush1.xpose.msra.mxu0 0.0
        %839 = vmatprep.subr.mxu0 0.0
        %840 = vmatpush1.xpose.msra.mxu0 0.0
        %841 = vmatprep.subr.mxu0 0.0
        %842 = vmatpush1.xpose.msra.mxu0 0.0
        %843 = vmatprep.subr.mxu0 0.0
        %844 = vmatpush1.xpose.msra.mxu0 0.0
        %845 = vmatprep.subr.mxu0 0.0
        %846 = vmatpush1.xpose.msra.mxu0 0.0
        %847 = vmatprep.subr.mxu0 0.0
        %848 = vmatpush1.xpose.msra.mxu0 0.0
        %849 = vmatprep.subr.mxu0 0.0
        %850 = vmatpush1.xpose.msra.mxu0 %v817
        %851 = vmatprep.subr.mxu0 0.0
        %852 = vmatpush2.xpose.msra.mxu0 0.0
        %853 = vmatprep.subr.mxu0 0.0
        %854 = vmatpush2.xpose.msra.mxu0 0.0
        %855 = vmatprep.subr.mxu0 0.0
        %856 = vmatpush2.xpose.msra.mxu0 0.0
        %857 = vmatprep.subr.mxu0 0.0
        %858 = vmatpush2.xpose.msra.mxu0 0.0
        %859 = vmatprep.subr.mxu0 0.0
        %860 = vmatpush2.xpose.msra.mxu0 0.0
        %861 = vmatprep.subr.mxu0 0.0
        %862 = vmatpush2.xpose.msra.mxu0 0.0
        %863 = vmatprep.subr.mxu0 0.0
        %864 = vmatpush2.xpose.msra.mxu0 0.0
        %865 = vmatprep.subr.mxu0 0.0
        %866 = vmatpush2.xpose.msra.mxu0 0.0
        %867 = vmatprep.subr.mxu0 0.0
        %868 = vmatpush2.xpose.msra.mxu0 0.0
        %869 = vmatprep.subr.mxu0 0.0
        %870 = vmatpush2.xpose.msra.mxu0 0.0
        %871 = vmatprep.subr.mxu0 0.0
        %872 = vmatpush2.xpose.msra.mxu0 0.0
        %873 = vmatprep.subr.mxu0 0.0
        %874 = vmatpush2.xpose.msra.mxu0 0.0
        %875 = vmatprep.subr.mxu0 0.0
        %876 = vmatpush2.xpose.msra.mxu0 0.0
        %877 = vmatprep.subr.mxu0 0.0
        %878 = vmatpush2.xpose.msra.mxu0 0.0
        %879 = vmatprep.subr.mxu0 0.0
        %880 = vmatpush2.xpose.msra.mxu0 0.0
        %881 = vmatprep.subr.mxu0 0.0
        %882 = vmatpush2.xpose.msra.mxu0 0.0
        %883 = vmatprep.mubr.f32.mxu0 0.0
        %884 = vmatmul.mubr.f32.gmra.mxu0 %v815
        %v885 = vpop.f32.mrf.mxu0
        %v886 = vadd.f32 0.0, %v885
        %v887 = vpop.f32.mrf.mxu0
        %888 = vdwg.mxu0
        %v889 = vsel %vm478, %v886, -1e+30
        %v890 = vsel %vm482, %v889, -inf
        %891 = vmax.xlane.f32.xlu0 %v890
        %v892 = vpop.xlane.xlu0 %891
        %v893 = vsub.f32 %v889, %v892
        %v894 = vmul.f32 %v893, 1.442695
        %v895 = vpow.pop %v894
        %v896 = vsel %vm482, %v895, 0.0
        %897 = vadd.xlane.f32.xlu0 %v896
        %v898 = vpop.xlane.xlu0 %897
        %v899 = vrcp.pop %v898
        %v900 = vmul.f32 %v895, %v899
        %901 = vrot.lane.b32.xlu0 %v461, 48
        %v902 = vpop.permute.xlu0 %901
        %v905 = vsel %vm482, %v900, 0
        %907 = vmatprep.subr.mxu0 0.0
        %908 = vmatpush1.msra.mxu0 0.0
        %909 = vmatprep.subr.mxu0 0.0
        %910 = vmatpush1.msra.mxu0 0.0
        %911 = vmatprep.subr.mxu0 0.0
        %912 = vmatpush1.msra.mxu0 0.0
        %913 = vmatprep.subr.mxu0 0.0
        %914 = vmatpush1.msra.mxu0 0.0
        %915 = vmatprep.subr.mxu0 0.0
        %916 = vmatpush1.msra.mxu0 0.0
        %917 = vmatprep.subr.mxu0 0.0
        %918 = vmatpush1.msra.mxu0 0.0
        %919 = vmatprep.subr.mxu0 0.0
        %920 = vmatpush1.msra.mxu0 0.0
        %921 = vmatprep.subr.mxu0 0.0
        %922 = vmatpush1.msra.mxu0 0.0
        %923 = vmatprep.subr.mxu0 0.0
        %924 = vmatpush1.msra.mxu0 0.0
        %925 = vmatprep.subr.mxu0 0.0
        %926 = vmatpush1.msra.mxu0 0.0
        %927 = vmatprep.subr.mxu0 0.0
        %928 = vmatpush1.msra.mxu0 0.0
        %929 = vmatprep.subr.mxu0 0.0
        %930 = vmatpush1.msra.mxu0 0.0
        %931 = vmatprep.subr.mxu0 0.0
        %932 = vmatpush1.msra.mxu0 0.0
        %933 = vmatprep.subr.mxu0 0.0
        %934 = vmatpush1.msra.mxu0 0.0
        %935 = vmatprep.subr.mxu0 0.0
        %936 = vmatpush1.msra.mxu0 0.0
        %937 = vmatprep.subr.mxu0 0.0
        %938 = vmatpush1.msra.mxu0 %v902
        %939 = vmatprep.subr.mxu0 0.0
        %940 = vmatpush2.msra.mxu0 0.0
        %941 = vmatprep.subr.mxu0 0.0
        %942 = vmatpush2.msra.mxu0 0.0
        %943 = vmatprep.subr.mxu0 0.0
        %944 = vmatpush2.msra.mxu0 0.0
        %945 = vmatprep.subr.mxu0 0.0
        %946 = vmatpush2.msra.mxu0 0.0
        %947 = vmatprep.subr.mxu0 0.0
        %948 = vmatpush2.msra.mxu0 0.0
        %949 = vmatprep.subr.mxu0 0.0
        %950 = vmatpush2.msra.mxu0 0.0
        %951 = vmatprep.subr.mxu0 0.0
        %952 = vmatpush2.msra.mxu0 0.0
        %953 = vmatprep.subr.mxu0 0.0
        %954 = vmatpush2.msra.mxu0 0.0
        %955 = vmatprep.subr.mxu0 0.0
        %956 = vmatpush2.msra.mxu0 0.0
        %957 = vmatprep.subr.mxu0 0.0
        %958 = vmatpush2.msra.mxu0 0.0
        %959 = vmatprep.subr.mxu0 0.0
        %960 = vmatpush2.msra.mxu0 0.0
        %961 = vmatprep.subr.mxu0 0.0
        %962 = vmatpush2.msra.mxu0 0.0
        %963 = vmatprep.subr.mxu0 0.0
        %964 = vmatpush2.msra.mxu0 0.0
        %965 = vmatprep.subr.mxu0 0.0
        %966 = vmatpush2.msra.mxu0 0.0
        %967 = vmatprep.subr.mxu0 0.0
        %968 = vmatpush2.msra.mxu0 0.0
        %969 = vmatprep.subr.mxu0 0.0
        %970 = vmatpush2.msra.mxu0 0.0
        %971 = vmatprep.mubr.f32.mxu0 0.0
        %972 = vmatmul.mubr.f32.gmra.mxu0 %v905
        %v973 = vpop.f32.mrf.mxu0
        %v974 = vadd.f32 0.0, %v973
        %v975 = vpop.f32.mrf.mxu0
        %976 = vdwg.mxu0
        %977 = vrot.lane.b32.xlu0 %v461, 104
        %v978 = vpop.permute.xlu0 %977
        %979 = vrot.lane.b32.xlu0 %v461, 72
        %v980 = vpop.permute.xlu0 %979
        %v981 = vsel %vm482, %v978, 0
        %v983 = vsel %vm482, %v980, 0
        %985 = vmatprep.subr.mxu0 0.0
        %986 = vmatpush1.xpose.msra.mxu0 0.0
        %987 = vmatprep.subr.mxu0 0.0
        %988 = vmatpush1.xpose.msra.mxu0 0.0
        %989 = vmatprep.subr.mxu0 0.0
        %990 = vmatpush1.xpose.msra.mxu0 0.0
        %991 = vmatprep.subr.mxu0 0.0
        %992 = vmatpush1.xpose.msra.mxu0 0.0
        %993 = vmatprep.subr.mxu0 0.0
        %994 = vmatpush1.xpose.msra.mxu0 0.0
        %995 = vmatprep.subr.mxu0 0.0
        %996 = vmatpush1.xpose.msra.mxu0 0.0
        %997 = vmatprep.subr.mxu0 0.0
        %998 = vmatpush1.xpose.msra.mxu0 0.0
        %999 = vmatprep.subr.mxu0 0.0
        %1000 = vmatpush1.xpose.msra.mxu0 0.0
        %1001 = vmatprep.subr.mxu0 0.0
        %1002 = vmatpush1.xpose.msra.mxu0 0.0
        %1003 = vmatprep.subr.mxu0 0.0
        %1004 = vmatpush1.xpose.msra.mxu0 0.0
        %1005 = vmatprep.subr.mxu0 0.0
        %1006 = vmatpush1.xpose.msra.mxu0 0.0
        %1007 = vmatprep.subr.mxu0 0.0
        %1008 = vmatpush1.xpose.msra.mxu0 0.0
        %1009 = vmatprep.subr.mxu0 0.0
        %1010 = vmatpush1.xpose.msra.mxu0 0.0
        %1011 = vmatprep.subr.mxu0 0.0
        %1012 = vmatpush1.xpose.msra.mxu0 0.0
        %1013 = vmatprep.subr.mxu0 0.0
        %1014 = vmatpush1.xpose.msra.mxu0 0.0
        %1015 = vmatprep.subr.mxu0 0.0
        %1016 = vmatpush1.xpose.msra.mxu0 %v983
        %1017 = vmatprep.subr.mxu0 0.0
        %1018 = vmatpush2.xpose.msra.mxu0 0.0
        %1019 = vmatprep.subr.mxu0 0.0
        %1020 = vmatpush2.xpose.msra.mxu0 0.0
        %1021 = vmatprep.subr.mxu0 0.0
        %1022 = vmatpush2.xpose.msra.mxu0 0.0
        %1023 = vmatprep.subr.mxu0 0.0
        %1024 = vmatpush2.xpose.msra.mxu0 0.0
        %1025 = vmatprep.subr.mxu0 0.0
        %1026 = vmatpush2.xpose.msra.mxu0 0.0
        %1027 = vmatprep.subr.mxu0 0.0
        %1028 = vmatpush2.xpose.msra.mxu0 0.0
        %1029 = vmatprep.subr.mxu0 0.0
        %1030 = vmatpush2.xpose.msra.mxu0 0.0
        %1031 = vmatprep.subr.mxu0 0.0
        %1032 = vmatpush2.xpose.msra.mxu0 0.0
        %1033 = vmatprep.subr.mxu0 0.0
        %1034 = vmatpush2.xpose.msra.mxu0 0.0
        %1035 = vmatprep.subr.mxu0 0.0
        %1036 = vmatpush2.xpose.msra.mxu0 0.0
        %1037 = vmatprep.subr.mxu0 0.0
        %1038 = vmatpush2.xpose.msra.mxu0 0.0
        %1039 = vmatprep.subr.mxu0 0.0
        %1040 = vmatpush2.xpose.msra.mxu0 0.0
        %1041 = vmatprep.subr.mxu0 0.0
        %1042 = vmatpush2.xpose.msra.mxu0 0.0
        %1043 = vmatprep.subr.mxu0 0.0
        %1044 = vmatpush2.xpose.msra.mxu0 0.0
        %1045 = vmatprep.subr.mxu0 0.0
        %1046 = vmatpush2.xpose.msra.mxu0 0.0
        %1047 = vmatprep.subr.mxu0 0.0
        %1048 = vmatpush2.xpose.msra.mxu0 0.0
        %1049 = vmatprep.mubr.f32.mxu0 0.0
        %1050 = vmatmul.mubr.f32.gmra.mxu0 %v981
        %v1051 = vpop.f32.mrf.mxu0
        %v1052 = vadd.f32 0.0, %v1051
        %v1053 = vpop.f32.mrf.mxu0
        %1054 = vdwg.mxu0
        %v1055 = vsel %vm478, %v1052, -1e+30
        %v1056 = vsel %vm482, %v1055, -inf
        %1057 = vmax.xlane.f32.xlu0 %v1056
        %v1058 = vpop.xlane.xlu0 %1057
        %v1059 = vsub.f32 %v1055, %v1058
        %v1060 = vmul.f32 %v1059, 1.442695
        %v1061 = vpow.pop %v1060
        %v1062 = vsel %vm482, %v1061, 0.0
        %1063 = vadd.xlane.f32.xlu0 %v1062
        %v1064 = vpop.xlane.xlu0 %1063
        %v1065 = vrcp.pop %v1064
        %v1066 = vmul.f32 %v1061, %v1065
        %1067 = vrot.lane.b32.xlu0 %v461, 40
        %v1068 = vpop.permute.xlu0 %1067
        %v1071 = vsel %vm482, %v1066, 0
        %1073 = vmatprep.subr.mxu0 0.0
        %1074 = vmatpush1.msra.mxu0 0.0
        %1075 = vmatprep.subr.mxu0 0.0
        %1076 = vmatpush1.msra.mxu0 0.0
        %1077 = vmatprep.subr.mxu0 0.0
        %1078 = vmatpush1.msra.mxu0 0.0
        %1079 = vmatprep.subr.mxu0 0.0
        %1080 = vmatpush1.msra.mxu0 0.0
        %1081 = vmatprep.subr.mxu0 0.0
        %1082 = vmatpush1.msra.mxu0 0.0
        %1083 = vmatprep.subr.mxu0 0.0
        %1084 = vmatpush1.msra.mxu0 0.0
        %1085 = vmatprep.subr.mxu0 0.0
        %1086 = vmatpush1.msra.mxu0 0.0
        %1087 = vmatprep.subr.mxu0 0.0
        %1088 = vmatpush1.msra.mxu0 0.0
        %1089 = vmatprep.subr.mxu0 0.0
        %1090 = vmatpush1.msra.mxu0 0.0
        %1091 = vmatprep.subr.mxu0 0.0
        %1092 = vmatpush1.msra.mxu0 0.0
        %1093 = vmatprep.subr.mxu0 0.0
        %1094 = vmatpush1.msra.mxu0 0.0
        %1095 = vmatprep.subr.mxu0 0.0
        %1096 = vmatpush1.msra.mxu0 0.0
        %1097 = vmatprep.subr.mxu0 0.0
        %1098 = vmatpush1.msra.mxu0 0.0
        %1099 = vmatprep.subr.mxu0 0.0
        %1100 = vmatpush1.msra.mxu0 0.0
        %1101 = vmatprep.subr.mxu0 0.0
        %1102 = vmatpush1.msra.mxu0 0.0
        %1103 = vmatprep.subr.mxu0 0.0
        %1104 = vmatpush1.msra.mxu0 %v1068
        %1105 = vmatprep.subr.mxu0 0.0
        %1106 = vmatpush2.msra.mxu0 0.0
        %1107 = vmatprep.subr.mxu0 0.0
        %1108 = vmatpush2.msra.mxu0 0.0
        %1109 = vmatprep.subr.mxu0 0.0
        %1110 = vmatpush2.msra.mxu0 0.0
        %1111 = vmatprep.subr.mxu0 0.0
        %1112 = vmatpush2.msra.mxu0 0.0
        %1113 = vmatprep.subr.mxu0 0.0
        %1114 = vmatpush2.msra.mxu0 0.0
        %1115 = vmatprep.subr.mxu0 0.0
        %1116 = vmatpush2.msra.mxu0 0.0
        %1117 = vmatprep.subr.mxu0 0.0
        %1118 = vmatpush2.msra.mxu0 0.0
        %1119 = vmatprep.subr.mxu0 0.0
        %1120 = vmatpush2.msra.mxu0 0.0
        %1121 = vmatprep.subr.mxu0 0.0
        %1122 = vmatpush2.msra.mxu0 0.0
        %1123 = vmatprep.subr.mxu0 0.0
        %1124 = vmatpush2.msra.mxu0 0.0
        %1125 = vmatprep.subr.mxu0 0.0
        %1126 = vmatpush2.msra.mxu0 0.0
        %1127 = vmatprep.subr.mxu0 0.0
        %1128 = vmatpush2.msra.mxu0 0.0
        %1129 = vmatprep.subr.mxu0 0.0
        %1130 = vmatpush2.msra.mxu0 0.0
        %1131 = vmatprep.subr.mxu0 0.0
        %1132 = vmatpush2.msra.mxu0 0.0
        %1133 = vmatprep.subr.mxu0 0.0
        %1134 = vmatpush2.msra.mxu0 0.0
        %1135 = vmatprep.subr.mxu0 0.0
        %1136 = vmatpush2.msra.mxu0 0.0
        %1137 = vmatprep.mubr.f32.mxu0 0.0
        %1138 = vmatmul.mubr.f32.gmra.mxu0 %v1071
        %v1139 = vpop.f32.mrf.mxu0
        %v1140 = vadd.f32 0.0, %v1139
        %v1141 = vpop.f32.mrf.mxu0
        %1142 = vdwg.mxu0
        %1144 = vrot.lane.b32.xlu0 %v808, 8
        %v1145 = vpop.permute.xlu0 %1144
        %1148 = vrot.lane.b32.xlu0 %v974, 16
        %v1149 = vpop.permute.xlu0 %1148
        %1152 = vrot.lane.b32.xlu0 %v1140, 24
        %v1153 = vpop.permute.xlu0 %1152
        %v1155 = vsel %vm482, %v642, %v1145
        %vm1156 = vcmask 130048
        %v1157 = vsel %vm1156, %v1155, %v1149
        %vm1158 = vcmask 195584
        %v1159 = vsel %vm1158, %v1157, %v1153
        %v1160 = vld [vmem:[#allocation9] sm:$0xff]
        %v1161 = vld [vmem:[#allocation9 + $0x8] sm:$0xff]
        %v1162 = vld [vmem:[#allocation9 + $0x10] sm:$0xff]
        %v1163 = vld [vmem:[#allocation9 + $0x18] sm:$0xff]
        %v1165 = vsel %vm356, %v1159, 0
        %1167 = vmatprep.subr.mxu0 0.0
        %1168 = vmatpush1.msra.mxu0 0.0
        %1169 = vmatprep.subr.mxu0 0.0
        %1170 = vmatpush1.msra.mxu0 0.0
        %1171 = vmatprep.subr.mxu0 0.0
        %1172 = vmatpush1.msra.mxu0 0.0
        %1173 = vmatprep.subr.mxu0 0.0
        %1174 = vmatpush1.msra.mxu0 0.0
        %1175 = vmatprep.subr.mxu0 0.0
        %1176 = vmatpush1.msra.mxu0 0.0
        %1177 = vmatprep.subr.mxu0 0.0
        %1178 = vmatpush1.msra.mxu0 0.0
        %1179 = vmatprep.subr.mxu0 0.0
        %1180 = vmatpush1.msra.mxu0 0.0
        %1181 = vmatprep.subr.mxu0 0.0
        %1182 = vmatpush1.msra.mxu0 0.0
        %1183 = vmatprep.subr.mxu0 0.0
        %1184 = vmatpush1.msra.mxu0 0.0
        %1185 = vmatprep.subr.mxu0 0.0
        %1186 = vmatpush1.msra.mxu0 0.0
        %1187 = vmatprep.subr.mxu0 0.0
        %1188 = vmatpush1.msra.mxu0 0.0
        %1189 = vmatprep.subr.mxu0 0.0
        %1190 = vmatpush1.msra.mxu0 0.0
        %1191 = vmatprep.subr.mxu0 0.0
        %1192 = vmatpush1.msra.mxu0 %v1163
        %1193 = vmatprep.subr.mxu0 0.0
        %1194 = vmatpush1.msra.mxu0 %v1162
        %1195 = vmatprep.subr.mxu0 0.0
        %1196 = vmatpush1.msra.mxu0 %v1161
        %1197 = vmatprep.subr.mxu0 0.0
        %1198 = vmatpush1.msra.mxu0 %v1160
        %1199 = vmatprep.subr.mxu0 0.0
        %1200 = vmatpush2.msra.mxu0 0.0
        %1201 = vmatprep.subr.mxu0 0.0
        %1202 = vmatpush2.msra.mxu0 0.0
        %1203 = vmatprep.subr.mxu0 0.0
        %1204 = vmatpush2.msra.mxu0 0.0
        %1205 = vmatprep.subr.mxu0 0.0
        %1206 = vmatpush2.msra.mxu0 0.0
        %1207 = vmatprep.subr.mxu0 0.0
        %1208 = vmatpush2.msra.mxu0 0.0
        %1209 = vmatprep.subr.mxu0 0.0
        %1210 = vmatpush2.msra.mxu0 0.0
        %1211 = vmatprep.subr.mxu0 0.0
        %1212 = vmatpush2.msra.mxu0 0.0
        %1213 = vmatprep.subr.mxu0 0.0
        %1214 = vmatpush2.msra.mxu0 0.0
        %1215 = vmatprep.subr.mxu0 0.0
        %1216 = vmatpush2.msra.mxu0 0.0
        %1217 = vmatprep.subr.mxu0 0.0
        %1218 = vmatpush2.msra.mxu0 0.0
        %1219 = vmatprep.subr.mxu0 0.0
        %1220 = vmatpush2.msra.mxu0 0.0
        %1221 = vmatprep.subr.mxu0 0.0
        %1222 = vmatpush2.msra.mxu0 0.0
        %1223 = vmatprep.subr.mxu0 0.0
        %1224 = vmatpush2.msra.mxu0 0.0
        %1225 = vmatprep.subr.mxu0 0.0
        %1226 = vmatpush2.msra.mxu0 0.0
        %1227 = vmatprep.subr.mxu0 0.0
        %1228 = vmatpush2.msra.mxu0 0.0
        %1229 = vmatprep.subr.mxu0 0.0
        %1230 = vmatpush2.msra.mxu0 0.0
        %1231 = vmatprep.mubr.f32.mxu0 0.0
        %1232 = vmatmul.mubr.f32.gmra.mxu0 %v1165
        %v1233 = vpop.f32.mrf.mxu0
        %v1234 = vadd.f32 0.0, %v1233
        %v1235 = vpop.f32.mrf.mxu0
        %1236 = vdwg.mxu0
        %v1237 = vsel %vm473, %v1234, 0.0
        %v1238 = vadd.f32 %v355, %v1237
        %v1239 = vld [vmem:[%s4] sm:$0x1]
        %v1241 = vlaneseq
        %v1242 = vshrl.u32 %v1241, 7
        %v1243 = vsub.s32 0, %v1242
        %v1244 = vrot.slane %v1239, %v1243
        %v1246 = vadd.f32 %v1238, %v1244
        %v1247 = vsel %vm356, %v1246, 0.0
        %1248 = vadd.xlane.f32.xlu0 %v1247
        %v1249 = vpop.xlane.xlu0 %1248
        %v1250 = vmul.f32 %v1249, %v360
        %v1251 = vsub.f32 %v1246, %v1250
        %v1252 = vmul.f32 %v1251, %v1251
        %v1253 = vsel %vm356, %v1252, 0.0
        %1254 = vadd.xlane.f32.xlu0 %v1253
        %v1255 = vpop.xlane.xlu0 %1254
        %v1256 = vmul.f32 %v1255, %v360
        %v1257 = vadd.f32 %v1256, 1e-05
        %v1258 = vrsqrt.pop %v1257
        %v1259 = vmul.f32 %v1251, %v1258
        %v1260 = vld [vmem:[%s7] sm:$0x1]
        %v1262 = vlaneseq
        %v1263 = vshrl.u32 %v1262, 7
        %v1264 = vsub.s32 0, %v1263
        %v1265 = vrot.slane %v1260, %v1264
        %v1267 = vmul.f32 %v1259, %v1265
        %v1268 = vld [vmem:[%s8] sm:$0x1]
        %v1270 = vlaneseq
        %v1271 = vshrl.u32 %v1270, 7
        %v1272 = vsub.s32 0, %v1271
        %v1273 = vrot.slane %v1268, %v1272
        %v1275 = vadd.f32 %v1267, %v1273
        %v1276 = vmax.f32 %v1275, 0.0
        %v1277 = vadd.f32 %v1246, %v1276
        %1278 = vst.msk [vmem:[%s354] sm:$0xff] %vm356, %v1277
        %s1279 = sand.u32 %s212, 1
        %s1280 = scalar_lea.sflag [#allocation6], %s1279
        %s1281 = sand.u32 %s212, 1
        %s1282 = smul.addr %s1281, 8
        %s1283 = scalar_lea.vmem [#allocation10], %s1282
        // Predicated region
        $region65: #{tpu_custom_call.1} parent=51 // pred_check
          %p1284 = pneg %p222
        $region66: #{tpu_custom_call.1} parent=51 // pred_check_branch
          %1286 = sbr.rel (%p1284) target = $region68
        $region67: #{tpu_custom_call.1} parent=51 // pred_region
          %s1288 = ssub.s32 128, 128
          %1289 = vsyncadd %s1280, %s1288
          %s1290 = smul.addr %s31, 128
          %s1291 = scalar_lea.hbm %s9, %s1290
          %s1293 = sshll.u32 %s1283, 4
          %s1294 = int_to_ptr.vmem [resolvable:$true] %s1293
          %1296 = dma.vmem_to_hbm [thread:$0]  %s1294, 128, %s1291, %s1280
        $region68: #{tpu_custom_call.1} parent=51 // pred_fallthru
          _
      $region52: #{tpu_custom_call.1} parent=5 // pred_fallthru
        _
      %p1297 = scmp.le.s32.totalorder 2, %s26
      // Predicated region
      $region69: #{tpu_custom_call.1} parent=5 // pred_check
        %p1298 = pneg %p1297
      $region70: #{tpu_custom_call.1} parent=5 // pred_check_branch
        %1300 = sbr.rel (%p1298) target = $region72
      $region71: #{tpu_custom_call.1} parent=5 // pred_region
        %s1301 = ssub.s32 %s26, 2
        // Predicated region
        $region73: #{tpu_custom_call.1} parent=71 // pred_check
          %p1302 = pneg %p228
        $region74: #{tpu_custom_call.1} parent=71 // pred_check_branch
          %1304 = sbr.rel (%p1302) target = $region76
        $region75: #{tpu_custom_call.1} parent=71 // pred_region
          %s1305 = sand.u32 %s213, 1
          %s1306 = scalar_lea.sflag [#allocation6], %s1305
          %s1307 = sand.u32 %s213, 1
          %s1308 = smul.addr %s1307, 8
          %s1309 = scalar_lea.vmem [#allocation10], %s1308
          %1310 = dma.done %s1306, 128
        $region76: #{tpu_custom_call.1} parent=71 // pred_fallthru
          _
      $region72: #{tpu_custom_call.1} parent=5 // pred_fallthru
        _
    $region6: #{tpu_custom_call.1} parent=1 // loop_footer
      %s30 = sadd.s32 1, %s26
    $region7: #{tpu_custom_call.1} parent=1 // loop_footer_branch
      %25 = sbr.rel target = $region3
    $region8: #{tpu_custom_call.1} parent=1 // loop_exit
      _
    %1311 = vsyncpa [#allocation5], 1
    %s1312 = scalar_lea.sflag [#allocation5], 1
    %1313 = vsyncpa %s1312, 1
    %1314 = vsyncpa [#allocation8], 1
    %1315 = vsyncpa [#allocation6], 1
    %s1316 = scalar_lea.sflag [#allocation6], 1
    %1317 = vsyncpa %s1316, 1

// kernel: tpu_custom_call.1
$region0: #{tpu_custom_call.1}
  #allocation0 [shape = 'u32[]', space=smem, size = 0x4, offset = 0x4, fixed_abs, tag = 'smem constant byte address 0x4 - core index']
  #allocation1 [shape = 'u32[144,128]{1,0:T(1,128)}', space=vmem, size = 0x12000, scoped, tag = 'internal scratch']
  #allocation2 [shape = 's32[1]{0}', space=sflag, size = 0x4, scoped, tag = 'scoped memory for tpu_custom_call.1']
  #allocation3 [shape = 'u8[512]{0}', space=smem, size = 0x200, scoped, tag = 'prefetched SMEM operand 0']
  %s0 = inlined_call_operand.hbm [shape: s32[2], index: 0, kind: input, shape index: {}]
  %s1 = inlined_call_operand.hbm [shape: f32[2,8,32], index: 1, kind: input, shape index: {}]
  %s2 = inlined_call_operand.hbm [shape: f32[32,96], index: 2, kind: input, shape index: {}]
  %s3 = inlined_call_operand.hbm [shape: f32[32,32], index: 3, kind: input, shape index: {}]
  %s4 = inlined_call_operand.vmem [shape: f32[1,32], index: 4, kind: input, shape index: {}]
  %s5 = inlined_call_operand.vmem [shape: f32[1,32], index: 5, kind: input, shape index: {}]
  %s6 = inlined_call_operand.vmem [shape: f32[1,32], index: 6, kind: input, shape index: {}]
  %s7 = inlined_call_operand.vmem [shape: f32[1,32], index: 7, kind: input, shape index: {}]
  %s8 = inlined_call_operand.vmem [shape: f32[1,32], index: 8, kind: input, shape index: {}]
  %s9 = inlined_call_operand.hbm [shape: f32[2,8,32], index: 9, kind: output, shape index: {}]
  %s10 = sld [smem:[#allocation0]]
  $region77: #{tpu_custom_call.1} parent=0
    _
  %s12 = ssub.s32 1, %s10
  %s13 = scalar_select 0, %s12, %s10
  %15 = dma.hbm_to_smem %s0, 16, [#allocation3], [#allocation2]
  %16 = dma.done [#allocation2], 16
  %17 = sfence
  $region1: #{tpu_custom_call.1} parent=0
    #allocation4 [shape = 'u8[8192]{0}', space=vmem, size = 0x2000, scoped, tag = 'input window, operand 1']
    #allocation5 [shape = 's32[2]{0}', space=sflag, size = 0x8, scoped, tag = 'scoped memory for tpu_custom_call.1']
    #allocation6 [shape = 's32[2]{0}', space=sflag, size = 0x8, scoped, tag = 'scoped memory for tpu_custom_call.1']
    #allocation7 [shape = 'u8[16384]{0}', space=vmem, size = 0x4000, scoped, tag = 'input window, operand 2, single buffered']
    #allocation8 [shape = 's32[1]{0}', space=sflag, size = 0x4, scoped, tag = 'scoped memory for tpu_custom_call.1']
    #allocation9 [shape = 'u8[16384]{0}', space=vmem, size = 0x4000, scoped, tag = 'input window, operand 3, single buffered']
    #allocation10 [shape = 'u8[8192]{0}', space=vmem, size = 0x2000, scoped, tag = 'output window, operand 0']
    %18 = vsyncpa [#allocation5], 0
    %s19 = scalar_lea.sflag [#allocation5], 1
    %20 = vsyncpa %s19, 0
    %21 = vsyncpa [#allocation8], 0
    %22 = vsyncpa [#allocation6], 0
    %s23 = scalar_lea.sflag [#allocation6], 1
    %24 = vsyncpa %s23, 0
    loop: start=0, step=1, limit=4
    $region2: #{tpu_custom_call.1} parent=1 // loop_pre_header
      _
    $region3: #{tpu_custom_call.1} parent=1 // loop_header
      %s26 = sphi 0, %s30
      %p27 = scmp.ge.s32.totalorder %s26, 4
      %s36 = sphi 0, %s38
      %s39 = sphi 0, %s36
      %s40 = sphi 0, %s39
      %s56 = sphi 0, %s40
      %s60 = sphi 0, %s60
      %s62 = sphi 0, %s60
      %s63 = sphi 0, %s62
      %s77 = sphi 0, %s63
      %s81 = sphi 0, %s81
      %s83 = sphi 0, %s81
      %s84 = sphi 0, %s83
      %s98 = sphi 0, %s84
      %s102 = sphi 0, %s102
      %s104 = sphi 0, %s102
      %s105 = sphi 0, %s104
      %s119 = sphi 0, %s105
      %s123 = sphi 0, %s123
      %s125 = sphi 0, %s123
      %s126 = sphi 0, %s125
      %s140 = sphi 0, %s126
      %s144 = sphi 0, %s144
      %s146 = sphi 0, %s144
      %s147 = sphi 0, %s146
      %s161 = sphi 0, %s147
      %s165 = sphi 0, %s165
      %s167 = sphi 0, %s165
      %s168 = sphi 0, %s167
      %s182 = sphi 0, %s168
      %s186 = sphi 0, %s186
      %s188 = sphi 0, %s186
      %s189 = sphi 0, %s188
      %s203 = sphi 0, %s189
      %s209 = sphi 0, %s211
      %s212 = sphi 0, %s209
      %s213 = sphi 0, %s212
      %s229 = sphi 0, %s213
    $region4: #{tpu_custom_call.1} parent=1 // loop_header_branch
      %29 = sbr.rel (%p27) target = $region8
    $region5: #{tpu_custom_call.1} parent=1 // loop_body
      %s31 = ssub.s32 %s26, 1
      %s32 = ssub.s32 %s26, 2
      %s33 = sadd.s32 %s26, 1
      %s34 = ssub.s32 %s26, %s33
      %p35 = scmp.eq.s32.totalorder %s34, 0
      %s37 = sadd.s32 %s36, 1
      %s38 = scalar_select %p35, %s36, %s37
      %p41 = pneg %p35
      %p42 = scmp.eq.s32.totalorder %s26, 1
      %p43 = por %p41, %p42
      %p44 = scmp.ne.s32.totalorder %s36, %s39
      %p45 = scmp.eq.s32.totalorder %s26, 0
      %p46 = por %p44, %p45
      %p47 = scmp.ne.s32.totalorder %s36, %s39
      %p48 = scmp.eq.s32.totalorder %s31, 1
      %p49 = por %p47, %p48
      %p50 = scmp.ne.s32.totalorder %s39, %s40
      %p51 = scmp.eq.s32.totalorder %s31, 0
      %p52 = por %p50, %p51
      %p53 = scmp.ne.s32.totalorder %s39, %s40
      %p54 = scmp.eq.s32.totalorder %s32, 1
      %p55 = por %p53, %p54
      %p57 = scmp.ne.s32.totalorder %s40, %s56
      %p58 = scmp.eq.s32.totalorder %s32, 0
      %p59 = por %p57, %p58
      %s61 = sadd.s32 %s60, 1
      %p64 = scmp.eq.s32.totalorder %s26, 1
      %p65 = scmp.ne.s32.totalorder %s60, %s62
      %p66 = scmp.eq.s32.totalorder %s26, 0
      %p67 = por %p65, %p66
      %p68 = scmp.ne.s32.totalorder %s60, %s62
      %p69 = scmp.eq.s32.totalorder %s31, 1
      %p70 = por %p68, %p69
      %p71 = scmp.ne.s32.totalorder %s62, %s63
      %p72 = scmp.eq.s32.totalorder %s31, 0
      %p73 = por %p71, %p72
      %p74 = scmp.ne.s32.totalorder %s62, %s63
      %p75 = scmp.eq.s32.totalorder %s32, 1
      %p76 = por %p74, %p75
      %p78 = scmp.ne.s32.totalorder %s63, %s77
      %p79 = scmp.eq.s32.totalorder %s32, 0
      %p80 = por %p78, %p79
      %s82 = sadd.s32 %s81, 1
      %p85 = scmp.eq.s32.totalorder %s26, 1
      %p86 = scmp.ne.s32.totalorder %s81, %s83
      %p87 = scmp.eq.s32.totalorder %s26, 0
      %p88 = por %p86, %p87
      %p89 = scmp.ne.s32.totalorder %s81, %s83
      %p90 = scmp.eq.s32.totalorder %s31, 1
      %p91 = por %p89, %p90
      %p92 = scmp.ne.s32.totalorder %s83, %s84
      %p93 = scmp.eq.s32.totalorder %s31, 0
      %p94 = por %p92, %p93
      %p95 = scmp.ne.s32.totalorder %s83, %s84
      %p96 = scmp.eq.s32.totalorder %s32, 1
      %p97 = por %p95, %p96
      %p99 = scmp.ne.s32.totalorder %s84, %s98
      %p100 = scmp.eq.s32.totalorder %s32, 0
      %p101 = por %p99, %p100
      %s103 = sadd.s32 %s102, 1
      %p106 = scmp.eq.s32.totalorder %s26, 1
      %p107 = scmp.ne.s32.totalorder %s102, %s104
      %p108 = scmp.eq.s32.totalorder %s26, 0
      %p109 = por %p107, %p108
      %p110 = scmp.ne.s32.totalorder %s102, %s104
      %p111 = scmp.eq.s32.totalorder %s31, 1
      %p112 = por %p110, %p111
      %p113 = scmp.ne.s32.totalorder %s104, %s105
      %p114 = scmp.eq.s32.totalorder %s31, 0
      %p115 = por %p113, %p114
      %p116 = scmp.ne.s32.totalorder %s104, %s105
      %p117 = scmp.eq.s32.totalorder %s32, 1
      %p118 = por %p116, %p117
      %p120 = scmp.ne.s32.totalorder %s105, %s119
      %p121 = scmp.eq.s32.totalorder %s32, 0
      %p122 = por %p120, %p121
      %s124 = sadd.s32 %s123, 1
      %p127 = scmp.eq.s32.totalorder %s26, 1
      %p128 = scmp.ne.s32.totalorder %s123, %s125
      %p129 = scmp.eq.s32.totalorder %s26, 0
      %p130 = por %p128, %p129
      %p131 = scmp.ne.s32.totalorder %s123, %s125
      %p132 = scmp.eq.s32.totalorder %s31, 1
      %p133 = por %p131, %p132
      %p134 = scmp.ne.s32.totalorder %s125, %s126
      %p135 = scmp.eq.s32.totalorder %s31, 0
      %p136 = por %p134, %p135
      %p137 = scmp.ne.s32.totalorder %s125, %s126
      %p138 = scmp.eq.s32.totalorder %s32, 1
      %p139 = por %p137, %p138
      %p141 = scmp.ne.s32.totalorder %s126, %s140
      %p142 = scmp.eq.s32.totalorder %s32, 0
      %p143 = por %p141, %p142
      %s145 = sadd.s32 %s144, 1
      %p148 = scmp.eq.s32.totalorder %s26, 1
      %p149 = scmp.ne.s32.totalorder %s144, %s146
      %p150 = scmp.eq.s32.totalorder %s26, 0
      %p151 = por %p149, %p150
      %p152 = scmp.ne.s32.totalorder %s144, %s146
      %p153 = scmp.eq.s32.totalorder %s31, 1
      %p154 = por %p152, %p153
      %p155 = scmp.ne.s32.totalorder %s146, %s147
      %p156 = scmp.eq.s32.totalorder %s31, 0
      %p157 = por %p155, %p156
      %p158 = scmp.ne.s32.totalorder %s146, %s147
      %p159 = scmp.eq.s32.totalorder %s32, 1
      %p160 = por %p158, %p159
      %p162 = scmp.ne.s32.totalorder %s147, %s161
      %p163 = scmp.eq.s32.totalorder %s32, 0
      %p164 = por %p162, %p163
      %s166 = sadd.s32 %s165, 1
      %p169 = scmp.eq.s32.totalorder %s26, 1
      %p170 = scmp.ne.s32.totalorder %s165, %s167
      %p171 = scmp.eq.s32.totalorder %s26, 0
      %p172 = por %p170, %p171
      %p173 = scmp.ne.s32.totalorder %s165, %s167
      %p174 = scmp.eq.s32.totalorder %s31, 1
      %p175 = por %p173, %p174
      %p176 = scmp.ne.s32.totalorder %s167, %s168
      %p177 = scmp.eq.s32.totalorder %s31, 0
      %p178 = por %p176, %p177
      %p179 = scmp.ne.s32.totalorder %s167, %s168
      %p180 = scmp.eq.s32.totalorder %s32, 1
      %p181 = por %p179, %p180
      %p183 = scmp.ne.s32.totalorder %s168, %s182
      %p184 = scmp.eq.s32.totalorder %s32, 0
      %p185 = por %p183, %p184
      %s187 = sadd.s32 %s186, 1
      %p190 = scmp.eq.s32.totalorder %s26, 1
      %p191 = scmp.ne.s32.totalorder %s186, %s188
      %p192 = scmp.eq.s32.totalorder %s26, 0
      %p193 = por %p191, %p192
      %p194 = scmp.ne.s32.totalorder %s186, %s188
      %p195 = scmp.eq.s32.totalorder %s31, 1
      %p196 = por %p194, %p195
      %p197 = scmp.ne.s32.totalorder %s188, %s189
      %p198 = scmp.eq.s32.totalorder %s31, 0
      %p199 = por %p197, %p198
      %p200 = scmp.ne.s32.totalorder %s188, %s189
      %p201 = scmp.eq.s32.totalorder %s32, 1
      %p202 = por %p200, %p201
      %p204 = scmp.ne.s32.totalorder %s189, %s203
      %p205 = scmp.eq.s32.totalorder %s32, 0
      %p206 = por %p204, %p205
      %s207 = ssub.s32 %s26, %s33
      %p208 = scmp.eq.s32.totalorder %s207, 0
      %s210 = sadd.s32 %s209, 1
      %s211 = scalar_select %p208, %s209, %s210
      %p214 = pneg %p208
      %p215 = scmp.eq.s32.totalorder %s26, 1
      %p216 = por %p214, %p215
      %p217 = scmp.ne.s32.totalorder %s209, %s212
      %p218 = scmp.eq.s32.totalorder %s26, 0
      %p219 = por %p217, %p218
      %p220 = scmp.ne.s32.totalorder %s209, %s212
      %p221 = scmp.eq.s32.totalorder %s31, 1
      %p222 = por %p220, %p221
      %p223 = scmp.ne.s32.totalorder %s212, %s213
      %p224 = scmp.eq.s32.totalorder %s31, 0
      %p225 = por %p223, %p224
      %p226 = scmp.ne.s32.totalorder %s212, %s213
      %p227 = scmp.eq.s32.totalorder %s32, 1
      %p228 = por %p226, %p227
      %p230 = scmp.ne.s32.totalorder %s213, %s229
      %p231 = scmp.eq.s32.totalorder %s32, 0
      %p232 = por %p230, %p231
      %p233 = scmp.le.s32.totalorder 1, %s26
      %p234 = scmp.lt.s32.totalorder %s26, 3
      %p235 = pnand %p233, %p234
      %p236 = pneg %p235
      // Predicated region
      $region9: #{tpu_custom_call.1} parent=5 // pred_check
        _
      $region10: #{tpu_custom_call.1} parent=5 // pred_check_branch
        %238 = sbr.rel (%p235) target = $region12
      $region11: #{tpu_custom_call.1} parent=5 // pred_region
        %s239 = ssub.s32 %s26, 1
        // Predicated region
        $region13: #{tpu_custom_call.1} parent=11 // pred_check
          %p240 = pneg %p73
        $region14: #{tpu_custom_call.1} parent=11 // pred_check_branch
          %242 = sbr.rel (%p240) target = $region16
        $region15: #{tpu_custom_call.1} parent=11 // pred_region
          %s244 = ssub.s32 512, 512
          %245 = vsyncadd [#allocation8], %s244
          %s246 = sshll.u32 [#allocation7], 4
          %s247 = int_to_ptr.vmem [resolvable:$true] %s246
          %252 = dma.hbm_to_vmem [thread:$0]  %s2, 512, %s247, [#allocation8], 128, 128, 8
        $region16: #{tpu_custom_call.1} parent=11 // pred_fallthru
          _
        // Predicated region
        $region17: #{tpu_custom_call.1} parent=11 // pred_check
          %p253 = pneg %p94
        $region18: #{tpu_custom_call.1} parent=11 // pred_check_branch
          %255 = sbr.rel (%p253) target = $region20
        $region19: #{tpu_custom_call.1} parent=11 // pred_region
          %s257 = ssub.s32 512, 512
          %258 = vsyncadd [#allocation8], %s257
          %s259 = sshll.u32 [#allocation9], 4
          %s260 = int_to_ptr.vmem [resolvable:$true] %s259
          %265 = dma.hbm_to_vmem [thread:$0]  %s3, 512, %s260, [#allocation8], 128, 128, 8
        $region20: #{tpu_custom_call.1} parent=11 // pred_fallthru
          _
        // Predicated region
        $region21: #{tpu_custom_call.1} parent=11 // pred_check
          %p266 = pneg %p115
        $region22: #{tpu_custom_call.1} parent=11 // pred_check_branch
          %268 = sbr.rel (%p266) target = $region24
        $region23: #{tpu_custom_call.1} parent=11 // pred_region
          _
        $region24: #{tpu_custom_call.1} parent=11 // pred_fallthru
          _
        // Predicated region
        $region25: #{tpu_custom_call.1} parent=11 // pred_check
          %p269 = pneg %p136
        $region26: #{tpu_custom_call.1} parent=11 // pred_check_branch
          %271 = sbr.rel (%p269) target = $region28
        $region27: #{tpu_custom_call.1} parent=11 // pred_region
          _
        $region28: #{tpu_custom_call.1} parent=11 // pred_fallthru
          _
        // Predicated region
        $region29: #{tpu_custom_call.1} parent=11 // pred_check
          %p272 = pneg %p157
        $region30: #{tpu_custom_call.1} parent=11 // pred_check_branch
          %274 = sbr.rel (%p272) target = $region32
        $region31: #{tpu_custom_call.1} parent=11 // pred_region
          _
        $region32: #{tpu_custom_call.1} parent=11 // pred_fallthru
          _
        // Predicated region
        $region33: #{tpu_custom_call.1} parent=11 // pred_check
          %p275 = pneg %p178
        $region34: #{tpu_custom_call.1} parent=11 // pred_check_branch
          %277 = sbr.rel (%p275) target = $region36
        $region35: #{tpu_custom_call.1} parent=11 // pred_region
          _
        $region36: #{tpu_custom_call.1} parent=11 // pred_fallthru
          _
        // Predicated region
        $region37: #{tpu_custom_call.1} parent=11 // pred_check
          %p278 = pneg %p199
        $region38: #{tpu_custom_call.1} parent=11 // pred_check_branch
          %280 = sbr.rel (%p278) target = $region40
        $region39: #{tpu_custom_call.1} parent=11 // pred_region
          _
        $region40: #{tpu_custom_call.1} parent=11 // pred_fallthru
          _
      $region12: #{tpu_custom_call.1} parent=5 // pred_fallthru
        _
      %p281 = scmp.lt.s32.totalorder %s26, 2
      // Predicated region
      $region41: #{tpu_custom_call.1} parent=5 // pred_check
        %p282 = pneg %p281
      $region42: #{tpu_custom_call.1} parent=5 // pred_check_branch
        %284 = sbr.rel (%p282) target = $region44
      $region43: #{tpu_custom_call.1} parent=5 // pred_region
        // Predicated region
        $region45: #{tpu_custom_call.1} parent=43 // pred_check
          %p285 = pneg %p46
        $region46: #{tpu_custom_call.1} parent=43 // pred_check_branch
          %287 = sbr.rel (%p285) target = $region48
        $region47: #{tpu_custom_call.1} parent=43 // pred_region
          %s288 = sand.u32 %s36, 1
          %s289 = scalar_lea.sflag [#allocation5], %s288
          %s290 = sand.u32 %s36, 1
          %s291 = smul.addr %s290, 8
          %s292 = scalar_lea.vmem [#allocation4], %s291
          %s294 = ssub.s32 128, 128
          %295 = vsyncadd %s289, %s294
          %s296 = smul.addr %s26, 128
          %s297 = scalar_lea.hbm %s1, %s296
          %s299 = sshll.u32 %s292, 4
          %s300 = int_to_ptr.vmem [resolvable:$true] %s299
          %302 = dma.hbm_to_vmem [thread:$0]  %s297, 128, %s300, %s289
        $region48: #{tpu_custom_call.1} parent=43 // pred_fallthru
          _
      $region44: #{tpu_custom_call.1} parent=5 // pred_fallthru
        _
      %p303 = scmp.le.s32.totalorder 1, %s26
      %p304 = scmp.lt.s32.totalorder %s26, 3
      %p305 = pnand %p303, %p304
      %p306 = pneg %p305
      // Predicated region
      $region49: #{tpu_custom_call.1} parent=5 // pred_check
        _
      $region50: #{tpu_custom_call.1} parent=5 // pred_check_branch
        %308 = sbr.rel (%p305) target = $region52
      $region51: #{tpu_custom_call.1} parent=5 // pred_region
        %s309 = ssub.s32 %s26, 1
        %s310 = sand.u32 %s39, 1
        %s311 = scalar_lea.sflag [#allocation5], %s310
        %s312 = sand.u32 %s39, 1
        %s313 = smul.addr %s312, 8
        %s314 = scalar_lea.vmem [#allocation4], %s313
        // Predicated region
        $region53: #{tpu_custom_call.1} parent=51 // pred_check
          %p315 = pneg %p52
        $region54: #{tpu_custom_call.1} parent=51 // pred_check_branch
          %317 = sbr.rel (%p315) target = $region56
        $region55: #{tpu_custom_call.1} parent=51 // pred_region
          %318 = dma.done %s311, 128
        $region56: #{tpu_custom_call.1} parent=51 // pred_fallthru
          _
        // Predicated region
        $region57: #{tpu_custom_call.1} parent=51 // pred_check
          %p319 = pneg %p73
        $region58: #{tpu_custom_call.1} parent=51 // pred_check_branch
          %321 = sbr.rel (%p319) target = $region60
        $region59: #{tpu_custom_call.1} parent=51 // pred_region
          %322 = dma.done [#allocation8], 512
        $region60: #{tpu_custom_call.1} parent=51 // pred_fallthru
          _
        // Predicated region
        $region61: #{tpu_custom_call.1} parent=51 // pred_check
          %p323 = pneg %p94
        $region62: #{tpu_custom_call.1} parent=51 // pred_check_branch
          %325 = sbr.rel (%p323) target = $region64
        $region63: #{tpu_custom_call.1} parent=51 // pred_region
          %326 = dma.done [#allocation8], 512
        $region64: #{tpu_custom_call.1} parent=51 // pred_fallthru
          _
        %s327 = sand.u32 %s39, 1
        %s328 = scalar_lea.sflag [#allocation5], %s327
        %s329 = sand.u32 %s39, 1
        %s330 = smul.addr %s329, 8
        %s331 = scalar_lea.vmem [#allocation4], %s330
        %p332 = pneg %p52
        %p333 = pneg %p49
        %p334 = pneg %p73
        %p335 = pneg %p70
        %p336 = pneg %p94
        %p337 = pneg %p91
        %p338 = pneg %p115
        %p339 = pneg %p112
        %p340 = pneg %p136
        %p341 = pneg %p133
        %p342 = pneg %p157
        %p343 = pneg %p154
        %p344 = pneg %p178
        %p345 = pneg %p175
        %p346 = pneg %p199
        %p347 = pneg %p196
        %p348 = pneg %p225
        %p349 = pneg %p222
        %s350 = sand.u32 %s212, 1
        %s351 = scalar_lea.sflag [#allocation6], %s350
        %s352 = sand.u32 %s212, 1
        %s353 = smul.addr %s352, 8
        %s354 = scalar_lea.vmem [#allocation10], %s353
        %v355 = vld [vmem:[%s314] sm:$0xff]
        %vm356 = vcmask 261120
        %v357 = vsel %vm356, %v355, 0.0
        %358 = vadd.xlane.f32.xlu0 %v357
        %v359 = vpop.xlane.xlu0 %358
        %v360 = vrcp.pop 32.0
        %v361 = vmul.f32 %v359, %v360
        %v362 = vsub.f32 %v355, %v361
        %v363 = vmul.f32 %v362, %v362
        %v364 = vsel %vm356, %v363, 0.0
        %365 = vadd.xlane.f32.xlu0 %v364
        %v366 = vpop.xlane.xlu0 %365
        %v367 = vmul.f32 %v366, %v360
        %v368 = vadd.f32 %v367, 1e-05
        %v369 = vrsqrt.pop %v368
        %v370 = vmul.f32 %v362, %v369
        %v371 = vld [vmem:[%s5] sm:$0x1]
        %v373 = vlaneseq
        %v374 = vshrl.u32 %v373, 7
        %v375 = vsub.s32 0, %v374
        %v376 = vrot.slane %v371, %v375
        %v378 = vmul.f32 %v370, %v376
        %v379 = vld [vmem:[%s6] sm:$0x1]
        %v381 = vlaneseq
        %v382 = vshrl.u32 %v381, 7
        %v383 = vsub.s32 0, %v382
        %v384 = vrot.slane %v379, %v383
        %v386 = vadd.f32 %v378, %v384
        %v387 = vld [vmem:[#allocation7] sm:$0xff]
        %v388 = vld [vmem:[#allocation7 + $0x8] sm:$0xff]
        %v389 = vld [vmem:[#allocation7 + $0x10] sm:$0xff]
        %v390 = vld [vmem:[#allocation7 + $0x18] sm:$0xff]
        %v392 = vsel %vm356, %v386, 0
        %394 = vmatprep.subr.mxu0 0.0
        %395 = vmatpush1.msra.mxu0 0.0
        %396 = vmatprep.subr.mxu0 0.0
        %397 = vmatpush1.msra.mxu0 0.0
        %398 = vmatprep.subr.mxu0 0.0
        %399 = vmatpush1.msra.mxu0 0.0
        %400 = vmatprep.subr.mxu0 0.0
        %401 = vmatpush1.msra.mxu0 0.0
        %402 = vmatprep.subr.mxu0 0.0
        %403 = vmatpush1.msra.mxu0 0.0
        %404 = vmatprep.subr.mxu0 0.0
        %405 = vmatpush1.msra.mxu0 0.0
        %406 = vmatprep.subr.mxu0 0.0
        %407 = vmatpush1.msra.mxu0 0.0
        %408 = vmatprep.subr.mxu0 0.0
        %409 = vmatpush1.msra.mxu0 0.0
        %410 = vmatprep.subr.mxu0 0.0
        %411 = vmatpush1.msra.mxu0 0.0
        %412 = vmatprep.subr.mxu0 0.0
        %413 = vmatpush1.msra.mxu0 0.0
        %414 = vmatprep.subr.mxu0 0.0
        %415 = vmatpush1.msra.mxu0 0.0
        %416 = vmatprep.subr.mxu0 0.0
        %417 = vmatpush1.msra.mxu0 0.0
        %418 = vmatprep.subr.mxu0 0.0
        %419 = vmatpush1.msra.mxu0 %v390
        %420 = vmatprep.subr.mxu0 0.0
        %421 = vmatpush1.msra.mxu0 %v389
        %422 = vmatprep.subr.mxu0 0.0
        %423 = vmatpush1.msra.mxu0 %v388
        %424 = vmatprep.subr.mxu0 0.0
        %425 = vmatpush1.msra.mxu0 %v387
        %426 = vmatprep.subr.mxu0 0.0
        %427 = vmatpush2.msra.mxu0 0.0
        %428 = vmatprep.subr.mxu0 0.0
        %429 = vmatpush2.msra.mxu0 0.0
        %430 = vmatprep.subr.mxu0 0.0
        %431 = vmatpush2.msra.mxu0 0.0
        %432 = vmatprep.subr.mxu0 0.0
        %433 = vmatpush2.msra.mxu0 0.0
        %434 = vmatprep.subr.mxu0 0.0
        %435 = vmatpush2.msra.mxu0 0.0
        %436 = vmatprep.subr.mxu0 0.0
        %437 = vmatpush2.msra.mxu0 0.0
        %438 = vmatprep.subr.mxu0 0.0
        %439 = vmatpush2.msra.mxu0 0.0
        %440 = vmatprep.subr.mxu0 0.0
        %441 = vmatpush2.msra.mxu0 0.0
        %442 = vmatprep.subr.mxu0 0.0
        %443 = vmatpush2.msra.mxu0 0.0
        %444 = vmatprep.subr.mxu0 0.0
        %445 = vmatpush2.msra.mxu0 0.0
        %446 = vmatprep.subr.mxu0 0.0
        %447 = vmatpush2.msra.mxu0 0.0
        %448 = vmatprep.subr.mxu0 0.0
        %449 = vmatpush2.msra.mxu0 0.0
        %450 = vmatprep.subr.mxu0 0.0
        %451 = vmatpush2.msra.mxu0 0.0
        %452 = vmatprep.subr.mxu0 0.0
        %453 = vmatpush2.msra.mxu0 0.0
        %454 = vmatprep.subr.mxu0 0.0
        %455 = vmatpush2.msra.mxu0 0.0
        %456 = vmatprep.subr.mxu0 0.0
        %457 = vmatpush2.msra.mxu0 0.0
        %458 = vmatprep.mubr.f32.mxu0 0.0
        %459 = vmatmul.mubr.f32.gmra.mxu0 %v392
        %v460 = vpop.f32.mrf.mxu0
        %v461 = vadd.f32 0.0, %v460
        %v462 = vpop.f32.mrf.mxu0
        %463 = vdwg.mxu0
        %v464 = vlaneseq
        %v465 = vshrl.u32 %v464, 7
        %v466 = vlaneseq
        %v467 = vand.u32 %v466, 127
        %s468 = sld [smem:[#allocation3 + %s31]]
        %v469 = vstv %s468
        %vm470 = vcmp.lt.s32.totalorder %v465, %v469
        %vm471 = vcmp.lt.s32.totalorder %v467, %v469
        %v472 = vsel %vm470, 1, 0
        %vm473 = vcmp.eq.s32.totalorder %v472, 1
        %v474 = vsel %vm471, 1, 0
        %vm475 = vcmp.eq.s32.totalorder %v474, 1
        %vm476 = vmand %vm473, %vm475
        %vm477 = vcmp.le.s32.totalorder %v467, %v465
        %vm478 = vmand %vm476, %vm477
        %480 = vrot.lane.b32.xlu0 %v461, 96
        %v481 = vpop.permute.xlu0 %480
        %vm482 = vcmask 64512
        %v483 = vsel %vm482, %v461, 0
        %v485 = vsel %vm482, %v481, 0
        %487 = vmatprep.subr.mxu0 0.0
        %488 = vmatpush1.xpose.msra.mxu0 0.0
        %489 = vmatprep.subr.mxu0 0.0
        %490 = vmatpush1.xpose.msra.mxu0 0.0
        %491 = vmatprep.subr.mxu0 0.0
        %492 = vmatpush1.xpose.msra.mxu0 0.0
        %493 = vmatprep.subr.mxu0 0.0
        %494 = vmatpush1.xpose.msra.mxu0 0.0
        %495 = vmatprep.subr.mxu0 0.0
        %496 = vmatpush1.xpose.msra.mxu0 0.0
        %497 = vmatprep.subr.mxu0 0.0
        %498 = vmatpush1.xpose.msra.mxu0 0.0
        %499 = vmatprep.subr.mxu0 0.0
        %500 = vmatpush1.xpose.msra.mxu0 0.0
        %501 = vmatprep.subr.mxu0 0.0
        %502 = vmatpush1.xpose.msra.mxu0 0.0
        %503 = vmatprep.subr.mxu0 0.0
        %504 = vmatpush1.xpose.msra.mxu0 0.0
        %505 = vmatprep.subr.mxu0 0.0
        %506 = vmatpush1.xpose.msra.mxu0 0.0
        %507 = vmatprep.subr.mxu0 0.0
        %508 = vmatpush1.xpose.msra.mxu0 0.0
        %509 = vmatprep.subr.mxu0 0.0
        %510 = vmatpush1.xpose.msra.mxu0 0.0
        %511 = vmatprep.subr.mxu0 0.0
        %512 = vmatpush1.xpose.msra.mxu0 0.0
        %513 = vmatprep.subr.mxu0 0.0
        %514 = vmatpush1.xpose.msra.mxu0 0.0
        %515 = vmatprep.subr.mxu0 0.0
        %516 = vmatpush1.xpose.msra.mxu0 0.0
        %517 = vmatprep.subr.mxu0 0.0
        %518 = vmatpush1.xpose.msra.mxu0 %v485
        %519 = vmatprep.subr.mxu0 0.0
        %520 = vmatpush2.xpose.msra.mxu0 0.0
        %521 = vmatprep.subr.mxu0 0.0
        %522 = vmatpush2.xpose.msra.mxu0 0.0
        %523 = vmatprep.subr.mxu0 0.0
        %524 = vmatpush2.xpose.msra.mxu0 0.0
        %525 = vmatprep.subr.mxu0 0.0
        %526 = vmatpush2.xpose.msra.mxu0 0.0
        %527 = vmatprep.subr.mxu0 0.0
        %528 = vmatpush2.xpose.msra.mxu0 0.0
        %529 = vmatprep.subr.mxu0 0.0
        %530 = vmatpush2.xpose.msra.mxu0 0.0
        %531 = vmatprep.subr.mxu0 0.0
        %532 = vmatpush2.xpose.msra.mxu0 0.0
        %533 = vmatprep.subr.mxu0 0.0
        %534 = vmatpush2.xpose.msra.mxu0 0.0
        %535 = vmatprep.subr.mxu0 0.0
        %536 = vmatpush2.xpose.msra.mxu0 0.0
        %537 = vmatprep.subr.mxu0 0.0
        %538 = vmatpush2.xpose.msra.mxu0 0.0
        %539 = vmatprep.subr.mxu0 0.0
        %540 = vmatpush2.xpose.msra.mxu0 0.0
        %541 = vmatprep.subr.mxu0 0.0
        %542 = vmatpush2.xpose.msra.mxu0 0.0
        %543 = vmatprep.subr.mxu0 0.0
        %544 = vmatpush2.xpose.msra.mxu0 0.0
        %545 = vmatprep.subr.mxu0 0.0
        %546 = vmatpush2.xpose.msra.mxu0 0.0
        %547 = vmatprep.subr.mxu0 0.0
        %548 = vmatpush2.xpose.msra.mxu0 0.0
        %549 = vmatprep.subr.mxu0 0.0
        %550 = vmatpush2.xpose.msra.mxu0 0.0
        %551 = vmatprep.mubr.f32.mxu0 0.0
        %552 = vmatmul.mubr.f32.gmra.mxu0 %v483
        %v553 = vpop.f32.mrf.mxu0
        %v554 = vadd.f32 0.0, %v553
        %v555 = vpop.f32.mrf.mxu0
        %556 = vdwg.mxu0
        %v557 = vsel %vm478, %v554, -1e+30
        %v558 = vsel %vm482, %v557, -inf
        %559 = vmax.xlane.f32.xlu0 %v558
        %v560 = vpop.xlane.xlu0 %559
        %v561 = vsub.f32 %v557, %v560
        %v562 = vmul.f32 %v561, 1.442695
        %v563 = vpow.pop %v562
        %v564 = vsel %vm482, %v563, 0.0
        %565 = vadd.xlane.f32.xlu0 %v564
        %v566 = vpop.xlane.xlu0 %565
        %v567 = vrcp.pop %v566
        %v568 = vmul.f32 %v563, %v567
        %569 = vrot.lane.b32.xlu0 %v461, 64
        %v570 = vpop.permute.xlu0 %569
        %v573 = vsel %vm482, %v568, 0
        %575 = vmatprep.subr.mxu0 0.0
        %576 = vmatpush1.msra.mxu0 0.0
        %577 = vmatprep.subr.mxu0 0.0
        %578 = vmatpush1.msra.mxu0 0.0
        %579 = vmatprep.subr.mxu0 0.0
        %580 = vmatpush1.msra.mxu0 0.0
        %581 = vmatprep.subr.mxu0 0.0
        %582 = vmatpush1.msra.mxu0 0.0
        %583 = vmatprep.subr.mxu0 0.0
        %584 = vmatpush1.msra.mxu0 0.0
        %585 = vmatprep.subr.mxu0 0.0
        %586 = vmatpush1.msra.mxu0 0.0
        %587 = vmatprep.subr.mxu0 0.0
        %588 = vmatpush1.msra.mxu0 0.0
        %589 = vmatprep.subr.mxu0 0.0
        %590 = vmatpush1.msra.mxu0 0.0
        %591 = vmatprep.subr.mxu0 0.0
        %592 = vmatpush1.msra.mxu0 0.0
        %593 = vmatprep.subr.mxu0 0.0
        %594 = vmatpush1.msra.mxu0 0.0
        %595 = vmatprep.subr.mxu0 0.0
        %596 = vmatpush1.msra.mxu0 0.0
        %597 = vmatprep.subr.mxu0 0.0
        %598 = vmatpush1.msra.mxu0 0.0
        %599 = vmatprep.subr.mxu0 0.0
        %600 = vmatpush1.msra.mxu0 0.0
        %601 = vmatprep.subr.mxu0 0.0
        %602 = vmatpush1.msra.mxu0 0.0
        %603 = vmatprep.subr.mxu0 0.0
        %604 = vmatpush1.msra.mxu0 0.0
        %605 = vmatprep.subr.mxu0 0.0
        %606 = vmatpush1.msra.mxu0 %v570
        %607 = vmatprep.subr.mxu0 0.0
        %608 = vmatpush2.msra.mxu0 0.0
        %609 = vmatprep.subr.mxu0 0.0
        %610 = vmatpush2.msra.mxu0 0.0
        %611 = vmatprep.subr.mxu0 0.0
        %612 = vmatpush2.msra.mxu0 0.0
        %613 = vmatprep.subr.mxu0 0.0
        %614 = vmatpush2.msra.mxu0 0.0
        %615 = vmatprep.subr.mxu0 0.0
        %616 = vmatpush2.msra.mxu0 0.0
        %617 = vmatprep.subr.mxu0 0.0
        %618 = vmatpush2.msra.mxu0 0.0
        %619 = vmatprep.subr.mxu0 0.0
        %620 = vmatpush2.msra.mxu0 0.0
        %621 = vmatprep.subr.mxu0 0.0
        %622 = vmatpush2.msra.mxu0 0.0
        %623 = vmatprep.subr.mxu0 0.0
        %624 = vmatpush2.msra.mxu0 0.0
        %625 = vmatprep.subr.mxu0 0.0
        %626 = vmatpush2.msra.mxu0 0.0
        %627 = vmatprep.subr.mxu0 0.0
        %628 = vmatpush2.msra.mxu0 0.0
        %629 = vmatprep.subr.mxu0 0.0
        %630 = vmatpush2.msra.mxu0 0.0
        %631 = vmatprep.subr.mxu0 0.0
        %632 = vmatpush2.msra.mxu0 0.0
        %633 = vmatprep.subr.mxu0 0.0
        %634 = vmatpush2.msra.mxu0 0.0
        %635 = vmatprep.subr.mxu0 0.0
        %636 = vmatpush2.msra.mxu0 0.0
        %637 = vmatprep.subr.mxu0 0.0
        %638 = vmatpush2.msra.mxu0 0.0
        %639 = vmatprep.mubr.f32.mxu0 0.0
        %640 = vmatmul.mubr.f32.gmra.mxu0 %v573
        %v641 = vpop.f32.mrf.mxu0
        %v642 = vadd.f32 0.0, %v641
        %v643 = vpop.f32.mrf.mxu0
        %644 = vdwg.mxu0
        %645 = vrot.lane.b32.xlu0 %v461, 120
        %v646 = vpop.permute.xlu0 %645
        %647 = vrot.lane.b32.xlu0 %v461, 88
        %v648 = vpop.permute.xlu0 %647
        %v649 = vsel %vm482, %v646, 0
        %v651 = vsel %vm482, %v648, 0
        %653 = vmatprep.subr.mxu0 0.0
        %654 = vmatpush1.xpose.msra.mxu0 0.0
        %655 = vmatprep.subr.mxu0 0.0
        %656 = vmatpush1.xpose.msra.mxu0 0.0
        %657 = vmatprep.subr.mxu0 0.0
        %658 = vmatpush1.xpose.msra.mxu0 0.0
        %659 = vmatprep.subr.mxu0 0.0
        %660 = vmatpush1.xpose.msra.mxu0 0.0
        %661 = vmatprep.subr.mxu0 0.0
        %662 = vmatpush1.xpose.msra.mxu0 0.0
        %663 = vmatprep.subr.mxu0 0.0
        %664 = vmatpush1.xpose.msra.mxu0 0.0
        %665 = vmatprep.subr.mxu0 0.0
        %666 = vmatpush1.xpose.msra.mxu0 0.0
        %667 = vmatprep.subr.mxu0 0.0
        %668 = vmatpush1.xpose.msra.mxu0 0.0
        %669 = vmatprep.subr.mxu0 0.0
        %670 = vmatpush1.xpose.msra.mxu0 0.0
        %671 = vmatprep.subr.mxu0 0.0
        %672 = vmatpush1.xpose.msra.mxu0 0.0
        %673 = vmatprep.subr.mxu0 0.0
        %674 = vmatpush1.xpose.msra.mxu0 0.0
        %675 = vmatprep.subr.mxu0 0.0
        %676 = vmatpush1.xpose.msra.mxu0 0.0
        %677 = vmatprep.subr.mxu0 0.0
        %678 = vmatpush1.xpose.msra.mxu0 0.0
        %679 = vmatprep.subr.mxu0 0.0
        %680 = vmatpush1.xpose.msra.mxu0 0.0
        %681 = vmatprep.subr.mxu0 0.0
        %682 = vmatpush1.xpose.msra.mxu0 0.0
        %683 = vmatprep.subr.mxu0 0.0
        %684 = vmatpush1.xpose.msra.mxu0 %v651
        %685 = vmatprep.subr.mxu0 0.0
        %686 = vmatpush2.xpose.msra.mxu0 0.0
        %687 = vmatprep.subr.mxu0 0.0
        %688 = vmatpush2.xpose.msra.mxu0 0.0
        %689 = vmatprep.subr.mxu0 0.0
        %690 = vmatpush2.xpose.msra.mxu0 0.0
        %691 = vmatprep.subr.mxu0 0.0
        %692 = vmatpush2.xpose.msra.mxu0 0.0
        %693 = vmatprep.subr.mxu0 0.0
        %694 = vmatpush2.xpose.msra.mxu0 0.0
        %695 = vmatprep.subr.mxu0 0.0
        %696 = vmatpush2.xpose.msra.mxu0 0.0
        %697 = vmatprep.subr.mxu0 0.0
        %698 = vmatpush2.xpose.msra.mxu0 0.0
        %699 = vmatprep.subr.mxu0 0.0
        %700 = vmatpush2.xpose.msra.mxu0 0.0
        %701 = vmatprep.subr.mxu0 0.0
        %702 = vmatpush2.xpose.msra.mxu0 0.0
        %703 = vmatprep.subr.mxu0 0.0
        %704 = vmatpush2.xpose.msra.mxu0 0.0
        %705 = vmatprep.subr.mxu0 0.0
        %706 = vmatpush2.xpose.msra.mxu0 0.0
        %707 = vmatprep.subr.mxu0 0.0
        %708 = vmatpush2.xpose.msra.mxu0 0.0
        %709 = vmatprep.subr.mxu0 0.0
        %710 = vmatpush2.xpose.msra.mxu0 0.0
        %711 = vmatprep.subr.mxu0 0.0
        %712 = vmatpush2.xpose.msra.mxu0 0.0
        %713 = vmatprep.subr.mxu0 0.0
        %714 = vmatpush2.xpose.msra.mxu0 0.0
        %715 = vmatprep.subr.mxu0 0.0
        %716 = vmatpush2.xpose.msra.mxu0 0.0
        %717 = vmatprep.mubr.f32.mxu0 0.0
        %718 = vmatmul.mubr.f32.gmra.mxu0 %v649
        %v719 = vpop.f32.mrf.mxu0
        %v720 = vadd.f32 0.0, %v719
        %v721 = vpop.f32.mrf.mxu0
        %722 = vdwg.mxu0
        %v723 = vsel %vm478, %v720, -1e+30
        %v724 = vsel %vm482, %v723, -inf
        %725 = vmax.xlane.f32.xlu0 %v724
        %v726 = vpop.xlane.xlu0 %725
        %v727 = vsub.f32 %v723, %v726
        %v728 = vmul.f32 %v727, 1.442695
        %v729 = vpow.pop %v728
        %v730 = vsel %vm482, %v729, 0.0
        %731 = vadd.xlane.f32.xlu0 %v730
        %v732 = vpop.xlane.xlu0 %731
        %v733 = vrcp.pop %v732
        %v734 = vmul.f32 %v729, %v733
        %735 = vrot.lane.b32.xlu0 %v461, 56
        %v736 = vpop.permute.xlu0 %735
        %v739 = vsel %vm482, %v734, 0
        %741 = vmatprep.subr.mxu0 0.0
        %742 = vmatpush1.msra.mxu0 0.0
        %743 = vmatprep.subr.mxu0 0.0
        %744 = vmatpush1.msra.mxu0 0.0
        %745 = vmatprep.subr.mxu0 0.0
        %746 = vmatpush1.msra.mxu0 0.0
        %747 = vmatprep.subr.mxu0 0.0
        %748 = vmatpush1.msra.mxu0 0.0
        %749 = vmatprep.subr.mxu0 0.0
        %750 = vmatpush1.msra.mxu0 0.0
        %751 = vmatprep.subr.mxu0 0.0
        %752 = vmatpush1.msra.mxu0 0.0
        %753 = vmatprep.subr.mxu0 0.0
        %754 = vmatpush1.msra.mxu0 0.0
        %755 = vmatprep.subr.mxu0 0.0
        %756 = vmatpush1.msra.mxu0 0.0
        %757 = vmatprep.subr.mxu0 0.0
        %758 = vmatpush1.msra.mxu0 0.0
        %759 = vmatprep.subr.mxu0 0.0
        %760 = vmatpush1.msra.mxu0 0.0
        %761 = vmatprep.subr.mxu0 0.0
        %762 = vmatpush1.msra.mxu0 0.0
        %763 = vmatprep.subr.mxu0 0.0
        %764 = vmatpush1.msra.mxu0 0.0
        %765 = vmatprep.subr.mxu0 0.0
        %766 = vmatpush1.msra.mxu0 0.0
        %767 = vmatprep.subr.mxu0 0.0
        %768 = vmatpush1.msra.mxu0 0.0
        %769 = vmatprep.subr.mxu0 0.0
        %770 = vmatpush1.msra.mxu0 0.0
        %771 = vmatprep.subr.mxu0 0.0
        %772 = vmatpush1.msra.mxu0 %v736
        %773 = vmatprep.subr.mxu0 0.0
        %774 = vmatpush2.msra.mxu0 0.0
        %775 = vmatprep.subr.mxu0 0.0
        %776 = vmatpush2.msra.mxu0 0.0
        %777 = vmatprep.subr.mxu0 0.0
        %778 = vmatpush2.msra.mxu0 0.0
        %779 = vmatprep.subr.mxu0 0.0
        %780 = vmatpush2.msra.mxu0 0.0
        %781 = vmatprep.subr.mxu0 0.0
        %782 = vmatpush2.msra.mxu0 0.0
        %783 = vmatprep.subr.mxu0 0.0
        %784 = vmatpush2.msra.mxu0 0.0
        %785 = vmatprep.subr.mxu0 0.0
        %786 = vmatpush2.msra.mxu0 0.0
        %787 = vmatprep.subr.mxu0 0.0
        %788 = vmatpush2.msra.mxu0 0.0
        %789 = vmatprep.subr.mxu0 0.0
        %790 = vmatpush2.msra.mxu0 0.0
        %791 = vmatprep.subr.mxu0 0.0
        %792 = vmatpush2.msra.mxu0 0.0
        %793 = vmatprep.subr.mxu0 0.0
        %794 = vmatpush2.msra.mxu0 0.0
        %795 = vmatprep.subr.mxu0 0.0
        %796 = vmatpush2.msra.mxu0 0.0
        %797 = vmatprep.subr.mxu0 0.0
        %798 = vmatpush2.msra.mxu0 0.0
        %799 = vmatprep.subr.mxu0 0.0
        %800 = vmatpush2.msra.mxu0 0.0
        %801 = vmatprep.subr.mxu0 0.0
        %802 = vmatpush2.msra.mxu0 0.0
        %803 = vmatprep.subr.mxu0 0.0
        %804 = vmatpush2.msra.mxu0 0.0
        %805 = vmatprep.mubr.f32.mxu0 0.0
        %806 = vmatmul.mubr.f32.gmra.mxu0 %v739
        %v807 = vpop.f32.mrf.mxu0
        %v808 = vadd.f32 0.0, %v807
        %v809 = vpop.f32.mrf.mxu0
        %810 = vdwg.mxu0
        %811 = vrot.lane.b32.xlu0 %v461, 112
        %v812 = vpop.permute.xlu0 %811
        %813 = vrot.lane.b32.xlu0 %v461, 80
        %v814 = vpop.permute.xlu0 %813
        %v815 = vsel %vm482, %v812, 0
        %v817 = vsel %vm482, %v814, 0
        %819 = vmatprep.subr.mxu0 0.0
        %820 = vmatpush1.xpose.msra.mxu0 0.0
        %821 = vmatprep.subr.mxu0 0.0
        %822 = vmatpush1.xpose.msra.mxu0 0.0
        %823 = vmatprep.subr.mxu0 0.0
        %824 = vmatpush1.xpose.msra.mxu0 0.0
        %825 = vmatprep.subr.mxu0 0.0
        %826 = vmatpush1.xpose.msra.mxu0 0.0
        %827 = vmatprep.subr.mxu0 0.0
        %828 = vmatpush1.xpose.msra.mxu0 0.0
        %829 = vmatprep.subr.mxu0 0.0
        %830 = vmatpush1.xpose.msra.mxu0 0.0
        %831 = vmatprep.subr.mxu0 0.0
        %832 = vmatpush1.xpose.msra.mxu0 0.0
        %833 = vmatprep.subr.mxu0 0.0
        %834 = vmatpush1.xpose.msra.mxu0 0.0
        %835 = vmatprep.subr.mxu0 0.0
        %836 = vmatpush1.xpose.msra.mxu0 0.0
        %837 = vmatprep.subr.mxu0 0.0
        %838 = vmatpush1.xpose.msra.mxu0 0.0
        %839 = vmatprep.subr.mxu0 0.0
        %840 = vmatpush1.xpose.msra.mxu0 0.0
        %841 = vmatprep.subr.mxu0 0.0
        %842 = vmatpush1.xpose.msra.mxu0 0.0
        %843 = vmatprep.subr.mxu0 0.0
        %844 = vmatpush1.xpose.msra.mxu0 0.0
        %845 = vmatprep.subr.mxu0 0.0
        %846 = vmatpush1.xpose.msra.mxu0 0.0
        %847 = vmatprep.subr.mxu0 0.0
        %848 = vmatpush1.xpose.msra.mxu0 0.0
        %849 = vmatprep.subr.mxu0 0.0
        %850 = vmatpush1.xpose.msra.mxu0 %v817
        %851 = vmatprep.subr.mxu0 0.0
        %852 = vmatpush2.xpose.msra.mxu0 0.0
        %853 = vmatprep.subr.mxu0 0.0
        %854 = vmatpush2.xpose.msra.mxu0 0.0
        %855 = vmatprep.subr.mxu0 0.0
        %856 = vmatpush2.xpose.msra.mxu0 0.0
        %857 = vmatprep.subr.mxu0 0.0
        %858 = vmatpush2.xpose.msra.mxu0 0.0
        %859 = vmatprep.subr.mxu0 0.0
        %860 = vmatpush2.xpose.msra.mxu0 0.0
        %861 = vmatprep.subr.mxu0 0.0
        %862 = vmatpush2.xpose.msra.mxu0 0.0
        %863 = vmatprep.subr.mxu0 0.0
        %864 = vmatpush2.xpose.msra.mxu0 0.0
        %865 = vmatprep.subr.mxu0 0.0
        %866 = vmatpush2.xpose.msra.mxu0 0.0
        %867 = vmatprep.subr.mxu0 0.0
        %868 = vmatpush2.xpose.msra.mxu0 0.0
        %869 = vmatprep.subr.mxu0 0.0
        %870 = vmatpush2.xpose.msra.mxu0 0.0
        %871 = vmatprep.subr.mxu0 0.0
        %872 = vmatpush2.xpose.msra.mxu0 0.0
        %873 = vmatprep.subr.mxu0 0.0
        %874 = vmatpush2.xpose.msra.mxu0 0.0
        %875 = vmatprep.subr.mxu0 0.0
        %876 = vmatpush2.xpose.msra.mxu0 0.0
        %877 = vmatprep.subr.mxu0 0.0
        %878 = vmatpush2.xpose.msra.mxu0 0.0
        %879 = vmatprep.subr.mxu0 0.0
        %880 = vmatpush2.xpose.msra.mxu0 0.0
        %881 = vmatprep.subr.mxu0 0.0
        %882 = vmatpush2.xpose.msra.mxu0 0.0
        %883 = vmatprep.mubr.f32.mxu0 0.0
        %884 = vmatmul.mubr.f32.gmra.mxu0 %v815
        %v885 = vpop.f32.mrf.mxu0
        %v886 = vadd.f32 0.0, %v885
        %v887 = vpop.f32.mrf.mxu0
        %888 = vdwg.mxu0
        %v889 = vsel %vm478, %v886, -1e+30
        %v890 = vsel %vm482, %v889, -inf
        %891 = vmax.xlane.f32.xlu0 %v890
        %v892 = vpop.xlane.xlu0 %891
        %v893 = vsub.f32 %v889, %v892
        %v894 = vmul.f32 %v893, 1.442695
        %v895 = vpow.pop %v894
        %v896 = vsel %vm482, %v895, 0.0
        %897 = vadd.xlane.f32.xlu0 %v896
        %v898 = vpop.xlane.xlu0 %897
        %v899 = vrcp.pop %v898
        %v900 = vmul.f32 %v895, %v899
        %901 = vrot.lane.b32.xlu0 %v461, 48
        %v902 = vpop.permute.xlu0 %901
        %v905 = vsel %vm482, %v900, 0
        %907 = vmatprep.subr.mxu0 0.0
        %908 = vmatpush1.msra.mxu0 0.0
        %909 = vmatprep.subr.mxu0 0.0
        %910 = vmatpush1.msra.mxu0 0.0
        %911 = vmatprep.subr.mxu0 0.0
        %912 = vmatpush1.msra.mxu0 0.0
        %913 = vmatprep.subr.mxu0 0.0
        %914 = vmatpush1.msra.mxu0 0.0
        %915 = vmatprep.subr.mxu0 0.0
        %916 = vmatpush1.msra.mxu0 0.0
        %917 = vmatprep.subr.mxu0 0.0
        %918 = vmatpush1.msra.mxu0 0.0
        %919 = vmatprep.subr.mxu0 0.0
        %920 = vmatpush1.msra.mxu0 0.0
        %921 = vmatprep.subr.mxu0 0.0
        %922 = vmatpush1.msra.mxu0 0.0
        %923 = vmatprep.subr.mxu0 0.0
        %924 = vmatpush1.msra.mxu0 0.0
        %925 = vmatprep.subr.mxu0 0.0
        %926 = vmatpush1.msra.mxu0 0.0
        %927 = vmatprep.subr.mxu0 0.0
        %928 = vmatpush1.msra.mxu0 0.0
        %929 = vmatprep.subr.mxu0 0.0
        %930 = vmatpush1.msra.mxu0 0.0
        %931 = vmatprep.subr.mxu0 0.0
        %932 = vmatpush1.msra.mxu0 0.0
        %933 = vmatprep.subr.mxu0 0.0
        %934 = vmatpush1.msra.mxu0 0.0
        %935 = vmatprep.subr.mxu0 0.0
        %936 = vmatpush1.msra.mxu0 0.0
        %937 = vmatprep.subr.mxu0 0.0
        %938 = vmatpush1.msra.mxu0 %v902
        %939 = vmatprep.subr.mxu0 0.0
        %940 = vmatpush2.msra.mxu0 0.0
        %941 = vmatprep.subr.mxu0 0.0
        %942 = vmatpush2.msra.mxu0 0.0
        %943 = vmatprep.subr.mxu0 0.0
        %944 = vmatpush2.msra.mxu0 0.0
        %945 = vmatprep.subr.mxu0 0.0
        %946 = vmatpush2.msra.mxu0 0.0
        %947 = vmatprep.subr.mxu0 0.0
        %948 = vmatpush2.msra.mxu0 0.0
        %949 = vmatprep.subr.mxu0 0.0
        %950 = vmatpush2.msra.mxu0 0.0
        %951 = vmatprep.subr.mxu0 0.0
        %952 = vmatpush2.msra.mxu0 0.0
        %953 = vmatprep.subr.mxu0 0.0
        %954 = vmatpush2.msra.mxu0 0.0
        %955 = vmatprep.subr.mxu0 0.0
        %956 = vmatpush2.msra.mxu0 0.0
        %957 = vmatprep.subr.mxu0 0.0
        %958 = vmatpush2.msra.mxu0 0.0
        %959 = vmatprep.subr.mxu0 0.0
        %960 = vmatpush2.msra.mxu0 0.0
        %961 = vmatprep.subr.mxu0 0.0
        %962 = vmatpush2.msra.mxu0 0.0
        %963 = vmatprep.subr.mxu0 0.0
        %964 = vmatpush2.msra.mxu0 0.0
        %965 = vmatprep.subr.mxu0 0.0
        %966 = vmatpush2.msra.mxu0 0.0
        %967 = vmatprep.subr.mxu0 0.0
        %968 = vmatpush2.msra.mxu0 0.0
        %969 = vmatprep.subr.mxu0 0.0
        %970 = vmatpush2.msra.mxu0 0.0
        %971 = vmatprep.mubr.f32.mxu0 0.0
        %972 = vmatmul.mubr.f32.gmra.mxu0 %v905
        %v973 = vpop.f32.mrf.mxu0
        %v974 = vadd.f32 0.0, %v973
        %v975 = vpop.f32.mrf.mxu0
        %976 = vdwg.mxu0
        %977 = vrot.lane.b32.xlu0 %v461, 104
        %v978 = vpop.permute.xlu0 %977
        %979 = vrot.lane.b32.xlu0 %v461, 72
        %v980 = vpop.permute.xlu0 %979
        %v981 = vsel %vm482, %v978, 0
        %v983 = vsel %vm482, %v980, 0
        %985 = vmatprep.subr.mxu0 0.0
        %986 = vmatpush1.xpose.msra.mxu0 0.0
        %987 = vmatprep.subr.mxu0 0.0
        %988 = vmatpush1.xpose.msra.mxu0 0.0
        %989 = vmatprep.subr.mxu0 0.0
        %990 = vmatpush1.xpose.msra.mxu0 0.0
        %991 = vmatprep.subr.mxu0 0.0
        %992 = vmatpush1.xpose.msra.mxu0 0.0
        %993 = vmatprep.subr.mxu0 0.0
        %994 = vmatpush1.xpose.msra.mxu0 0.0
        %995 = vmatprep.subr.mxu0 0.0
        %996 = vmatpush1.xpose.msra.mxu0 0.0
        %997 = vmatprep.subr.mxu0 0.0
        %998 = vmatpush1.xpose.msra.mxu0 0.0
        %999 = vmatprep.subr.mxu0 0.0
        %1000 = vmatpush1.xpose.msra.mxu0 0.0
        %1001 = vmatprep.subr.mxu0 0.0
        %1002 = vmatpush1.xpose.msra.mxu0 0.0
        %1003 = vmatprep.subr.mxu0 0.0
        %1004 = vmatpush1.xpose.msra.mxu0 0.0
        %1005 = vmatprep.subr.mxu0 0.0
        %1006 = vmatpush1.xpose.msra.mxu0 0.0
        %1007 = vmatprep.subr.mxu0 0.0
        %1008 = vmatpush1.xpose.msra.mxu0 0.0
        %1009 = vmatprep.subr.mxu0 0.0
        %1010 = vmatpush1.xpose.msra.mxu0 0.0
        %1011 = vmatprep.subr.mxu0 0.0
        %1012 = vmatpush1.xpose.msra.mxu0 0.0
        %1013 = vmatprep.subr.mxu0 0.0
        %1014 = vmatpush1.xpose.msra.mxu0 0.0
        %1015 = vmatprep.subr.mxu0 0.0
        %1016 = vmatpush1.xpose.msra.mxu0 %v983
        %1017 = vmatprep.subr.mxu0 0.0
        %1018 = vmatpush2.xpose.msra.mxu0 0.0
        %1019 = vmatprep.subr.mxu0 0.0
        %1020 = vmatpush2.xpose.msra.mxu0 0.0
        %1021 = vmatprep.subr.mxu0 0.0
        %1022 = vmatpush2.xpose.msra.mxu0 0.0
        %1023 = vmatprep.subr.mxu0 0.0
        %1024 = vmatpush2.xpose.msra.mxu0 0.0
        %1025 = vmatprep.subr.mxu0 0.0
        %1026 = vmatpush2.xpose.msra.mxu0 0.0
        %1027 = vmatprep.subr.mxu0 0.0
        %1028 = vmatpush2.xpose.msra.mxu0 0.0
        %1029 = vmatprep.subr.mxu0 0.0
        %1030 = vmatpush2.xpose.msra.mxu0 0.0
        %1031 = vmatprep.subr.mxu0 0.0
        %1032 = vmatpush2.xpose.msra.mxu0 0.0
        %1033 = vmatprep.subr.mxu0 0.0
        %1034 = vmatpush2.xpose.msra.mxu0 0.0
        %1035 = vmatprep.subr.mxu0 0.0
        %1036 = vmatpush2.xpose.msra.mxu0 0.0
        %1037 = vmatprep.subr.mxu0 0.0
        %1038 = vmatpush2.xpose.msra.mxu0 0.0
        %1039 = vmatprep.subr.mxu0 0.0
        %1040 = vmatpush2.xpose.msra.mxu0 0.0
        %1041 = vmatprep.subr.mxu0 0.0
        %1042 = vmatpush2.xpose.msra.mxu0 0.0
        %1043 = vmatprep.subr.mxu0 0.0
        %1044 = vmatpush2.xpose.msra.mxu0 0.0
        %1045 = vmatprep.subr.mxu0 0.0
        %1046 = vmatpush2.xpose.msra.mxu0 0.0
        %1047 = vmatprep.subr.mxu0 0.0
        %1048 = vmatpush2.xpose.msra.mxu0 0.0
        %1049 = vmatprep.mubr.f32.mxu0 0.0
        %1050 = vmatmul.mubr.f32.gmra.mxu0 %v981
        %v1051 = vpop.f32.mrf.mxu0
        %v1052 = vadd.f32 0.0, %v1051
        %v1053 = vpop.f32.mrf.mxu0
        %1054 = vdwg.mxu0
        %v1055 = vsel %vm478, %v1052, -1e+30
        %v1056 = vsel %vm482, %v1055, -inf
        %1057 = vmax.xlane.f32.xlu0 %v1056
        %v1058 = vpop.xlane.xlu0 %1057
        %v1059 = vsub.f32 %v1055, %v1058
        %v1060 = vmul.f32 %v1059, 1.442695
        %v1061 = vpow.pop %v1060
        %v1062 = vsel %vm482, %v1061, 0.0
        %1063 = vadd.xlane.f32.xlu0 %v1062
        %v1064 = vpop.xlane.xlu0 %1063
        %v1065 = vrcp.pop %v1064
        %v1066 = vmul.f32 %v1061, %v1065
        %1067 = vrot.lane.b32.xlu0 %v461, 40
        %v1068 = vpop.permute.xlu0 %1067
        %v1071 = vsel %vm482, %v1066, 0
        %1073 = vmatprep.subr.mxu0 0.0
        %1074 = vmatpush1.msra.mxu0 0.0
        %1075 = vmatprep.subr.mxu0 0.0
        %1076 = vmatpush1.msra.mxu0 0.0
        %1077 = vmatprep.subr.mxu0 0.0
        %1078 = vmatpush1.msra.mxu0 0.0
        %1079 = vmatprep.subr.mxu0 0.0
        %1080 = vmatpush1.msra.mxu0 0.0
        %1081 = vmatprep.subr.mxu0 0.0
        %1082 = vmatpush1.msra.mxu0 0.0
        %1083 = vmatprep.subr.mxu0 0.0
        %1084 = vmatpush1.msra.mxu0 0.0
        %1085 = vmatprep.subr.mxu0 0.0
        %1086 = vmatpush1.msra.mxu0 0.0
        %1087 = vmatprep.subr.mxu0 0.0
        %1088 = vmatpush1.msra.mxu0 0.0
        %1089 = vmatprep.subr.mxu0 0.0
        %1090 = vmatpush1.msra.mxu0 0.0
        %1091 = vmatprep.subr.mxu0 0.0
        %1092 = vmatpush1.msra.mxu0 0.0
        %1093 = vmatprep.subr.mxu0 0.0
        %1094 = vmatpush1.msra.mxu0 0.0
        %1095 = vmatprep.subr.mxu0 0.0
        %1096 = vmatpush1.msra.mxu0 0.0
        %1097 = vmatprep.subr.mxu0 0.0
        %1098 = vmatpush1.msra.mxu0 0.0
        %1099 = vmatprep.subr.mxu0 0.0
        %1100 = vmatpush1.msra.mxu0 0.0
        %1101 = vmatprep.subr.mxu0 0.0
        %1102 = vmatpush1.msra.mxu0 0.0
        %1103 = vmatprep.subr.mxu0 0.0
        %1104 = vmatpush1.msra.mxu0 %v1068
        %1105 = vmatprep.subr.mxu0 0.0
        %1106 = vmatpush2.msra.mxu0 0.0
        %1107 = vmatprep.subr.mxu0 0.0
        %1108 = vmatpush2.msra.mxu0 0.0
        %1109 = vmatprep.subr.mxu0 0.0
        %1110 = vmatpush2.msra.mxu0 0.0
        %1111 = vmatprep.subr.mxu0 0.0
        %1112 = vmatpush2.msra.mxu0 0.0
        %1113 = vmatprep.subr.mxu0 0.0
        %1114 = vmatpush2.msra.mxu0 0.0
        %1115 = vmatprep.subr.mxu0 0.0
        %1116 = vmatpush2.msra.mxu0 0.0
        %1117 = vmatprep.subr.mxu0 0.0
        %1118 = vmatpush2.msra.mxu0 0.0
        %1119 = vmatprep.subr.mxu0 0.0
        %1120 = vmatpush2.msra.mxu0 0.0
        %1121 = vmatprep.subr.mxu0 0.0
        %1122 = vmatpush2.msra.mxu0 0.0
        %1123 = vmatprep.subr.mxu0 0.0
        %1124 = vmatpush2.msra.mxu0 0.0
        %1125 = vmatprep.subr.mxu0 0.0
        %1126 = vmatpush2.msra.mxu0 0.0
        %1127 = vmatprep.subr.mxu0 0.0
        %1128 = vmatpush2.msra.mxu0 0.0
        %1129 = vmatprep.subr.mxu0 0.0
        %1130 = vmatpush2.msra.mxu0 0.0
        %1131 = vmatprep.subr.mxu0 0.0
        %1132 = vmatpush2.msra.mxu0 0.0
        %1133 = vmatprep.subr.mxu0 0.0
        %1134 = vmatpush2.msra.mxu0 0.0
        %1135 = vmatprep.subr.mxu0 0.0
        %1136 = vmatpush2.msra.mxu0 0.0
        %1137 = vmatprep.mubr.f32.mxu0 0.0
        %1138 = vmatmul.mubr.f32.gmra.mxu0 %v1071
        %v1139 = vpop.f32.mrf.mxu0
        %v1140 = vadd.f32 0.0, %v1139
        %v1141 = vpop.f32.mrf.mxu0
        %1142 = vdwg.mxu0
        %1144 = vrot.lane.b32.xlu0 %v808, 8
        %v1145 = vpop.permute.xlu0 %1144
        %1148 = vrot.lane.b32.xlu0 %v974, 16
        %v1149 = vpop.permute.xlu0 %1148
        %1152 = vrot.lane.b32.xlu0 %v1140, 24
        %v1153 = vpop.permute.xlu0 %1152
        %v1155 = vsel %vm482, %v642, %v1145
        %vm1156 = vcmask 130048
        %v1157 = vsel %vm1156, %v1155, %v1149
        %vm1158 = vcmask 195584
        %v1159 = vsel %vm1158, %v1157, %v1153
        %v1160 = vld [vmem:[#allocation9] sm:$0xff]
        %v1161 = vld [vmem:[#allocation9 + $0x8] sm:$0xff]
        %v1162 = vld [vmem:[#allocation9 + $0x10] sm:$0xff]
        %v1163 = vld [vmem:[#allocation9 + $0x18] sm:$0xff]
        %v1165 = vsel %vm356, %v1159, 0
        %1167 = vmatprep.subr.mxu0 0.0
        %1168 = vmatpush1.msra.mxu0 0.0
        %1169 = vmatprep.subr.mxu0 0.0
        %1170 = vmatpush1.msra.mxu0 0.0
        %1171 = vmatprep.subr.mxu0 0.0
        %1172 = vmatpush1.msra.mxu0 0.0
        %1173 = vmatprep.subr.mxu0 0.0
        %1174 = vmatpush1.msra.mxu0 0.0
        %1175 = vmatprep.subr.mxu0 0.0
        %1176 = vmatpush1.msra.mxu0 0.0
        %1177 = vmatprep.subr.mxu0 0.0
        %1178 = vmatpush1.msra.mxu0 0.0
        %1179 = vmatprep.subr.mxu0 0.0
        %1180 = vmatpush1.msra.mxu0 0.0
        %1181 = vmatprep.subr.mxu0 0.0
        %1182 = vmatpush1.msra.mxu0 0.0
        %1183 = vmatprep.subr.mxu0 0.0
        %1184 = vmatpush1.msra.mxu0 0.0
        %1185 = vmatprep.subr.mxu0 0.0
        %1186 = vmatpush1.msra.mxu0 0.0
        %1187 = vmatprep.subr.mxu0 0.0
        %1188 = vmatpush1.msra.mxu0 0.0
        %1189 = vmatprep.subr.mxu0 0.0
        %1190 = vmatpush1.msra.mxu0 0.0
        %1191 = vmatprep.subr.mxu0 0.0
        %1192 = vmatpush1.msra.mxu0 %v1163
        %1193 = vmatprep.subr.mxu0 0.0
        %1194 = vmatpush1.msra.mxu0 %v1162
        %1195 = vmatprep.subr.mxu0 0.0
        %1196 = vmatpush1.msra.mxu0 %v1161
        %1197 = vmatprep.subr.mxu0 0.0
        %1198 = vmatpush1.msra.mxu0 %v1160
        %1199 = vmatprep.subr.mxu0 0.0
        %1200 = vmatpush2.msra.mxu0 0.0
        %1201 = vmatprep.subr.mxu0 0.0
        %1202 = vmatpush2.msra.mxu0 0.0
        %1203 = vmatprep.subr.mxu0 0.0
        %1204 = vmatpush2.msra.mxu0 0.0
        %1205 = vmatprep.subr.mxu0 0.0
        %1206 = vmatpush2.msra.mxu0 0.0
        %1207 = vmatprep.subr.mxu0 0.0
        %1208 = vmatpush2.msra.mxu0 0.0
        %1209 = vmatprep.subr.mxu0 0.0
        %1210 = vmatpush2.msra.mxu0 0.0
        %1211 = vmatprep.subr.mxu0 0.0
        %1212 = vmatpush2.msra.mxu0 0.0
        %1213 = vmatprep.subr.mxu0 0.0
        %1214 = vmatpush2.msra.mxu0 0.0
        %1215 = vmatprep.subr.mxu0 0.0
        %1216 = vmatpush2.msra.mxu0 0.0
        %1217 = vmatprep.subr.mxu0 0.0
        %1218 = vmatpush2.msra.mxu0 0.0
        %1219 = vmatprep.subr.mxu0 0.0
        %1220 = vmatpush2.msra.mxu0 0.0
        %1221 = vmatprep.subr.mxu0 0.0
        %1222 = vmatpush2.msra.mxu0 0.0
        %1223 = vmatprep.subr.mxu0 0.0
        %1224 = vmatpush2.msra.mxu0 0.0
        %1225 = vmatprep.subr.mxu0 0.0
        %1226 = vmatpush2.msra.mxu0 0.0
        %1227 = vmatprep.subr.mxu0 0.0
        %1228 = vmatpush2.msra.mxu0 0.0
        %1229 = vmatprep.subr.mxu0 0.0
        %1230 = vmatpush2.msra.mxu0 0.0
        %1231 = vmatprep.mubr.f32.mxu0 0.0
        %1232 = vmatmul.mubr.f32.gmra.mxu0 %v1165
        %v1233 = vpop.f32.mrf.mxu0
        %v1234 = vadd.f32 0.0, %v1233
        %v1235 = vpop.f32.mrf.mxu0
        %1236 = vdwg.mxu0
        %v1237 = vsel %vm473, %v1234, 0.0
        %v1238 = vadd.f32 %v355, %v1237
        %v1239 = vld [vmem:[%s4] sm:$0x1]
        %v1241 = vlaneseq
        %v1242 = vshrl.u32 %v1241, 7
        %v1243 = vsub.s32 0, %v1242
        %v1244 = vrot.slane %v1239, %v1243
        %v1246 = vadd.f32 %v1238, %v1244
        %v1247 = vsel %vm356, %v1246, 0.0
        %1248 = vadd.xlane.f32.xlu0 %v1247
        %v1249 = vpop.xlane.xlu0 %1248
        %v1250 = vmul.f32 %v1249, %v360
        %v1251 = vsub.f32 %v1246, %v1250
        %v1252 = vmul.f32 %v1251, %v1251
        %v1253 = vsel %vm356, %v1252, 0.0
        %1254 = vadd.xlane.f32.xlu0 %v1253
        %v1255 = vpop.xlane.xlu0 %1254
        %v1256 = vmul.f32 %v1255, %v360
        %v1257 = vadd.f32 %v1256, 1e-05
        %v1258 = vrsqrt.pop %v1257
        %v1259 = vmul.f32 %v1251, %v1258
        %v1260 = vld [vmem:[%s7] sm:$0x1]
        %v1262 = vlaneseq
        %v1263 = vshrl.u32 %v1262, 7
        %v1264 = vsub.s32 0, %v1263
        %v1265 = vrot.slane %v1260, %v1264
        %v1267 = vmul.f32 %v1259, %v1265
        %v1268 = vld [vmem:[%s8] sm:$0x1]
        %v1270 = vlaneseq
        %v1271 = vshrl.u32 %v1270, 7
        %v1272 = vsub.s32 0, %v1271
        %v1273 = vrot.slane %v1268, %v1272
        %v1275 = vadd.f32 %v1267, %v1273
        %v1276 = vmax.f32 %v1275, 0.0
        %v1277 = vadd.f32 %v1246, %v1276
        %1278 = vst.msk [vmem:[%s354] sm:$0xff] %vm356, %v1277
        %s1279 = sand.u32 %s212, 1
        %s1280 = scalar_lea.sflag [#allocation6], %s1279
        %s1281 = sand.u32 %s212, 1
        %s1282 = smul.addr %s1281, 8
        %s1283 = scalar_lea.vmem [#allocation10], %s1282
        // Predicated region
        $region65: #{tpu_custom_call.1} parent=51 // pred_check
          %p1284 = pneg %p222
        $region66: #{tpu_custom_call.1} parent=51 // pred_check_branch
          %1286 = sbr.rel (%p1284) target = $region68
        $region67: #{tpu_custom_call.1} parent=51 // pred_region
          %s1288 = ssub.s32 128, 128
          %1289 = vsyncadd %s1280, %s1288
          %s1290 = smul.addr %s31, 128
          %s1291 = scalar_lea.hbm %s9, %s1290
          %s1293 = sshll.u32 %s1283, 4
          %s1294 = int_to_ptr.vmem [resolvable:$true] %s1293
          %1296 = dma.vmem_to_hbm [thread:$0]  %s1294, 128, %s1291, %s1280
        $region68: #{tpu_custom_call.1} parent=51 // pred_fallthru
          _
      $region52: #{tpu_custom_call.1} parent=5 // pred_fallthru
        _
      %p1297 = scmp.le.s32.totalorder 2, %s26
      // Predicated region
      $region69: #{tpu_custom_call.1} parent=5 // pred_check
        %p1298 = pneg %p1297
      $region70: #{tpu_custom_call.1} parent=5 // pred_check_branch
        %1300 = sbr.rel (%p1298) target = $region72
      $region71: #{tpu_custom_call.1} parent=5 // pred_region
        %s1301 = ssub.s32 %s26, 2
        // Predicated region
        $region73: #{tpu_custom_call.1} parent=71 // pred_check
          %p1302 = pneg %p228
        $region74: #{tpu_custom_call.1} parent=71 // pred_check_branch
          %1304 = sbr.rel (%p1302) target = $region76
        $region75: #{tpu_custom_call.1} parent=71 // pred_region
          %s1305 = sand.u32 %s213, 1
          %s1306 = scalar_lea.sflag [#allocation6], %s1305
          %s1307 = sand.u32 %s213, 1
          %s1308 = smul.addr %s1307, 8
          %s1309 = scalar_lea.vmem [#allocation10], %s1308
          %1310 = dma.done %s1306, 128
        $region76: #{tpu_custom_call.1} parent=71 // pred_fallthru
          _
      $region72: #{tpu_custom_call.1} parent=5 // pred_fallthru
        _
    $region6: #{tpu_custom_call.1} parent=1 // loop_footer
      %s30 = sadd.s32 1, %s26
    $region7: #{tpu_custom_call.1} parent=1 // loop_footer_branch
      %25 = sbr.rel target = $region3
    $region8: #{tpu_custom_call.1} parent=1 // loop_exit
      _
    %1311 = vsyncpa [#allocation5], 1
    %s1312 = scalar_lea.sflag [#allocation5], 1
    %1313 = vsyncpa %s1312, 1
    %1314 = vsyncpa [#allocation8], 1
    %1315 = vsyncpa [#allocation6], 1
    %s1316 = scalar_lea.sflag [#allocation6], 1
    %1317 = vsyncpa %s1316, 1

</llo_original>
